<compile_context>
chip_gen: v7x
topology: tpu7x:2x2x1
jax: 0.10.0
libtpu: 0.0.40
codegen_flags: <defaults>
</compile_context>

<pallas_src>
import functools

import jax
import jax.numpy as jnp
from jax.experimental import pallas as pl
from jax.experimental.pallas import tpu as pltpu


def _pick_block_n(n, max_block=8):
    """Largest divisor of n that is <= max_block while keeping >= 2 grid steps."""
    best = 1
    for b in range(1, min(n, max_block) + 1):
        if n % b == 0 and (n // b >= 2 or n == 1):
            best = b
    return best


# ---------------------------------------------------------------------------
# Fused kernel: conv3x3(pad=1) + bias + ReLU -> global avg pool
#               -> Linear(Cout,100) + ReLU -> Linear(100,num_classes)
# One grid step processes BN images; FC weights stay VMEM-resident
# (constant index_map), so only (BN, H, W, Cin) in and (BN, classes) out
# touch HBM per step.
# ---------------------------------------------------------------------------
def cnn_fused_kernel(x_ref, wc_ref, bc_ref, w1_ref, b1_ref, w2_ref, b2_ref,
                     o_ref, pad_ref, *, BN, H, W, Cin, Cout):
    # x_ref : (BN, H, W, Cin)        bf16   one block of images (NHWC)
    # wc_ref: (9*Cin, Cout)          bf16   conv weights in im2col layout
    # bc_ref: (1, Cout)              f32
    # w1_ref: (Cout, hidden)         bf16 ; b1_ref: (1, hidden)       f32
    # w2_ref: (hidden, num_classes)  bf16 ; b2_ref: (1, num_classes)  f32
    # o_ref : (1, BN, num_classes)   f32
    # pad_ref: VMEM scratch (BN, H+2, W+2, Cin) bf16

    # Zero-pad in VMEM (padding=1 "same" conv) -- no HBM-level jnp.pad.
    pad_ref[...] = jnp.zeros_like(pad_ref)
    pad_ref[:, 1:H + 1, 1:W + 1, :] = x_ref[...]

    # im2col: build (BN*H*W, 9*Cin) patch matrix once, single MXU matmul.
    cols = []
    for dy in range(3):
        for dx in range(3):
            cols.append(
                pad_ref[:, dy:dy + H, dx:dx + W, :].reshape(BN * H * W, Cin))
    patches = jnp.concatenate(cols, axis=1)                  # (BN*H*W, 9*Cin)

    acc = jnp.dot(patches, wc_ref[...],
                  preferred_element_type=jnp.float32)        # (BN*H*W, Cout)
    acc = jnp.maximum(acc + bc_ref[...], 0.0)                # bias + ReLU (f32)

    # Global average pool over H*W -> (BN, Cout), stays in VMEM.
    pooled = jnp.mean(acc.reshape(BN, H * W, Cout), axis=1)

    # FC head: Linear(Cout,100) -> ReLU -> Linear(100,num_classes).
    h = jnp.dot(pooled.astype(w1_ref.dtype), w1_ref[...],
                preferred_element_type=jnp.float32) + b1_ref[...]
    h = jnp.maximum(h, 0.0)
    logits = jnp.dot(h.astype(w2_ref.dtype), w2_ref[...],
                     preferred_element_type=jnp.float32) + b2_ref[...]
    o_ref[0] = logits


def cnn_forward_fused(params, x_nchw, block_n=None):
    # layout: input arrives NCHW (PyTorch convention); transpose to NHWC and
    # cast activations/weights to bf16 for the MXU (f32 accumulation inside).
    x_nhwc = jnp.transpose(x_nchw, (0, 2, 3, 1)).astype(jnp.bfloat16)
    N, H, W, Cin = x_nhwc.shape

    wc = params["conv_w"].reshape(9 * Cin, -1).astype(jnp.bfloat16)
    Cout = wc.shape[-1]
    bc = params["conv_b"].astype(jnp.float32)
    w1 = params["fc1_w"].astype(jnp.bfloat16)
    b1 = params["fc1_b"].astype(jnp.float32)
    w2 = params["fc2_w"].astype(jnp.bfloat16)
    b2 = params["fc2_b"].astype(jnp.float32)
    hidden = w1.shape[-1]
    num_classes = w2.shape[-1]

    BN = _pick_block_n(N) if block_n is None else block_n
    assert N % BN == 0
    G = N // BN

    kernel = functools.partial(cnn_fused_kernel,
                               BN=BN, H=H, W=W, Cin=Cin, Cout=Cout)
    out = pl.pallas_call(
        kernel,
        out_shape=jax.ShapeDtypeStruct((G, BN, num_classes), jnp.float32),
        grid_spec=pltpu.PrefetchScalarGridSpec(
            num_scalar_prefetch=0,
            grid=(G,),
            in_specs=[
                pl.BlockSpec((BN, H, W, Cin), lambda n: (n, 0, 0, 0)),
                pl.BlockSpec((9 * Cin, Cout), lambda n: (0, 0)),
                pl.BlockSpec((1, Cout), lambda n: (0, 0)),
                pl.BlockSpec((Cout, hidden), lambda n: (0, 0)),
                pl.BlockSpec((1, hidden), lambda n: (0, 0)),
                pl.BlockSpec((hidden, num_classes), lambda n: (0, 0)),
                pl.BlockSpec((1, num_classes), lambda n: (0, 0)),
            ],
            out_specs=pl.BlockSpec((1, BN, num_classes), lambda n: (n, 0, 0)),
            scratch_shapes=[pltpu.VMEM((BN, H + 2, W + 2, Cin), jnp.bfloat16)],
        ),
        compiler_params=pltpu.CompilerParams(
            dimension_semantics=("parallel",),
            vmem_limit_bytes=32 * 1024 * 1024,
        ),
    )(x_nhwc, wc, bc, w1, b1, w2, b2)
    return out.reshape(N, num_classes)


# ---------------------------------------------------------------------------
# Model wrapper
# ---------------------------------------------------------------------------
def init_params(key, num_channels, num_classes, conv_out=16, hidden=100):
    k1, k2, k3 = jax.random.split(key, 3)
    return {
        "conv_w": 0.1 * jax.random.normal(
            k1, (3, 3, num_channels, conv_out), jnp.float32),
        "conv_b": jnp.zeros((1, conv_out), jnp.float32),
        "fc1_w": 0.1 * jax.random.normal(k2, (conv_out, hidden), jnp.float32),
        "fc1_b": jnp.zeros((1, hidden), jnp.float32),
        "fc2_w": 0.1 * jax.random.normal(k3, (hidden, num_classes), jnp.float32),
        "fc2_b": jnp.zeros((1, num_classes), jnp.float32),
    }


@jax.jit
def cnn_forward(params, x_nchw):
    return cnn_forward_fused(params, x_nchw)


if __name__ == "__main__":
    num_channels = 4
    num_classes = 10
    batch, spatial = 2, 16

    key = jax.random.PRNGKey(0)
    kx, kp = jax.random.split(key)
    x = jax.random.normal(kx, (batch, num_channels, spatial, spatial),
                          jnp.float32)
    params = init_params(kp, num_channels, num_classes)

    logits = cnn_forward(params, x)
    jax.block_until_ready(logits)
    assert logits.shape == (batch, num_classes)
    assert bool(jnp.all(jnp.isfinite(logits)))
    print("KERNEL_OK")
</pallas_src>

<mosaic_0001>
module attributes {stable_mosaic.version = 11 : i64} {
  func.func @cnn_fused_kernel(%arg0: i32, %arg1: memref<1x16x16x4xbf16, #tpu.memory_space<vmem>>, %arg2: memref<36x16xbf16, #tpu.memory_space<vmem>>, %arg3: memref<1x16xf32, #tpu.memory_space<vmem>>, %arg4: memref<16x100xbf16, #tpu.memory_space<vmem>>, %arg5: memref<1x100xf32, #tpu.memory_space<vmem>>, %arg6: memref<100x10xbf16, #tpu.memory_space<vmem>>, %arg7: memref<1x10xf32, #tpu.memory_space<vmem>>, %arg8: memref<1x1x10xf32, #tpu.memory_space<vmem>>, %arg9: memref<1x18x18x4xbf16, #tpu.memory_space<vmem>>) attributes {dimension_semantics = [#tpu.dimension_semantics<parallel>], iteration_bounds = array<i64: 2>, scalar_prefetch = 0 : i64, scratch_operands = 1 : i64, tpu.core_type = #tpu.core_type<tc>, window_params = [{transform_indices = @transform_0, window_bounds = array<i64: 1, 16, 16, 4>}, {pipeline_mode = #tpu.pipeline_mode<synchronous>, transform_indices = @transform_1, window_bounds = array<i64: 36, 16>}, {pipeline_mode = #tpu.pipeline_mode<synchronous>, transform_indices = @transform_2, window_bounds = array<i64: 1, 16>}, {pipeline_mode = #tpu.pipeline_mode<synchronous>, transform_indices = @transform_3, window_bounds = array<i64: 16, 100>}, {pipeline_mode = #tpu.pipeline_mode<synchronous>, transform_indices = @transform_4, window_bounds = array<i64: 1, 100>}, {pipeline_mode = #tpu.pipeline_mode<synchronous>, transform_indices = @transform_5, window_bounds = array<i64: 100, 10>}, {pipeline_mode = #tpu.pipeline_mode<synchronous>, transform_indices = @transform_6, window_bounds = array<i64: 1, 10>}, {transform_indices = @transform_7, window_bounds = array<i64: 1, 1, 10>}]} {
    %cst = arith.constant 0.000000e+00 : bf16
    %0 = vector.broadcast %cst : bf16 to vector<1x18x18x4xbf16>
    %c0 = arith.constant 0 : index
    %c0_0 = arith.constant 0 : index
    %c0_1 = arith.constant 0 : index
    %c0_2 = arith.constant 0 : index
    %1 = vector.load %arg9[%c0, %c0_0, %c0_1, %c0_2] : memref<1x18x18x4xbf16, #tpu.memory_space<vmem>>, vector<1x18x18x4xbf16>
    tpu.vector_store %arg9[%c0, %c0_0, %c0_1, %c0_2], %0 {strides = array<i32>} : memref<1x18x18x4xbf16, #tpu.memory_space<vmem>>, vector<1x18x18x4xbf16>,
    %c0_3 = arith.constant 0 : index
    %c0_4 = arith.constant 0 : index
    %c0_5 = arith.constant 0 : index
    %c0_6 = arith.constant 0 : index
    %2 = vector.load %arg1[%c0_3, %c0_4, %c0_5, %c0_6] : memref<1x16x16x4xbf16, #tpu.memory_space<vmem>>, vector<1x16x16x4xbf16>
    %c0_7 = arith.constant 0 : index
    %c1 = arith.constant 1 : index
    %c1_8 = arith.constant 1 : index
    %c0_9 = arith.constant 0 : index
    %3 = vector.load %arg9[%c0_7, %c1, %c1_8, %c0_9] : memref<1x18x18x4xbf16, #tpu.memory_space<vmem>>, vector<1x16x16x4xbf16>
    tpu.vector_store %arg9[%c0_7, %c1, %c1_8, %c0_9], %2 {strides = array<i32>} : memref<1x18x18x4xbf16, #tpu.memory_space<vmem>>, vector<1x16x16x4xbf16>,
    %c0_10 = arith.constant 0 : index
    %c0_11 = arith.constant 0 : index
    %c0_12 = arith.constant 0 : index
    %c0_13 = arith.constant 0 : index
    %4 = vector.load %arg9[%c0_10, %c0_11, %c0_12, %c0_13] : memref<1x18x18x4xbf16, #tpu.memory_space<vmem>>, vector<1x16x16x4xbf16>
    %5 = vector.shape_cast %4 : vector<1x16x16x4xbf16> to vector<256x4xbf16>
    %c0_14 = arith.constant 0 : index
    %c0_15 = arith.constant 0 : index
    %c1_16 = arith.constant 1 : index
    %c0_17 = arith.constant 0 : index
    %6 = vector.load %arg9[%c0_14, %c0_15, %c1_16, %c0_17] : memref<1x18x18x4xbf16, #tpu.memory_space<vmem>>, vector<1x16x16x4xbf16>
    %7 = vector.shape_cast %6 : vector<1x16x16x4xbf16> to vector<256x4xbf16>
    %c0_18 = arith.constant 0 : index
    %c0_19 = arith.constant 0 : index
    %c2 = arith.constant 2 : index
    %c0_20 = arith.constant 0 : index
    %8 = vector.load %arg9[%c0_18, %c0_19, %c2, %c0_20] : memref<1x18x18x4xbf16, #tpu.memory_space<vmem>>, vector<1x16x16x4xbf16>
    %9 = vector.shape_cast %8 : vector<1x16x16x4xbf16> to vector<256x4xbf16>
    %c0_21 = arith.constant 0 : index
    %c1_22 = arith.constant 1 : index
    %c0_23 = arith.constant 0 : index
    %c0_24 = arith.constant 0 : index
    %10 = vector.load %arg9[%c0_21, %c1_22, %c0_23, %c0_24] : memref<1x18x18x4xbf16, #tpu.memory_space<vmem>>, vector<1x16x16x4xbf16>
    %11 = vector.shape_cast %10 : vector<1x16x16x4xbf16> to vector<256x4xbf16>
    %c0_25 = arith.constant 0 : index
    %c1_26 = arith.constant 1 : index
    %c1_27 = arith.constant 1 : index
    %c0_28 = arith.constant 0 : index
    %12 = vector.load %arg9[%c0_25, %c1_26, %c1_27, %c0_28] : memref<1x18x18x4xbf16, #tpu.memory_space<vmem>>, vector<1x16x16x4xbf16>
    %13 = vector.shape_cast %12 : vector<1x16x16x4xbf16> to vector<256x4xbf16>
    %c0_29 = arith.constant 0 : index
    %c1_30 = arith.constant 1 : index
    %c2_31 = arith.constant 2 : index
    %c0_32 = arith.constant 0 : index
    %14 = vector.load %arg9[%c0_29, %c1_30, %c2_31, %c0_32] : memref<1x18x18x4xbf16, #tpu.memory_space<vmem>>, vector<1x16x16x4xbf16>
    %15 = vector.shape_cast %14 : vector<1x16x16x4xbf16> to vector<256x4xbf16>
    %c0_33 = arith.constant 0 : index
    %c2_34 = arith.constant 2 : index
    %c0_35 = arith.constant 0 : index
    %c0_36 = arith.constant 0 : index
    %16 = vector.load %arg9[%c0_33, %c2_34, %c0_35, %c0_36] : memref<1x18x18x4xbf16, #tpu.memory_space<vmem>>, vector<1x16x16x4xbf16>
    %17 = vector.shape_cast %16 : vector<1x16x16x4xbf16> to vector<256x4xbf16>
    %c0_37 = arith.constant 0 : index
    %c2_38 = arith.constant 2 : index
    %c1_39 = arith.constant 1 : index
    %c0_40 = arith.constant 0 : index
    %18 = vector.load %arg9[%c0_37, %c2_38, %c1_39, %c0_40] : memref<1x18x18x4xbf16, #tpu.memory_space<vmem>>, vector<1x16x16x4xbf16>
    %19 = vector.shape_cast %18 : vector<1x16x16x4xbf16> to vector<256x4xbf16>
    %c0_41 = arith.constant 0 : index
    %c2_42 = arith.constant 2 : index
    %c2_43 = arith.constant 2 : index
    %c0_44 = arith.constant 0 : index
    %20 = vector.load %arg9[%c0_41, %c2_42, %c2_43, %c0_44] : memref<1x18x18x4xbf16, #tpu.memory_space<vmem>>, vector<1x16x16x4xbf16>
    %21 = vector.shape_cast %20 : vector<1x16x16x4xbf16> to vector<256x4xbf16>
    %22 = tpu.concatenate %5, %7, %9, %11, %13, %15, %17, %19, %21 in 1 : vector<256x4xbf16>, vector<256x4xbf16>, vector<256x4xbf16>, vector<256x4xbf16>, vector<256x4xbf16>, vector<256x4xbf16>, vector<256x4xbf16>, vector<256x4xbf16>, vector<256x4xbf16> -> vector<256x36xbf16>
    %c0_45 = arith.constant 0 : index
    %c0_46 = arith.constant 0 : index
    %23 = vector.load %arg2[%c0_45, %c0_46] : memref<36x16xbf16, #tpu.memory_space<vmem>>, vector<36x16xbf16>
    %cst_47 = arith.constant dense<0.000000e+00> : vector<256x16xf32>
    %24 = tpu.matmul %22, %23, %cst_47 {dimension_numbers = #tpu.dot_dimension_numbers<[1], [0], [0], [1], [0, 0, 1, 1], [], []>} : vector<256x36xbf16>, vector<36x16xbf16>, vector<256x16xf32> -> vector<256x16xf32>
    %c0_48 = arith.constant 0 : index
    %c0_49 = arith.constant 0 : index
    %25 = vector.load %arg3[%c0_48, %c0_49] : memref<1x16xf32, #tpu.memory_space<vmem>>, vector<1x16xf32>
    %26 = vector.broadcast %25 : vector<1x16xf32> to vector<256x16xf32>
    %27 = arith.addf %24, %26 : vector<256x16xf32>
    %cst_50 = arith.constant 0.000000e+00 : f32
    %28 = vector.broadcast %cst_50 : f32 to vector<256x16xf32>
    %29 = arith.maximumf %27, %28 : vector<256x16xf32>
    %30 = vector.shape_cast %29 : vector<256x16xf32> to vector<1x256x16xf32>
    %cst_51 = arith.constant dense<0.000000e+00> : vector<1x16xf32>
    %31 = vector.multi_reduction <add>, %30, %cst_51 [1] : vector<1x256x16xf32> to vector<1x16xf32>
    %cst_52 = arith.constant 2.560000e+02 : f32
    %32 = vector.broadcast %cst_52 : f32 to vector<1x16xf32>
    %33 = arith.divf %31, %32 : vector<1x16xf32>
    %34 = arith.truncf %33 : vector<1x16xf32> to vector<1x16xbf16>
    %c0_53 = arith.constant 0 : index
    %c0_54 = arith.constant 0 : index
    %35 = vector.load %arg4[%c0_53, %c0_54] : memref<16x100xbf16, #tpu.memory_space<vmem>>, vector<16x100xbf16>
    %cst_55 = arith.constant dense<0.000000e+00> : vector<1x100xf32>
    %36 = tpu.matmul %34, %35, %cst_55 {dimension_numbers = #tpu.dot_dimension_numbers<[1], [0], [0], [1], [0, 0, 1, 1], [], []>} : vector<1x16xbf16>, vector<16x100xbf16>, vector<1x100xf32> -> vector<1x100xf32>
    %c0_56 = arith.constant 0 : index
    %c0_57 = arith.constant 0 : index
    %37 = vector.load %arg5[%c0_56, %c0_57] : memref<1x100xf32, #tpu.memory_space<vmem>>, vector<1x100xf32>
    %38 = arith.addf %36, %37 : vector<1x100xf32>
    %cst_58 = arith.constant 0.000000e+00 : f32
    %39 = vector.broadcast %cst_58 : f32 to vector<1x100xf32>
    %40 = arith.maximumf %38, %39 : vector<1x100xf32>
    %41 = arith.truncf %40 : vector<1x100xf32> to vector<1x100xbf16>
    %c0_59 = arith.constant 0 : index
    %c0_60 = arith.constant 0 : index
    %42 = vector.load %arg6[%c0_59, %c0_60] : memref<100x10xbf16, #tpu.memory_space<vmem>>, vector<100x10xbf16>
    %cst_61 = arith.constant dense<0.000000e+00> : vector<1x10xf32>
    %43 = tpu.matmul %41, %42, %cst_61 {dimension_numbers = #tpu.dot_dimension_numbers<[1], [0], [0], [1], [0, 0, 1, 1], [], []>} : vector<1x100xbf16>, vector<100x10xbf16>, vector<1x10xf32> -> vector<1x10xf32>
    %c0_62 = arith.constant 0 : index
    %c0_63 = arith.constant 0 : index
    %44 = vector.load %arg7[%c0_62, %c0_63] : memref<1x10xf32, #tpu.memory_space<vmem>>, vector<1x10xf32>
    %45 = arith.addf %43, %44 : vector<1x10xf32>
    %c0_64 = arith.constant 0 : index
    %c0_65 = arith.constant 0 : index
    %c0_66 = arith.constant 0 : index
    %46 = vector.load %arg8[%c0_64, %c0_65, %c0_66] : memref<1x1x10xf32, #tpu.memory_space<vmem>>, vector<1x1x10xf32>
    %47 = vector.shape_cast %46 : vector<1x1x10xf32> to vector<1x10xf32>
    %48 = vector.shape_cast %45 : vector<1x10xf32> to vector<1x1x10xf32>
    tpu.vector_store %arg8[%c0_64, %c0_65, %c0_66], %48 {strides = array<i32>} : memref<1x1x10xf32, #tpu.memory_space<vmem>>, vector<1x1x10xf32>,
    return
  }
  func.func @transform_0(%arg0: i32) -> (i32, i32, i32, i32) {
    %c0_i32 = arith.constant 0 : i32
    %c0_i32_0 = arith.constant 0 : i32
    %c0_i32_1 = arith.constant 0 : i32
    %c0_i32_2 = arith.constant 0 : i32
    return %arg0, %c0_i32, %c0_i32_0, %c0_i32_1 : i32, i32, i32, i32
  }
  func.func @transform_1(%arg0: i32) -> (i32, i32) {
    %c0_i32 = arith.constant 0 : i32
    %c0_i32_0 = arith.constant 0 : i32
    %c0_i32_1 = arith.constant 0 : i32
    return %c0_i32, %c0_i32_0 : i32, i32
  }
  func.func @transform_2(%arg0: i32) -> (i32, i32) {
    %c0_i32 = arith.constant 0 : i32
    %c0_i32_0 = arith.constant 0 : i32
    %c0_i32_1 = arith.constant 0 : i32
    return %c0_i32, %c0_i32_0 : i32, i32
  }
  func.func @transform_3(%arg0: i32) -> (i32, i32) {
    %c0_i32 = arith.constant 0 : i32
    %c0_i32_0 = arith.constant 0 : i32
    %c0_i32_1 = arith.constant 0 : i32
    return %c0_i32, %c0_i32_0 : i32, i32
  }
  func.func @transform_4(%arg0: i32) -> (i32, i32) {
    %c0_i32 = arith.constant 0 : i32
    %c0_i32_0 = arith.constant 0 : i32
    %c0_i32_1 = arith.constant 0 : i32
    return %c0_i32, %c0_i32_0 : i32, i32
  }
  func.func @transform_5(%arg0: i32) -> (i32, i32) {
    %c0_i32 = arith.constant 0 : i32
    %c0_i32_0 = arith.constant 0 : i32
    %c0_i32_1 = arith.constant 0 : i32
    return %c0_i32, %c0_i32_0 : i32, i32
  }
  func.func @transform_6(%arg0: i32) -> (i32, i32) {
    %c0_i32 = arith.constant 0 : i32
    %c0_i32_0 = arith.constant 0 : i32
    %c0_i32_1 = arith.constant 0 : i32
    return %c0_i32, %c0_i32_0 : i32, i32
  }
  func.func @transform_7(%arg0: i32) -> (i32, i32, i32) {
    %c0_i32 = arith.constant 0 : i32
    %c0_i32_0 = arith.constant 0 : i32
    %c0_i32_1 = arith.constant 0 : i32
    return %arg0, %c0_i32, %c0_i32_0 : i32, i32, i32
  }
}

</mosaic_0001>

<llo_original>
// kernel: cnn_forward.1
$region0: #{cnn_forward.1}
  #allocation0 [shape = 'u32[]', space=smem, size = 0x4, offset = 0x4, fixed_abs, tag = 'smem constant byte address 0x4 - core index']
  #allocation1 [shape = 'u32[144,128]{1,0:T(1,128)}', space=vmem, size = 0x12000, scoped, tag = 'internal scratch']
  #allocation2 [shape = 'bf16[1,18,18,4]{3,2,1,0:T(8,128)(2,1)}', space=vmem, size = 0x1b000, scoped, tag = 'scratch operand']
  %s0 = inlined_call_operand.vmem [shape: bf16[2,16,16,4], index: 0, kind: input, shape index: {}]
  %s1 = inlined_call_operand.vmem [shape: bf16[36,16], index: 1, kind: input, shape index: {}]
  %s2 = inlined_call_operand.vmem [shape: f32[1,16], index: 2, kind: input, shape index: {}]
  %s3 = inlined_call_operand.vmem [shape: bf16[16,100], index: 3, kind: input, shape index: {}]
  %s4 = inlined_call_operand.vmem [shape: f32[1,100], index: 4, kind: input, shape index: {}]
  %s5 = inlined_call_operand.vmem [shape: bf16[100,10], index: 5, kind: input, shape index: {}]
  %s6 = inlined_call_operand.vmem [shape: f32[1,10], index: 6, kind: input, shape index: {}]
  %s7 = inlined_call_operand.hbm [shape: f32[2,1,10], index: 7, kind: output, shape index: {}]
  %s8 = sld [smem:[#allocation0]]
  $region61: #{cnn_forward.1} parent=0
    _
  %s10 = ssub.s32 1, %s8
  %s11 = scalar_select 0, %s10, %s8
  $region1: #{cnn_forward.1} parent=0
    #allocation3 [shape = 'u8[1024]{0}', space=vmem, size = 0x400, scoped, tag = 'output window, operand 0']
    #allocation4 [shape = 's32[2]{0}', space=sflag, size = 0x8, scoped, tag = 'scoped memory for cnn_forward.1']
    %12 = vsyncpa [#allocation4], 0
    %s13 = scalar_lea.sflag [#allocation4], 1
    %14 = vsyncpa %s13, 0
    loop: start=0, step=1, limit=4
    $region2: #{cnn_forward.1} parent=1 // loop_pre_header
      _
    $region3: #{cnn_forward.1} parent=1 // loop_header
      %s16 = sphi 0, %s20
      %p17 = scmp.ge.s32.totalorder %s16, 4
      %s26 = sphi 0, %s28
      %s29 = sphi 0, %s26
      %s30 = sphi 0, %s29
      %s46 = sphi 0, %s30
      %s50 = sphi 0, %s50
      %s52 = sphi 0, %s50
      %s53 = sphi 0, %s52
      %s67 = sphi 0, %s53
      %s71 = sphi 0, %s71
      %s73 = sphi 0, %s71
      %s74 = sphi 0, %s73
      %s88 = sphi 0, %s74
      %s92 = sphi 0, %s92
      %s94 = sphi 0, %s92
      %s95 = sphi 0, %s94
      %s109 = sphi 0, %s95
      %s113 = sphi 0, %s113
      %s115 = sphi 0, %s113
      %s116 = sphi 0, %s115
      %s130 = sphi 0, %s116
      %s134 = sphi 0, %s134
      %s136 = sphi 0, %s134
      %s137 = sphi 0, %s136
      %s151 = sphi 0, %s137
      %s155 = sphi 0, %s155
      %s157 = sphi 0, %s155
      %s158 = sphi 0, %s157
      %s172 = sphi 0, %s158
      %s178 = sphi 0, %s180
      %s181 = sphi 0, %s178
      %s182 = sphi 0, %s181
      %s198 = sphi 0, %s182
    $region4: #{cnn_forward.1} parent=1 // loop_header_branch
      %19 = sbr.rel (%p17) target = $region8
    $region5: #{cnn_forward.1} parent=1 // loop_body
      %s21 = ssub.s32 %s16, 1
      %s22 = ssub.s32 %s16, 2
      %s23 = sadd.s32 %s16, 1
      %s24 = ssub.s32 %s16, %s23
      %p25 = scmp.eq.s32.totalorder %s24, 0
      %s27 = sadd.s32 %s26, 1
      %s28 = scalar_select %p25, %s26, %s27
      %p31 = pneg %p25
      %p32 = scmp.eq.s32.totalorder %s16, 1
      %p33 = por %p31, %p32
      %p34 = scmp.ne.s32.totalorder %s26, %s29
      %p35 = scmp.eq.s32.totalorder %s16, 0
      %p36 = por %p34, %p35
      %p37 = scmp.ne.s32.totalorder %s26, %s29
      %p38 = scmp.eq.s32.totalorder %s21, 1
      %p39 = por %p37, %p38
      %p40 = scmp.ne.s32.totalorder %s29, %s30
      %p41 = scmp.eq.s32.totalorder %s21, 0
      %p42 = por %p40, %p41
      %p43 = scmp.ne.s32.totalorder %s29, %s30
      %p44 = scmp.eq.s32.totalorder %s22, 1
      %p45 = por %p43, %p44
      %p47 = scmp.ne.s32.totalorder %s30, %s46
      %p48 = scmp.eq.s32.totalorder %s22, 0
      %p49 = por %p47, %p48
      %s51 = sadd.s32 %s50, 1
      %p54 = scmp.eq.s32.totalorder %s16, 1
      %p55 = scmp.ne.s32.totalorder %s50, %s52
      %p56 = scmp.eq.s32.totalorder %s16, 0
      %p57 = por %p55, %p56
      %p58 = scmp.ne.s32.totalorder %s50, %s52
      %p59 = scmp.eq.s32.totalorder %s21, 1
      %p60 = por %p58, %p59
      %p61 = scmp.ne.s32.totalorder %s52, %s53
      %p62 = scmp.eq.s32.totalorder %s21, 0
      %p63 = por %p61, %p62
      %p64 = scmp.ne.s32.totalorder %s52, %s53
      %p65 = scmp.eq.s32.totalorder %s22, 1
      %p66 = por %p64, %p65
      %p68 = scmp.ne.s32.totalorder %s53, %s67
      %p69 = scmp.eq.s32.totalorder %s22, 0
      %p70 = por %p68, %p69
      %s72 = sadd.s32 %s71, 1
      %p75 = scmp.eq.s32.totalorder %s16, 1
      %p76 = scmp.ne.s32.totalorder %s71, %s73
      %p77 = scmp.eq.s32.totalorder %s16, 0
      %p78 = por %p76, %p77
      %p79 = scmp.ne.s32.totalorder %s71, %s73
      %p80 = scmp.eq.s32.totalorder %s21, 1
      %p81 = por %p79, %p80
      %p82 = scmp.ne.s32.totalorder %s73, %s74
      %p83 = scmp.eq.s32.totalorder %s21, 0
      %p84 = por %p82, %p83
      %p85 = scmp.ne.s32.totalorder %s73, %s74
      %p86 = scmp.eq.s32.totalorder %s22, 1
      %p87 = por %p85, %p86
      %p89 = scmp.ne.s32.totalorder %s74, %s88
      %p90 = scmp.eq.s32.totalorder %s22, 0
      %p91 = por %p89, %p90
      %s93 = sadd.s32 %s92, 1
      %p96 = scmp.eq.s32.totalorder %s16, 1
      %p97 = scmp.ne.s32.totalorder %s92, %s94
      %p98 = scmp.eq.s32.totalorder %s16, 0
      %p99 = por %p97, %p98
      %p100 = scmp.ne.s32.totalorder %s92, %s94
      %p101 = scmp.eq.s32.totalorder %s21, 1
      %p102 = por %p100, %p101
      %p103 = scmp.ne.s32.totalorder %s94, %s95
      %p104 = scmp.eq.s32.totalorder %s21, 0
      %p105 = por %p103, %p104
      %p106 = scmp.ne.s32.totalorder %s94, %s95
      %p107 = scmp.eq.s32.totalorder %s22, 1
      %p108 = por %p106, %p107
      %p110 = scmp.ne.s32.totalorder %s95, %s109
      %p111 = scmp.eq.s32.totalorder %s22, 0
      %p112 = por %p110, %p111
      %s114 = sadd.s32 %s113, 1
      %p117 = scmp.eq.s32.totalorder %s16, 1
      %p118 = scmp.ne.s32.totalorder %s113, %s115
      %p119 = scmp.eq.s32.totalorder %s16, 0
      %p120 = por %p118, %p119
      %p121 = scmp.ne.s32.totalorder %s113, %s115
      %p122 = scmp.eq.s32.totalorder %s21, 1
      %p123 = por %p121, %p122
      %p124 = scmp.ne.s32.totalorder %s115, %s116
      %p125 = scmp.eq.s32.totalorder %s21, 0
      %p126 = por %p124, %p125
      %p127 = scmp.ne.s32.totalorder %s115, %s116
      %p128 = scmp.eq.s32.totalorder %s22, 1
      %p129 = por %p127, %p128
      %p131 = scmp.ne.s32.totalorder %s116, %s130
      %p132 = scmp.eq.s32.totalorder %s22, 0
      %p133 = por %p131, %p132
      %s135 = sadd.s32 %s134, 1
      %p138 = scmp.eq.s32.totalorder %s16, 1
      %p139 = scmp.ne.s32.totalorder %s134, %s136
      %p140 = scmp.eq.s32.totalorder %s16, 0
      %p141 = por %p139, %p140
      %p142 = scmp.ne.s32.totalorder %s134, %s136
      %p143 = scmp.eq.s32.totalorder %s21, 1
      %p144 = por %p142, %p143
      %p145 = scmp.ne.s32.totalorder %s136, %s137
      %p146 = scmp.eq.s32.totalorder %s21, 0
      %p147 = por %p145, %p146
      %p148 = scmp.ne.s32.totalorder %s136, %s137
      %p149 = scmp.eq.s32.totalorder %s22, 1
      %p150 = por %p148, %p149
      %p152 = scmp.ne.s32.totalorder %s137, %s151
      %p153 = scmp.eq.s32.totalorder %s22, 0
      %p154 = por %p152, %p153
      %s156 = sadd.s32 %s155, 1
      %p159 = scmp.eq.s32.totalorder %s16, 1
      %p160 = scmp.ne.s32.totalorder %s155, %s157
      %p161 = scmp.eq.s32.totalorder %s16, 0
      %p162 = por %p160, %p161
      %p163 = scmp.ne.s32.totalorder %s155, %s157
      %p164 = scmp.eq.s32.totalorder %s21, 1
      %p165 = por %p163, %p164
      %p166 = scmp.ne.s32.totalorder %s157, %s158
      %p167 = scmp.eq.s32.totalorder %s21, 0
      %p168 = por %p166, %p167
      %p169 = scmp.ne.s32.totalorder %s157, %s158
      %p170 = scmp.eq.s32.totalorder %s22, 1
      %p171 = por %p169, %p170
      %p173 = scmp.ne.s32.totalorder %s158, %s172
      %p174 = scmp.eq.s32.totalorder %s22, 0
      %p175 = por %p173, %p174
      %s176 = ssub.s32 %s16, %s23
      %p177 = scmp.eq.s32.totalorder %s176, 0
      %s179 = sadd.s32 %s178, 1
      %s180 = scalar_select %p177, %s178, %s179
      %p183 = pneg %p177
      %p184 = scmp.eq.s32.totalorder %s16, 1
      %p185 = por %p183, %p184
      %p186 = scmp.ne.s32.totalorder %s178, %s181
      %p187 = scmp.eq.s32.totalorder %s16, 0
      %p188 = por %p186, %p187
      %p189 = scmp.ne.s32.totalorder %s178, %s181
      %p190 = scmp.eq.s32.totalorder %s21, 1
      %p191 = por %p189, %p190
      %p192 = scmp.ne.s32.totalorder %s181, %s182
      %p193 = scmp.eq.s32.totalorder %s21, 0
      %p194 = por %p192, %p193
      %p195 = scmp.ne.s32.totalorder %s181, %s182
      %p196 = scmp.eq.s32.totalorder %s22, 1
      %p197 = por %p195, %p196
      %p199 = scmp.ne.s32.totalorder %s182, %s198
      %p200 = scmp.eq.s32.totalorder %s22, 0
      %p201 = por %p199, %p200
      %p202 = scmp.le.s32.totalorder 1, %s16
      %p203 = scmp.lt.s32.totalorder %s16, 3
      %p204 = pnand %p202, %p203
      %p205 = pneg %p204
      // Predicated region
      $region9: #{cnn_forward.1} parent=5 // pred_check
        _
      $region10: #{cnn_forward.1} parent=5 // pred_check_branch
        %207 = sbr.rel (%p204) target = $region12
      $region11: #{cnn_forward.1} parent=5 // pred_region
        %s208 = ssub.s32 %s16, 1
        // Predicated region
        $region13: #{cnn_forward.1} parent=11 // pred_check
          %p209 = pneg %p63
        $region14: #{cnn_forward.1} parent=11 // pred_check_branch
          %211 = sbr.rel (%p209) target = $region16
        $region15: #{cnn_forward.1} parent=11 // pred_region
          _
        $region16: #{cnn_forward.1} parent=11 // pred_fallthru
          _
        // Predicated region
        $region17: #{cnn_forward.1} parent=11 // pred_check
          %p212 = pneg %p84
        $region18: #{cnn_forward.1} parent=11 // pred_check_branch
          %214 = sbr.rel (%p212) target = $region20
        $region19: #{cnn_forward.1} parent=11 // pred_region
          _
        $region20: #{cnn_forward.1} parent=11 // pred_fallthru
          _
        // Predicated region
        $region21: #{cnn_forward.1} parent=11 // pred_check
          %p215 = pneg %p105
        $region22: #{cnn_forward.1} parent=11 // pred_check_branch
          %217 = sbr.rel (%p215) target = $region24
        $region23: #{cnn_forward.1} parent=11 // pred_region
          _
        $region24: #{cnn_forward.1} parent=11 // pred_fallthru
          _
        // Predicated region
        $region25: #{cnn_forward.1} parent=11 // pred_check
          %p218 = pneg %p126
        $region26: #{cnn_forward.1} parent=11 // pred_check_branch
          %220 = sbr.rel (%p218) target = $region28
        $region27: #{cnn_forward.1} parent=11 // pred_region
          _
        $region28: #{cnn_forward.1} parent=11 // pred_fallthru
          _
        // Predicated region
        $region29: #{cnn_forward.1} parent=11 // pred_check
          %p221 = pneg %p147
        $region30: #{cnn_forward.1} parent=11 // pred_check_branch
          %223 = sbr.rel (%p221) target = $region32
        $region31: #{cnn_forward.1} parent=11 // pred_region
          _
        $region32: #{cnn_forward.1} parent=11 // pred_fallthru
          _
        // Predicated region
        $region33: #{cnn_forward.1} parent=11 // pred_check
          %p224 = pneg %p168
        $region34: #{cnn_forward.1} parent=11 // pred_check_branch
          %226 = sbr.rel (%p224) target = $region36
        $region35: #{cnn_forward.1} parent=11 // pred_region
          _
        $region36: #{cnn_forward.1} parent=11 // pred_fallthru
          _
      $region12: #{cnn_forward.1} parent=5 // pred_fallthru
        _
      %p227 = scmp.lt.s32.totalorder %s16, 2
      // Predicated region
      $region37: #{cnn_forward.1} parent=5 // pred_check
        %p228 = pneg %p227
      $region38: #{cnn_forward.1} parent=5 // pred_check_branch
        %230 = sbr.rel (%p228) target = $region40
      $region39: #{cnn_forward.1} parent=5 // pred_region
        // Predicated region
        $region41: #{cnn_forward.1} parent=39 // pred_check
          %p231 = pneg %p36
        $region42: #{cnn_forward.1} parent=39 // pred_check_branch
          %233 = sbr.rel (%p231) target = $region44
        $region43: #{cnn_forward.1} parent=39 // pred_region
          %p234 = scmp.lt.s32.totalorder %s16, 1
          %s235 = scalar_select %p234, %s16, 1
          %s236 = smul.addr %s235, 32
          %s237 = smul.addr %s236, 4
          %s238 = scalar_lea.vmem %s0, %s237
        $region44: #{cnn_forward.1} parent=39 // pred_fallthru
          _
      $region40: #{cnn_forward.1} parent=5 // pred_fallthru
        _
      %p239 = scmp.le.s32.totalorder 1, %s16
      %p240 = scmp.lt.s32.totalorder %s16, 3
      %p241 = pnand %p239, %p240
      %p242 = pneg %p241
      // Predicated region
      $region45: #{cnn_forward.1} parent=5 // pred_check
        _
      $region46: #{cnn_forward.1} parent=5 // pred_check_branch
        %244 = sbr.rel (%p241) target = $region48
      $region47: #{cnn_forward.1} parent=5 // pred_region
        %s245 = ssub.s32 %s16, 1
        %p246 = scmp.lt.s32.totalorder %s21, 1
        %s247 = scalar_select %p246, %s21, 1
        %s248 = smul.addr %s247, 32
        %s249 = smul.addr %s248, 4
        %s250 = scalar_lea.vmem %s0, %s249
        %p251 = pneg %p42
        %p252 = pneg %p39
        %p253 = pneg %p63
        %p254 = pneg %p60
        %p255 = pneg %p84
        %p256 = pneg %p81
        %p257 = pneg %p105
        %p258 = pneg %p102
        %p259 = pneg %p126
        %p260 = pneg %p123
        %p261 = pneg %p147
        %p262 = pneg %p144
        %p263 = pneg %p168
        %p264 = pneg %p165
        %p265 = pneg %p194
        %p266 = pneg %p191
        %s267 = sand.u32 %s181, 1
        %s268 = scalar_lea.sflag [#allocation4], %s267
        %s269 = sand.u32 %s181, 1
        %s270 = scalar_lea.vmem [#allocation3], %s269
        %p271 = scmp.lt.s32.totalorder %s21, 1
        %s272 = scalar_select %p271, %s21, 1
        %s273 = smul.addr %s272, 32
        %s274 = smul.addr %s273, 4
        %s275 = scalar_lea.vmem %s0, %s274
        %vm277 = vcmask 27648
        %278 = vst.msk [vmem:[#allocation2] sm:$0xf] %vm277, 0
        %279 = vst.msk [vmem:[#allocation2 + $0x4] sm:$0xf] %vm277, 0
        %vm280 = vcmask 24576
        %281 = vst.msk [vmem:[#allocation2 + $0x8] sm:$0x1] %vm280, 0
        %282 = vst.msk [vmem:[#allocation2 + $0xc] sm:$0xf] %vm277, 0
        %283 = vst.msk [vmem:[#allocation2 + $0x10] sm:$0xf] %vm277, 0
        %284 = vst.msk [vmem:[#allocation2 + $0x14] sm:$0x1] %vm280, 0
        %285 = vst.msk [vmem:[#allocation2 + $0x18] sm:$0xf] %vm277, 0
        %286 = vst.msk [vmem:[#allocation2 + $0x1c] sm:$0xf] %vm277, 0
        %287 = vst.msk [vmem:[#allocation2 + $0x20] sm:$0x1] %vm280, 0
        %288 = vst.msk [vmem:[#allocation2 + $0x24] sm:$0xf] %vm277, 0
        %289 = vst.msk [vmem:[#allocation2 + $0x28] sm:$0xf] %vm277, 0
        %290 = vst.msk [vmem:[#allocation2 + $0x2c] sm:$0x1] %vm280, 0
        %291 = vst.msk [vmem:[#allocation2 + $0x30] sm:$0xf] %vm277, 0
        %292 = vst.msk [vmem:[#allocation2 + $0x34] sm:$0xf] %vm277, 0
        %293 = vst.msk [vmem:[#allocation2 + $0x38] sm:$0x1] %vm280, 0
        %294 = vst.msk [vmem:[#allocation2 + $0x3c] sm:$0xf] %vm277, 0
        %295 = vst.msk [vmem:[#allocation2 + $0x40] sm:$0xf] %vm277, 0
        %296 = vst.msk [vmem:[#allocation2 + $0x44] sm:$0x1] %vm280, 0
        %297 = vst.msk [vmem:[#allocation2 + $0x48] sm:$0xf] %vm277, 0
        %298 = vst.msk [vmem:[#allocation2 + $0x4c] sm:$0xf] %vm277, 0
        %299 = vst.msk [vmem:[#allocation2 + $0x50] sm:$0x1] %vm280, 0
        %300 = vst.msk [vmem:[#allocation2 + $0x54] sm:$0xf] %vm277, 0
        %301 = vst.msk [vmem:[#allocation2 + $0x58] sm:$0xf] %vm277, 0
        %302 = vst.msk [vmem:[#allocation2 + $0x5c] sm:$0x1] %vm280, 0
        %303 = vst.msk [vmem:[#allocation2 + $0x60] sm:$0xf] %vm277, 0
        %304 = vst.msk [vmem:[#allocation2 + $0x64] sm:$0xf] %vm277, 0
        %305 = vst.msk [vmem:[#allocation2 + $0x68] sm:$0x1] %vm280, 0
        %306 = vst.msk [vmem:[#allocation2 + $0x6c] sm:$0xf] %vm277, 0
        %307 = vst.msk [vmem:[#allocation2 + $0x70] sm:$0xf] %vm277, 0
        %308 = vst.msk [vmem:[#allocation2 + $0x74] sm:$0x1] %vm280, 0
        %309 = vst.msk [vmem:[#allocation2 + $0x78] sm:$0xf] %vm277, 0
        %310 = vst.msk [vmem:[#allocation2 + $0x7c] sm:$0xf] %vm277, 0
        %311 = vst.msk [vmem:[#allocation2 + $0x80] sm:$0x1] %vm280, 0
        %312 = vst.msk [vmem:[#allocation2 + $0x84] sm:$0xf] %vm277, 0
        %313 = vst.msk [vmem:[#allocation2 + $0x88] sm:$0xf] %vm277, 0
        %314 = vst.msk [vmem:[#allocation2 + $0x8c] sm:$0x1] %vm280, 0
        %315 = vst.msk [vmem:[#allocation2 + $0x90] sm:$0xf] %vm277, 0
        %316 = vst.msk [vmem:[#allocation2 + $0x94] sm:$0xf] %vm277, 0
        %317 = vst.msk [vmem:[#allocation2 + $0x98] sm:$0x1] %vm280, 0
        %318 = vst.msk [vmem:[#allocation2 + $0x9c] sm:$0xf] %vm277, 0
        %319 = vst.msk [vmem:[#allocation2 + $0xa0] sm:$0xf] %vm277, 0
        %320 = vst.msk [vmem:[#allocation2 + $0xa4] sm:$0x1] %vm280, 0
        %321 = vst.msk [vmem:[#allocation2 + $0xa8] sm:$0xf] %vm277, 0
        %322 = vst.msk [vmem:[#allocation2 + $0xac] sm:$0xf] %vm277, 0
        %323 = vst.msk [vmem:[#allocation2 + $0xb0] sm:$0x1] %vm280, 0
        %324 = vst.msk [vmem:[#allocation2 + $0xb4] sm:$0xf] %vm277, 0
        %325 = vst.msk [vmem:[#allocation2 + $0xb8] sm:$0xf] %vm277, 0
        %326 = vst.msk [vmem:[#allocation2 + $0xbc] sm:$0x1] %vm280, 0
        %327 = vst.msk [vmem:[#allocation2 + $0xc0] sm:$0xf] %vm277, 0
        %328 = vst.msk [vmem:[#allocation2 + $0xc4] sm:$0xf] %vm277, 0
        %329 = vst.msk [vmem:[#allocation2 + $0xc8] sm:$0x1] %vm280, 0
        %330 = vst.msk [vmem:[#allocation2 + $0xcc] sm:$0xf] %vm277, 0
        %331 = vst.msk [vmem:[#allocation2 + $0xd0] sm:$0xf] %vm277, 0
        %332 = vst.msk [vmem:[#allocation2 + $0xd4] sm:$0x1] %vm280, 0
        %v333 = vld [vmem:[%s275] sm:$0xf]
        %v334 = vld [vmem:[%s275 + $0x4] sm:$0xf]
        %v335 = vld [vmem:[%s275 + $0x8] sm:$0xf]
        %v336 = vld [vmem:[%s275 + $0xc] sm:$0xf]
        %v337 = vld [vmem:[%s275 + $0x10] sm:$0xf]
        %v338 = vld [vmem:[%s275 + $0x14] sm:$0xf]
        %v339 = vld [vmem:[%s275 + $0x18] sm:$0xf]
        %v340 = vld [vmem:[%s275 + $0x1c] sm:$0xf]
        %v341 = vld [vmem:[%s275 + $0x20] sm:$0xf]
        %v342 = vld [vmem:[%s275 + $0x24] sm:$0xf]
        %v343 = vld [vmem:[%s275 + $0x28] sm:$0xf]
        %v344 = vld [vmem:[%s275 + $0x2c] sm:$0xf]
        %v345 = vld [vmem:[%s275 + $0x30] sm:$0xf]
        %v346 = vld [vmem:[%s275 + $0x34] sm:$0xf]
        %v347 = vld [vmem:[%s275 + $0x38] sm:$0xf]
        %v348 = vld [vmem:[%s275 + $0x3c] sm:$0xf]
        %v349 = vld [vmem:[%s275 + $0x40] sm:$0xf]
        %v350 = vld [vmem:[%s275 + $0x44] sm:$0xf]
        %v351 = vld [vmem:[%s275 + $0x48] sm:$0xf]
        %v352 = vld [vmem:[%s275 + $0x4c] sm:$0xf]
        %v353 = vld [vmem:[%s275 + $0x50] sm:$0xf]
        %v354 = vld [vmem:[%s275 + $0x54] sm:$0xf]
        %v355 = vld [vmem:[%s275 + $0x58] sm:$0xf]
        %v356 = vld [vmem:[%s275 + $0x5c] sm:$0xf]
        %v357 = vld [vmem:[%s275 + $0x60] sm:$0xf]
        %v358 = vld [vmem:[%s275 + $0x64] sm:$0xf]
        %v359 = vld [vmem:[%s275 + $0x68] sm:$0xf]
        %v360 = vld [vmem:[%s275 + $0x6c] sm:$0xf]
        %v361 = vld [vmem:[%s275 + $0x70] sm:$0xf]
        %v362 = vld [vmem:[%s275 + $0x74] sm:$0xf]
        %v363 = vld [vmem:[%s275 + $0x78] sm:$0xf]
        %v364 = vld [vmem:[%s275 + $0x7c] sm:$0xf]
        %vm365 = vsmask.f32 256
        %vm366 = vsmask.f32 4368
        %vm367 = vmor %vm365, %vm366
        %v369 = vshrl.u32 %v333, 16
        %v371 = vrot.slane %v369, 7
        %v372 = vshll.u32 %v333, 16
        %v374 = vor.u32 %v371, %v372
        %v375 = vrot.slane %v371, 4
        %v377 = vshrl.u32 %v334, 16
        %v379 = vrot.slane %v377, 7
        %v380 = vshll.u32 %v334, 16
        %v382 = vor.u32 %v379, %v380
        %v383 = vsel %vm367, %v375, %v382
        %v384 = vrot.slane %v379, 4
        %v386 = vshrl.u32 %v335, 16
        %v388 = vrot.slane %v386, 7
        %v389 = vshll.u32 %v335, 16
        %v391 = vor.u32 %v388, %v389
        %v392 = vrot.slane %v388, 4
        %v394 = vshrl.u32 %v336, 16
        %v396 = vrot.slane %v394, 7
        %v397 = vshll.u32 %v336, 16
        %v399 = vor.u32 %v396, %v397
        %v400 = vsel %vm367, %v392, %v399
        %v401 = vrot.slane %v396, 4
        %v403 = vshrl.u32 %v337, 16
        %v405 = vrot.slane %v403, 7
        %v406 = vshll.u32 %v337, 16
        %v408 = vor.u32 %v405, %v406
        %v409 = vrot.slane %v405, 4
        %v411 = vshrl.u32 %v338, 16
        %v413 = vrot.slane %v411, 7
        %v414 = vshll.u32 %v338, 16
        %v416 = vor.u32 %v413, %v414
        %v417 = vsel %vm367, %v409, %v416
        %v418 = vrot.slane %v413, 4
        %v420 = vshrl.u32 %v339, 16
        %v422 = vrot.slane %v420, 7
        %v423 = vshll.u32 %v339, 16
        %v425 = vor.u32 %v422, %v423
        %v426 = vrot.slane %v422, 4
        %v428 = vshrl.u32 %v340, 16
        %v430 = vrot.slane %v428, 7
        %v431 = vshll.u32 %v340, 16
        %v433 = vor.u32 %v430, %v431
        %v434 = vsel %vm367, %v426, %v433
        %v435 = vrot.slane %v430, 4
        %v437 = vshrl.u32 %v341, 16
        %v439 = vrot.slane %v437, 7
        %v440 = vshll.u32 %v341, 16
        %v442 = vor.u32 %v439, %v440
        %v443 = vrot.slane %v439, 4
        %v445 = vshrl.u32 %v342, 16
        %v447 = vrot.slane %v445, 7
        %v448 = vshll.u32 %v342, 16
        %v450 = vor.u32 %v447, %v448
        %v451 = vsel %vm367, %v443, %v450
        %v452 = vrot.slane %v447, 4
        %v454 = vshrl.u32 %v343, 16
        %v456 = vrot.slane %v454, 7
        %v457 = vshll.u32 %v343, 16
        %v459 = vor.u32 %v456, %v457
        %v460 = vrot.slane %v456, 4
        %v462 = vshrl.u32 %v344, 16
        %v464 = vrot.slane %v462, 7
        %v465 = vshll.u32 %v344, 16
        %v467 = vor.u32 %v464, %v465
        %v468 = vsel %vm367, %v460, %v467
        %v469 = vrot.slane %v464, 4
        %v471 = vshrl.u32 %v345, 16
        %v473 = vrot.slane %v471, 7
        %v474 = vshll.u32 %v345, 16
        %v476 = vor.u32 %v473, %v474
        %v477 = vrot.slane %v473, 4
        %v479 = vshrl.u32 %v346, 16
        %v481 = vrot.slane %v479, 7
        %v482 = vshll.u32 %v346, 16
        %v484 = vor.u32 %v481, %v482
        %v485 = vsel %vm367, %v477, %v484
        %v486 = vrot.slane %v481, 4
        %v488 = vshrl.u32 %v347, 16
        %v490 = vrot.slane %v488, 7
        %v491 = vshll.u32 %v347, 16
        %v493 = vor.u32 %v490, %v491
        %v494 = vrot.slane %v490, 4
        %v496 = vshrl.u32 %v348, 16
        %v498 = vrot.slane %v496, 7
        %v499 = vshll.u32 %v348, 16
        %v501 = vor.u32 %v498, %v499
        %v502 = vsel %vm367, %v494, %v501
        %v503 = vrot.slane %v498, 4
        %v505 = vshrl.u32 %v349, 16
        %v507 = vrot.slane %v505, 7
        %v508 = vshll.u32 %v349, 16
        %v510 = vor.u32 %v507, %v508
        %v511 = vrot.slane %v507, 4
        %v513 = vshrl.u32 %v350, 16
        %v515 = vrot.slane %v513, 7
        %v516 = vshll.u32 %v350, 16
        %v518 = vor.u32 %v515, %v516
        %v519 = vsel %vm367, %v511, %v518
        %v520 = vrot.slane %v515, 4
        %v522 = vshrl.u32 %v351, 16
        %v524 = vrot.slane %v522, 7
        %v525 = vshll.u32 %v351, 16
        %v527 = vor.u32 %v524, %v525
        %v528 = vrot.slane %v524, 4
        %v530 = vshrl.u32 %v352, 16
        %v532 = vrot.slane %v530, 7
        %v533 = vshll.u32 %v352, 16
        %v535 = vor.u32 %v532, %v533
        %v536 = vsel %vm367, %v528, %v535
        %v537 = vrot.slane %v532, 4
        %v539 = vshrl.u32 %v353, 16
        %v541 = vrot.slane %v539, 7
        %v542 = vshll.u32 %v353, 16
        %v544 = vor.u32 %v541, %v542
        %v545 = vrot.slane %v541, 4
        %v547 = vshrl.u32 %v354, 16
        %v549 = vrot.slane %v547, 7
        %v550 = vshll.u32 %v354, 16
        %v552 = vor.u32 %v549, %v550
        %v553 = vsel %vm367, %v545, %v552
        %v554 = vrot.slane %v549, 4
        %v556 = vshrl.u32 %v355, 16
        %v558 = vrot.slane %v556, 7
        %v559 = vshll.u32 %v355, 16
        %v561 = vor.u32 %v558, %v559
        %v562 = vrot.slane %v558, 4
        %v564 = vshrl.u32 %v356, 16
        %v566 = vrot.slane %v564, 7
        %v567 = vshll.u32 %v356, 16
        %v569 = vor.u32 %v566, %v567
        %v570 = vsel %vm367, %v562, %v569
        %v571 = vrot.slane %v566, 4
        %v573 = vshrl.u32 %v357, 16
        %v575 = vrot.slane %v573, 7
        %v576 = vshll.u32 %v357, 16
        %v578 = vor.u32 %v575, %v576
        %v579 = vrot.slane %v575, 4
        %v581 = vshrl.u32 %v358, 16
        %v583 = vrot.slane %v581, 7
        %v584 = vshll.u32 %v358, 16
        %v586 = vor.u32 %v583, %v584
        %v587 = vsel %vm367, %v579, %v586
        %v588 = vrot.slane %v583, 4
        %v590 = vshrl.u32 %v359, 16
        %v592 = vrot.slane %v590, 7
        %v593 = vshll.u32 %v359, 16
        %v595 = vor.u32 %v592, %v593
        %v596 = vrot.slane %v592, 4
        %v598 = vshrl.u32 %v360, 16
        %v600 = vrot.slane %v598, 7
        %v601 = vshll.u32 %v360, 16
        %v603 = vor.u32 %v600, %v601
        %v604 = vsel %vm367, %v596, %v603
        %v605 = vrot.slane %v600, 4
        %v607 = vshrl.u32 %v361, 16
        %v609 = vrot.slane %v607, 7
        %v610 = vshll.u32 %v361, 16
        %v612 = vor.u32 %v609, %v610
        %v613 = vrot.slane %v609, 4
        %v615 = vshrl.u32 %v362, 16
        %v617 = vrot.slane %v615, 7
        %v618 = vshll.u32 %v362, 16
        %v620 = vor.u32 %v617, %v618
        %v621 = vsel %vm367, %v613, %v620
        %v622 = vrot.slane %v617, 4
        %v624 = vshrl.u32 %v363, 16
        %v626 = vrot.slane %v624, 7
        %v627 = vshll.u32 %v363, 16
        %v629 = vor.u32 %v626, %v627
        %v630 = vrot.slane %v626, 4
        %v632 = vshrl.u32 %v364, 16
        %v634 = vrot.slane %v632, 7
        %v635 = vshll.u32 %v364, 16
        %v637 = vor.u32 %v634, %v635
        %v638 = vsel %vm367, %v630, %v637
        %v639 = vrot.slane %v634, 4
        %s688 = scalar_lea.vmem [#allocation2], 12
        %vm689 = vcmask 27648
        %vm690 = vsmask.f32 7938
        %vm691 = vmand %vm689, %vm690
        %v692 = vld [vmem:[%s688] sm:$0xf]
        %v693 = vsel %vm691, %v374, %v692
        %694 = vst [vmem:[%s688] sm:$0xf] %v693
        %695 = vst.msk [vmem:[%s688 + $0x4] sm:$0xf] %vm277, %v383
        %vm696 = vcmask 24576
        %vm697 = vmand %vm696, %vm365
        %v698 = vld [vmem:[%s688 + $0x8] sm:$0x1]
        %v699 = vsel %vm697, %v384, %v698
        %700 = vst [vmem:[%s688 + $0x8] sm:$0x1] %v699
        %v701 = vld [vmem:[%s688 + $0xc] sm:$0xf]
        %v702 = vsel %vm691, %v391, %v701
        %703 = vst [vmem:[%s688 + $0xc] sm:$0xf] %v702
        %704 = vst.msk [vmem:[%s688 + $0x10] sm:$0xf] %vm277, %v400
        %v705 = vld [vmem:[%s688 + $0x14] sm:$0x1]
        %v706 = vsel %vm697, %v401, %v705
        %707 = vst [vmem:[%s688 + $0x14] sm:$0x1] %v706
        %v708 = vld [vmem:[%s688 + $0x18] sm:$0xf]
        %v709 = vsel %vm691, %v408, %v708
        %710 = vst [vmem:[%s688 + $0x18] sm:$0xf] %v709
        %711 = vst.msk [vmem:[%s688 + $0x1c] sm:$0xf] %vm277, %v417
        %v712 = vld [vmem:[%s688 + $0x20] sm:$0x1]
        %v713 = vsel %vm697, %v418, %v712
        %714 = vst [vmem:[%s688 + $0x20] sm:$0x1] %v713
        %v715 = vld [vmem:[%s688 + $0x24] sm:$0xf]
        %v716 = vsel %vm691, %v425, %v715
        %717 = vst [vmem:[%s688 + $0x24] sm:$0xf] %v716
        %718 = vst.msk [vmem:[%s688 + $0x28] sm:$0xf] %vm277, %v434
        %v719 = vld [vmem:[%s688 + $0x2c] sm:$0x1]
        %v720 = vsel %vm697, %v435, %v719
        %721 = vst [vmem:[%s688 + $0x2c] sm:$0x1] %v720
        %v722 = vld [vmem:[%s688 + $0x30] sm:$0xf]
        %v723 = vsel %vm691, %v442, %v722
        %724 = vst [vmem:[%s688 + $0x30] sm:$0xf] %v723
        %725 = vst.msk [vmem:[%s688 + $0x34] sm:$0xf] %vm277, %v451
        %v726 = vld [vmem:[%s688 + $0x38] sm:$0x1]
        %v727 = vsel %vm697, %v452, %v726
        %728 = vst [vmem:[%s688 + $0x38] sm:$0x1] %v727
        %v729 = vld [vmem:[%s688 + $0x3c] sm:$0xf]
        %v730 = vsel %vm691, %v459, %v729
        %731 = vst [vmem:[%s688 + $0x3c] sm:$0xf] %v730
        %732 = vst.msk [vmem:[%s688 + $0x40] sm:$0xf] %vm277, %v468
        %v733 = vld [vmem:[%s688 + $0x44] sm:$0x1]
        %v734 = vsel %vm697, %v469, %v733
        %735 = vst [vmem:[%s688 + $0x44] sm:$0x1] %v734
        %v736 = vld [vmem:[%s688 + $0x48] sm:$0xf]
        %v737 = vsel %vm691, %v476, %v736
        %738 = vst [vmem:[%s688 + $0x48] sm:$0xf] %v737
        %739 = vst.msk [vmem:[%s688 + $0x4c] sm:$0xf] %vm277, %v485
        %v740 = vld [vmem:[%s688 + $0x50] sm:$0x1]
        %v741 = vsel %vm697, %v486, %v740
        %742 = vst [vmem:[%s688 + $0x50] sm:$0x1] %v741
        %v743 = vld [vmem:[%s688 + $0x54] sm:$0xf]
        %v744 = vsel %vm691, %v493, %v743
        %745 = vst [vmem:[%s688 + $0x54] sm:$0xf] %v744
        %746 = vst.msk [vmem:[%s688 + $0x58] sm:$0xf] %vm277, %v502
        %v747 = vld [vmem:[%s688 + $0x5c] sm:$0x1]
        %v748 = vsel %vm697, %v503, %v747
        %749 = vst [vmem:[%s688 + $0x5c] sm:$0x1] %v748
        %v750 = vld [vmem:[%s688 + $0x60] sm:$0xf]
        %v751 = vsel %vm691, %v510, %v750
        %752 = vst [vmem:[%s688 + $0x60] sm:$0xf] %v751
        %753 = vst.msk [vmem:[%s688 + $0x64] sm:$0xf] %vm277, %v519
        %v754 = vld [vmem:[%s688 + $0x68] sm:$0x1]
        %v755 = vsel %vm697, %v520, %v754
        %756 = vst [vmem:[%s688 + $0x68] sm:$0x1] %v755
        %v757 = vld [vmem:[%s688 + $0x6c] sm:$0xf]
        %v758 = vsel %vm691, %v527, %v757
        %759 = vst [vmem:[%s688 + $0x6c] sm:$0xf] %v758
        %760 = vst.msk [vmem:[%s688 + $0x70] sm:$0xf] %vm277, %v536
        %v761 = vld [vmem:[%s688 + $0x74] sm:$0x1]
        %v762 = vsel %vm697, %v537, %v761
        %763 = vst [vmem:[%s688 + $0x74] sm:$0x1] %v762
        %v764 = vld [vmem:[%s688 + $0x78] sm:$0xf]
        %v765 = vsel %vm691, %v544, %v764
        %766 = vst [vmem:[%s688 + $0x78] sm:$0xf] %v765
        %767 = vst.msk [vmem:[%s688 + $0x7c] sm:$0xf] %vm277, %v553
        %v768 = vld [vmem:[%s688 + $0x80] sm:$0x1]
        %v769 = vsel %vm697, %v554, %v768
        %770 = vst [vmem:[%s688 + $0x80] sm:$0x1] %v769
        %v771 = vld [vmem:[%s688 + $0x84] sm:$0xf]
        %v772 = vsel %vm691, %v561, %v771
        %773 = vst [vmem:[%s688 + $0x84] sm:$0xf] %v772
        %774 = vst.msk [vmem:[%s688 + $0x88] sm:$0xf] %vm277, %v570
        %v775 = vld [vmem:[%s688 + $0x8c] sm:$0x1]
        %v776 = vsel %vm697, %v571, %v775
        %777 = vst [vmem:[%s688 + $0x8c] sm:$0x1] %v776
        %v778 = vld [vmem:[%s688 + $0x90] sm:$0xf]
        %v779 = vsel %vm691, %v578, %v778
        %780 = vst [vmem:[%s688 + $0x90] sm:$0xf] %v779
        %781 = vst.msk [vmem:[%s688 + $0x94] sm:$0xf] %vm277, %v587
        %v782 = vld [vmem:[%s688 + $0x98] sm:$0x1]
        %v783 = vsel %vm697, %v588, %v782
        %784 = vst [vmem:[%s688 + $0x98] sm:$0x1] %v783
        %v785 = vld [vmem:[%s688 + $0x9c] sm:$0xf]
        %v786 = vsel %vm691, %v595, %v785
        %787 = vst [vmem:[%s688 + $0x9c] sm:$0xf] %v786
        %788 = vst.msk [vmem:[%s688 + $0xa0] sm:$0xf] %vm277, %v604
        %v789 = vld [vmem:[%s688 + $0xa4] sm:$0x1]
        %v790 = vsel %vm697, %v605, %v789
        %791 = vst [vmem:[%s688 + $0xa4] sm:$0x1] %v790
        %v792 = vld [vmem:[%s688 + $0xa8] sm:$0xf]
        %v793 = vsel %vm691, %v612, %v792
        %794 = vst [vmem:[%s688 + $0xa8] sm:$0xf] %v793
        %795 = vst.msk [vmem:[%s688 + $0xac] sm:$0xf] %vm277, %v621
        %v796 = vld [vmem:[%s688 + $0xb0] sm:$0x1]
        %v797 = vsel %vm697, %v622, %v796
        %798 = vst [vmem:[%s688 + $0xb0] sm:$0x1] %v797
        %v799 = vld [vmem:[%s688 + $0xb4] sm:$0xf]
        %v800 = vsel %vm691, %v629, %v799
        %801 = vst [vmem:[%s688 + $0xb4] sm:$0xf] %v800
        %802 = vst.msk [vmem:[%s688 + $0xb8] sm:$0xf] %vm277, %v638
        %v803 = vld [vmem:[%s688 + $0xbc] sm:$0x1]
        %v804 = vsel %vm697, %v639, %v803
        %805 = vst [vmem:[%s688 + $0xbc] sm:$0x1] %v804
        %v806 = vld [vmem:[#allocation2] sm:$0xf]
        %v807 = vld [vmem:[#allocation2 + $0x4] sm:$0xf]
        %v808 = vld [vmem:[#allocation2 + $0xc] sm:$0xf]
        %v809 = vld [vmem:[#allocation2 + $0x10] sm:$0xf]
        %v810 = vld [vmem:[#allocation2 + $0x18] sm:$0xf]
        %v811 = vld [vmem:[#allocation2 + $0x1c] sm:$0xf]
        %v812 = vld [vmem:[#allocation2 + $0x24] sm:$0xf]
        %v813 = vld [vmem:[#allocation2 + $0x28] sm:$0xf]
        %v814 = vld [vmem:[#allocation2 + $0x30] sm:$0xf]
        %v815 = vld [vmem:[#allocation2 + $0x34] sm:$0xf]
        %v816 = vld [vmem:[#allocation2 + $0x3c] sm:$0xf]
        %v817 = vld [vmem:[#allocation2 + $0x40] sm:$0xf]
        %v818 = vld [vmem:[#allocation2 + $0x48] sm:$0xf]
        %v819 = vld [vmem:[#allocation2 + $0x4c] sm:$0xf]
        %v820 = vld [vmem:[#allocation2 + $0x54] sm:$0xf]
        %v821 = vld [vmem:[#allocation2 + $0x58] sm:$0xf]
        %v822 = vld [vmem:[#allocation2 + $0x60] sm:$0xf]
        %v823 = vld [vmem:[#allocation2 + $0x64] sm:$0xf]
        %v824 = vld [vmem:[#allocation2 + $0x6c] sm:$0xf]
        %v825 = vld [vmem:[#allocation2 + $0x70] sm:$0xf]
        %v826 = vld [vmem:[#allocation2 + $0x78] sm:$0xf]
        %v827 = vld [vmem:[#allocation2 + $0x7c] sm:$0xf]
        %v828 = vld [vmem:[#allocation2 + $0x84] sm:$0xf]
        %v829 = vld [vmem:[#allocation2 + $0x88] sm:$0xf]
        %v830 = vld [vmem:[#allocation2 + $0x90] sm:$0xf]
        %v831 = vld [vmem:[#allocation2 + $0x94] sm:$0xf]
        %v832 = vld [vmem:[#allocation2 + $0x9c] sm:$0xf]
        %v833 = vld [vmem:[#allocation2 + $0xa0] sm:$0xf]
        %v834 = vld [vmem:[#allocation2 + $0xa8] sm:$0xf]
        %v835 = vld [vmem:[#allocation2 + $0xac] sm:$0xf]
        %v836 = vld [vmem:[#allocation2 + $0xb4] sm:$0xf]
        %v837 = vld [vmem:[#allocation2 + $0xb8] sm:$0xf]
        %v838 = vld [vmem:[#allocation2 + $0x8] sm:$0x1]
        %v839 = vld [vmem:[#allocation2 + $0x14] sm:$0x1]
        %v840 = vld [vmem:[#allocation2 + $0x20] sm:$0x1]
        %v841 = vld [vmem:[#allocation2 + $0x2c] sm:$0x1]
        %v842 = vld [vmem:[#allocation2 + $0x38] sm:$0x1]
        %v843 = vld [vmem:[#allocation2 + $0x44] sm:$0x1]
        %v844 = vld [vmem:[#allocation2 + $0x50] sm:$0x1]
        %v845 = vld [vmem:[#allocation2 + $0x5c] sm:$0x1]
        %v846 = vld [vmem:[#allocation2 + $0x68] sm:$0x1]
        %v847 = vld [vmem:[#allocation2 + $0x74] sm:$0x1]
        %v848 = vld [vmem:[#allocation2 + $0x80] sm:$0x1]
        %v849 = vld [vmem:[#allocation2 + $0x8c] sm:$0x1]
        %v850 = vld [vmem:[#allocation2 + $0x98] sm:$0x1]
        %v851 = vld [vmem:[#allocation2 + $0xa4] sm:$0x1]
        %v852 = vld [vmem:[#allocation2 + $0xb0] sm:$0x1]
        %v853 = vld [vmem:[#allocation2 + $0xbc] sm:$0x1]
        %vm854 = vsmask.f32 3328
        %vm855 = vsmask.f32 7440
        %vm856 = vmor %vm854, %vm855
        %v858 = vshrl.u32 %v806, 16
        %v860 = vrot.slane %v858, 4
        %v861 = vshll.u32 %v806, 16
        %v863 = vrot.slane %v861, 5
        %v864 = vor.u32 %v860, %v863
        %v865 = vrot.slane %v864, 4
        %v867 = vshll.u32 %v807, 16
        %v869 = vrot.slane %v867, 5
        %v870 = vsel %vm856, %v865, %v869
        %v871 = vshrl.u32 %v807, 16
        %v873 = vrot.slane %v871, 4
        %v874 = vor.u32 %v873, %v869
        %v875 = vrot.slane %v874, 4
        %v877 = vshll.u32 %v838, 16
        %v879 = vrot.slane %v877, 5
        %v880 = vsel %vm856, %v875, %v879
        %v882 = vshrl.u32 %v808, 16
        %v884 = vrot.slane %v882, 4
        %v885 = vshll.u32 %v808, 16
        %v887 = vrot.slane %v885, 5
        %v888 = vor.u32 %v884, %v887
        %v889 = vrot.slane %v888, 4
        %v891 = vshll.u32 %v809, 16
        %v893 = vrot.slane %v891, 5
        %v894 = vsel %vm856, %v889, %v893
        %v895 = vshrl.u32 %v809, 16
        %v897 = vrot.slane %v895, 4
        %v898 = vor.u32 %v897, %v893
        %v899 = vrot.slane %v898, 4
        %v901 = vshll.u32 %v839, 16
        %v903 = vrot.slane %v901, 5
        %v904 = vsel %vm856, %v899, %v903
        %v906 = vshrl.u32 %v810, 16
        %v908 = vrot.slane %v906, 4
        %v909 = vshll.u32 %v810, 16
        %v911 = vrot.slane %v909, 5
        %v912 = vor.u32 %v908, %v911
        %v913 = vrot.slane %v912, 4
        %v915 = vshll.u32 %v811, 16
        %v917 = vrot.slane %v915, 5
        %v918 = vsel %vm856, %v913, %v917
        %v919 = vshrl.u32 %v811, 16
        %v921 = vrot.slane %v919, 4
        %v922 = vor.u32 %v921, %v917
        %v923 = vrot.slane %v922, 4
        %v925 = vshll.u32 %v840, 16
        %v927 = vrot.slane %v925, 5
        %v928 = vsel %vm856, %v923, %v927
        %v930 = vshrl.u32 %v812, 16
        %v932 = vrot.slane %v930, 4
        %v933 = vshll.u32 %v812, 16
        %v935 = vrot.slane %v933, 5
        %v936 = vor.u32 %v932, %v935
        %v937 = vrot.slane %v936, 4
        %v939 = vshll.u32 %v813, 16
        %v941 = vrot.slane %v939, 5
        %v942 = vsel %vm856, %v937, %v941
        %v943 = vshrl.u32 %v813, 16
        %v945 = vrot.slane %v943, 4
        %v946 = vor.u32 %v945, %v941
        %v947 = vrot.slane %v946, 4
        %v949 = vshll.u32 %v841, 16
        %v951 = vrot.slane %v949, 5
        %v952 = vsel %vm856, %v947, %v951
        %v954 = vshrl.u32 %v814, 16
        %v956 = vrot.slane %v954, 4
        %v957 = vshll.u32 %v814, 16
        %v959 = vrot.slane %v957, 5
        %v960 = vor.u32 %v956, %v959
        %v961 = vrot.slane %v960, 4
        %v963 = vshll.u32 %v815, 16
        %v965 = vrot.slane %v963, 5
        %v966 = vsel %vm856, %v961, %v965
        %v967 = vshrl.u32 %v815, 16
        %v969 = vrot.slane %v967, 4
        %v970 = vor.u32 %v969, %v965
        %v971 = vrot.slane %v970, 4
        %v973 = vshll.u32 %v842, 16
        %v975 = vrot.slane %v973, 5
        %v976 = vsel %vm856, %v971, %v975
        %v978 = vshrl.u32 %v816, 16
        %v980 = vrot.slane %v978, 4
        %v981 = vshll.u32 %v816, 16
        %v983 = vrot.slane %v981, 5
        %v984 = vor.u32 %v980, %v983
        %v985 = vrot.slane %v984, 4
        %v987 = vshll.u32 %v817, 16
        %v989 = vrot.slane %v987, 5
        %v990 = vsel %vm856, %v985, %v989
        %v991 = vshrl.u32 %v817, 16
        %v993 = vrot.slane %v991, 4
        %v994 = vor.u32 %v993, %v989
        %v995 = vrot.slane %v994, 4
        %v997 = vshll.u32 %v843, 16
        %v999 = vrot.slane %v997, 5
        %v1000 = vsel %vm856, %v995, %v999
        %v1002 = vshrl.u32 %v818, 16
        %v1004 = vrot.slane %v1002, 4
        %v1005 = vshll.u32 %v818, 16
        %v1007 = vrot.slane %v1005, 5
        %v1008 = vor.u32 %v1004, %v1007
        %v1009 = vrot.slane %v1008, 4
        %v1011 = vshll.u32 %v819, 16
        %v1013 = vrot.slane %v1011, 5
        %v1014 = vsel %vm856, %v1009, %v1013
        %v1015 = vshrl.u32 %v819, 16
        %v1017 = vrot.slane %v1015, 4
        %v1018 = vor.u32 %v1017, %v1013
        %v1019 = vrot.slane %v1018, 4
        %v1021 = vshll.u32 %v844, 16
        %v1023 = vrot.slane %v1021, 5
        %v1024 = vsel %vm856, %v1019, %v1023
        %v1026 = vshrl.u32 %v820, 16
        %v1028 = vrot.slane %v1026, 4
        %v1029 = vshll.u32 %v820, 16
        %v1031 = vrot.slane %v1029, 5
        %v1032 = vor.u32 %v1028, %v1031
        %v1033 = vrot.slane %v1032, 4
        %v1035 = vshll.u32 %v821, 16
        %v1037 = vrot.slane %v1035, 5
        %v1038 = vsel %vm856, %v1033, %v1037
        %v1039 = vshrl.u32 %v821, 16
        %v1041 = vrot.slane %v1039, 4
        %v1042 = vor.u32 %v1041, %v1037
        %v1043 = vrot.slane %v1042, 4
        %v1045 = vshll.u32 %v845, 16
        %v1047 = vrot.slane %v1045, 5
        %v1048 = vsel %vm856, %v1043, %v1047
        %v1050 = vshrl.u32 %v822, 16
        %v1052 = vrot.slane %v1050, 4
        %v1053 = vshll.u32 %v822, 16
        %v1055 = vrot.slane %v1053, 5
        %v1056 = vor.u32 %v1052, %v1055
        %v1057 = vrot.slane %v1056, 4
        %v1059 = vshll.u32 %v823, 16
        %v1061 = vrot.slane %v1059, 5
        %v1062 = vsel %vm856, %v1057, %v1061
        %v1063 = vshrl.u32 %v823, 16
        %v1065 = vrot.slane %v1063, 4
        %v1066 = vor.u32 %v1065, %v1061
        %v1067 = vrot.slane %v1066, 4
        %v1069 = vshll.u32 %v846, 16
        %v1071 = vrot.slane %v1069, 5
        %v1072 = vsel %vm856, %v1067, %v1071
        %v1074 = vshrl.u32 %v824, 16
        %v1076 = vrot.slane %v1074, 4
        %v1077 = vshll.u32 %v824, 16
        %v1079 = vrot.slane %v1077, 5
        %v1080 = vor.u32 %v1076, %v1079
        %v1081 = vrot.slane %v1080, 4
        %v1083 = vshll.u32 %v825, 16
        %v1085 = vrot.slane %v1083, 5
        %v1086 = vsel %vm856, %v1081, %v1085
        %v1087 = vshrl.u32 %v825, 16
        %v1089 = vrot.slane %v1087, 4
        %v1090 = vor.u32 %v1089, %v1085
        %v1091 = vrot.slane %v1090, 4
        %v1093 = vshll.u32 %v847, 16
        %v1095 = vrot.slane %v1093, 5
        %v1096 = vsel %vm856, %v1091, %v1095
        %v1098 = vshrl.u32 %v826, 16
        %v1100 = vrot.slane %v1098, 4
        %v1101 = vshll.u32 %v826, 16
        %v1103 = vrot.slane %v1101, 5
        %v1104 = vor.u32 %v1100, %v1103
        %v1105 = vrot.slane %v1104, 4
        %v1107 = vshll.u32 %v827, 16
        %v1109 = vrot.slane %v1107, 5
        %v1110 = vsel %vm856, %v1105, %v1109
        %v1111 = vshrl.u32 %v827, 16
        %v1113 = vrot.slane %v1111, 4
        %v1114 = vor.u32 %v1113, %v1109
        %v1115 = vrot.slane %v1114, 4
        %v1117 = vshll.u32 %v848, 16
        %v1119 = vrot.slane %v1117, 5
        %v1120 = vsel %vm856, %v1115, %v1119
        %v1122 = vshrl.u32 %v828, 16
        %v1124 = vrot.slane %v1122, 4
        %v1125 = vshll.u32 %v828, 16
        %v1127 = vrot.slane %v1125, 5
        %v1128 = vor.u32 %v1124, %v1127
        %v1129 = vrot.slane %v1128, 4
        %v1131 = vshll.u32 %v829, 16
        %v1133 = vrot.slane %v1131, 5
        %v1134 = vsel %vm856, %v1129, %v1133
        %v1135 = vshrl.u32 %v829, 16
        %v1137 = vrot.slane %v1135, 4
        %v1138 = vor.u32 %v1137, %v1133
        %v1139 = vrot.slane %v1138, 4
        %v1141 = vshll.u32 %v849, 16
        %v1143 = vrot.slane %v1141, 5
        %v1144 = vsel %vm856, %v1139, %v1143
        %v1146 = vshrl.u32 %v830, 16
        %v1148 = vrot.slane %v1146, 4
        %v1149 = vshll.u32 %v830, 16
        %v1151 = vrot.slane %v1149, 5
        %v1152 = vor.u32 %v1148, %v1151
        %v1153 = vrot.slane %v1152, 4
        %v1155 = vshll.u32 %v831, 16
        %v1157 = vrot.slane %v1155, 5
        %v1158 = vsel %vm856, %v1153, %v1157
        %v1159 = vshrl.u32 %v831, 16
        %v1161 = vrot.slane %v1159, 4
        %v1162 = vor.u32 %v1161, %v1157
        %v1163 = vrot.slane %v1162, 4
        %v1165 = vshll.u32 %v850, 16
        %v1167 = vrot.slane %v1165, 5
        %v1168 = vsel %vm856, %v1163, %v1167
        %v1170 = vshrl.u32 %v832, 16
        %v1172 = vrot.slane %v1170, 4
        %v1173 = vshll.u32 %v832, 16
        %v1175 = vrot.slane %v1173, 5
        %v1176 = vor.u32 %v1172, %v1175
        %v1177 = vrot.slane %v1176, 4
        %v1179 = vshll.u32 %v833, 16
        %v1181 = vrot.slane %v1179, 5
        %v1182 = vsel %vm856, %v1177, %v1181
        %v1183 = vshrl.u32 %v833, 16
        %v1185 = vrot.slane %v1183, 4
        %v1186 = vor.u32 %v1185, %v1181
        %v1187 = vrot.slane %v1186, 4
        %v1189 = vshll.u32 %v851, 16
        %v1191 = vrot.slane %v1189, 5
        %v1192 = vsel %vm856, %v1187, %v1191
        %v1194 = vshrl.u32 %v834, 16
        %v1196 = vrot.slane %v1194, 4
        %v1197 = vshll.u32 %v834, 16
        %v1199 = vrot.slane %v1197, 5
        %v1200 = vor.u32 %v1196, %v1199
        %v1201 = vrot.slane %v1200, 4
        %v1203 = vshll.u32 %v835, 16
        %v1205 = vrot.slane %v1203, 5
        %v1206 = vsel %vm856, %v1201, %v1205
        %v1207 = vshrl.u32 %v835, 16
        %v1209 = vrot.slane %v1207, 4
        %v1210 = vor.u32 %v1209, %v1205
        %v1211 = vrot.slane %v1210, 4
        %v1213 = vshll.u32 %v852, 16
        %v1215 = vrot.slane %v1213, 5
        %v1216 = vsel %vm856, %v1211, %v1215
        %v1218 = vshrl.u32 %v836, 16
        %v1220 = vrot.slane %v1218, 4
        %v1221 = vshll.u32 %v836, 16
        %v1223 = vrot.slane %v1221, 5
        %v1224 = vor.u32 %v1220, %v1223
        %v1225 = vrot.slane %v1224, 4
        %v1227 = vshll.u32 %v837, 16
        %v1229 = vrot.slane %v1227, 5
        %v1230 = vsel %vm856, %v1225, %v1229
        %v1231 = vshrl.u32 %v837, 16
        %v1233 = vrot.slane %v1231, 4
        %v1234 = vor.u32 %v1233, %v1229
        %v1235 = vrot.slane %v1234, 4
        %v1237 = vshll.u32 %v853, 16
        %v1239 = vrot.slane %v1237, 5
        %v1240 = vsel %vm856, %v1235, %v1239
        %v1241 = vld [vmem:[#allocation2] sm:$0xe]
        %v1242 = vld [vmem:[#allocation2 + $0xc] sm:$0xe]
        %v1243 = vld [vmem:[#allocation2 + $0x18] sm:$0xe]
        %v1244 = vld [vmem:[#allocation2 + $0x24] sm:$0xe]
        %v1245 = vld [vmem:[#allocation2 + $0x30] sm:$0xe]
        %v1246 = vld [vmem:[#allocation2 + $0x3c] sm:$0xe]
        %v1247 = vld [vmem:[#allocation2 + $0x48] sm:$0xe]
        %v1248 = vld [vmem:[#allocation2 + $0x54] sm:$0xe]
        %v1249 = vld [vmem:[#allocation2 + $0x60] sm:$0xe]
        %v1250 = vld [vmem:[#allocation2 + $0x6c] sm:$0xe]
        %v1251 = vld [vmem:[#allocation2 + $0x78] sm:$0xe]
        %v1252 = vld [vmem:[#allocation2 + $0x84] sm:$0xe]
        %v1253 = vld [vmem:[#allocation2 + $0x90] sm:$0xe]
        %v1254 = vld [vmem:[#allocation2 + $0x9c] sm:$0xe]
        %v1255 = vld [vmem:[#allocation2 + $0xa8] sm:$0xe]
        %v1256 = vld [vmem:[#allocation2 + $0xb4] sm:$0xe]
        %vm1305 = vcmask 1042432
        %vm1306 = vcmask 1046532
        %vm1307 = vmor %vm1305, %vm1306
        %v1308 = vrot.slane %v1241, 5
        %v1309 = vrot.slane %v1308, 4
        %v1310 = vrot.slane %v807, 5
        %v1311 = vsel %vm1307, %v1309, %v1310
        %v1312 = vrot.slane %v1310, 4
        %v1313 = vrot.slane %v838, 5
        %v1314 = vsel %vm1307, %v1312, %v1313
        %v1315 = vrot.slane %v1242, 5
        %v1316 = vrot.slane %v1315, 4
        %v1317 = vrot.slane %v809, 5
        %v1318 = vsel %vm1307, %v1316, %v1317
        %v1319 = vrot.slane %v1317, 4
        %v1320 = vrot.slane %v839, 5
        %v1321 = vsel %vm1307, %v1319, %v1320
        %v1322 = vrot.slane %v1243, 5
        %v1323 = vrot.slane %v1322, 4
        %v1324 = vrot.slane %v811, 5
        %v1325 = vsel %vm1307, %v1323, %v1324
        %v1326 = vrot.slane %v1324, 4
        %v1327 = vrot.slane %v840, 5
        %v1328 = vsel %vm1307, %v1326, %v1327
        %v1329 = vrot.slane %v1244, 5
        %v1330 = vrot.slane %v1329, 4
        %v1331 = vrot.slane %v813, 5
        %v1332 = vsel %vm1307, %v1330, %v1331
        %v1333 = vrot.slane %v1331, 4
        %v1334 = vrot.slane %v841, 5
        %v1335 = vsel %vm1307, %v1333, %v1334
        %v1336 = vrot.slane %v1245, 5
        %v1337 = vrot.slane %v1336, 4
        %v1338 = vrot.slane %v815, 5
        %v1339 = vsel %vm1307, %v1337, %v1338
        %v1340 = vrot.slane %v1338, 4
        %v1341 = vrot.slane %v842, 5
        %v1342 = vsel %vm1307, %v1340, %v1341
        %v1343 = vrot.slane %v1246, 5
        %v1344 = vrot.slane %v1343, 4
        %v1345 = vrot.slane %v817, 5
        %v1346 = vsel %vm1307, %v1344, %v1345
        %v1347 = vrot.slane %v1345, 4
        %v1348 = vrot.slane %v843, 5
        %v1349 = vsel %vm1307, %v1347, %v1348
        %v1350 = vrot.slane %v1247, 5
        %v1351 = vrot.slane %v1350, 4
        %v1352 = vrot.slane %v819, 5
        %v1353 = vsel %vm1307, %v1351, %v1352
        %v1354 = vrot.slane %v1352, 4
        %v1355 = vrot.slane %v844, 5
        %v1356 = vsel %vm1307, %v1354, %v1355
        %v1357 = vrot.slane %v1248, 5
        %v1358 = vrot.slane %v1357, 4
        %v1359 = vrot.slane %v821, 5
        %v1360 = vsel %vm1307, %v1358, %v1359
        %v1361 = vrot.slane %v1359, 4
        %v1362 = vrot.slane %v845, 5
        %v1363 = vsel %vm1307, %v1361, %v1362
        %v1364 = vrot.slane %v1249, 5
        %v1365 = vrot.slane %v1364, 4
        %v1366 = vrot.slane %v823, 5
        %v1367 = vsel %vm1307, %v1365, %v1366
        %v1368 = vrot.slane %v1366, 4
        %v1369 = vrot.slane %v846, 5
        %v1370 = vsel %vm1307, %v1368, %v1369
        %v1371 = vrot.slane %v1250, 5
        %v1372 = vrot.slane %v1371, 4
        %v1373 = vrot.slane %v825, 5
        %v1374 = vsel %vm1307, %v1372, %v1373
        %v1375 = vrot.slane %v1373, 4
        %v1376 = vrot.slane %v847, 5
        %v1377 = vsel %vm1307, %v1375, %v1376
        %v1378 = vrot.slane %v1251, 5
        %v1379 = vrot.slane %v1378, 4
        %v1380 = vrot.slane %v827, 5
        %v1381 = vsel %vm1307, %v1379, %v1380
        %v1382 = vrot.slane %v1380, 4
        %v1383 = vrot.slane %v848, 5
        %v1384 = vsel %vm1307, %v1382, %v1383
        %v1385 = vrot.slane %v1252, 5
        %v1386 = vrot.slane %v1385, 4
        %v1387 = vrot.slane %v829, 5
        %v1388 = vsel %vm1307, %v1386, %v1387
        %v1389 = vrot.slane %v1387, 4
        %v1390 = vrot.slane %v849, 5
        %v1391 = vsel %vm1307, %v1389, %v1390
        %v1392 = vrot.slane %v1253, 5
        %v1393 = vrot.slane %v1392, 4
        %v1394 = vrot.slane %v831, 5
        %v1395 = vsel %vm1307, %v1393, %v1394
        %v1396 = vrot.slane %v1394, 4
        %v1397 = vrot.slane %v850, 5
        %v1398 = vsel %vm1307, %v1396, %v1397
        %v1399 = vrot.slane %v1254, 5
        %v1400 = vrot.slane %v1399, 4
        %v1401 = vrot.slane %v833, 5
        %v1402 = vsel %vm1307, %v1400, %v1401
        %v1403 = vrot.slane %v1401, 4
        %v1404 = vrot.slane %v851, 5
        %v1405 = vsel %vm1307, %v1403, %v1404
        %v1406 = vrot.slane %v1255, 5
        %v1407 = vrot.slane %v1406, 4
        %v1408 = vrot.slane %v835, 5
        %v1409 = vsel %vm1307, %v1407, %v1408
        %v1410 = vrot.slane %v1408, 4
        %v1411 = vrot.slane %v852, 5
        %v1412 = vsel %vm1307, %v1410, %v1411
        %v1413 = vrot.slane %v1256, 5
        %v1414 = vrot.slane %v1413, 4
        %v1415 = vrot.slane %v837, 5
        %v1416 = vsel %vm1307, %v1414, %v1415
        %v1417 = vrot.slane %v1415, 4
        %v1418 = vrot.slane %v853, 5
        %v1419 = vsel %vm1307, %v1417, %v1418
        %v1420 = vld [vmem:[%s688] sm:$0xf]
        %v1421 = vld [vmem:[%s688 + $0x4] sm:$0xf]
        %v1422 = vld [vmem:[%s688 + $0xc] sm:$0xf]
        %v1423 = vld [vmem:[%s688 + $0x10] sm:$0xf]
        %v1424 = vld [vmem:[%s688 + $0x18] sm:$0xf]
        %v1425 = vld [vmem:[%s688 + $0x1c] sm:$0xf]
        %v1426 = vld [vmem:[%s688 + $0x24] sm:$0xf]
        %v1427 = vld [vmem:[%s688 + $0x28] sm:$0xf]
        %v1428 = vld [vmem:[%s688 + $0x30] sm:$0xf]
        %v1429 = vld [vmem:[%s688 + $0x34] sm:$0xf]
        %v1430 = vld [vmem:[%s688 + $0x3c] sm:$0xf]
        %v1431 = vld [vmem:[%s688 + $0x40] sm:$0xf]
        %v1432 = vld [vmem:[%s688 + $0x48] sm:$0xf]
        %v1433 = vld [vmem:[%s688 + $0x4c] sm:$0xf]
        %v1434 = vld [vmem:[%s688 + $0x54] sm:$0xf]
        %v1435 = vld [vmem:[%s688 + $0x58] sm:$0xf]
        %v1436 = vld [vmem:[%s688 + $0x60] sm:$0xf]
        %v1437 = vld [vmem:[%s688 + $0x64] sm:$0xf]
        %v1438 = vld [vmem:[%s688 + $0x6c] sm:$0xf]
        %v1439 = vld [vmem:[%s688 + $0x70] sm:$0xf]
        %v1440 = vld [vmem:[%s688 + $0x78] sm:$0xf]
        %v1441 = vld [vmem:[%s688 + $0x7c] sm:$0xf]
        %v1442 = vld [vmem:[%s688 + $0x84] sm:$0xf]
        %v1443 = vld [vmem:[%s688 + $0x88] sm:$0xf]
        %v1444 = vld [vmem:[%s688 + $0x90] sm:$0xf]
        %v1445 = vld [vmem:[%s688 + $0x94] sm:$0xf]
        %v1446 = vld [vmem:[%s688 + $0x9c] sm:$0xf]
        %v1447 = vld [vmem:[%s688 + $0xa0] sm:$0xf]
        %v1448 = vld [vmem:[%s688 + $0xa8] sm:$0xf]
        %v1449 = vld [vmem:[%s688 + $0xac] sm:$0xf]
        %v1450 = vld [vmem:[%s688 + $0xb4] sm:$0xf]
        %v1451 = vld [vmem:[%s688 + $0xb8] sm:$0xf]
        %v1452 = vld [vmem:[%s688 + $0x8] sm:$0x1]
        %v1453 = vld [vmem:[%s688 + $0x14] sm:$0x1]
        %v1454 = vld [vmem:[%s688 + $0x20] sm:$0x1]
        %v1455 = vld [vmem:[%s688 + $0x2c] sm:$0x1]
        %v1456 = vld [vmem:[%s688 + $0x38] sm:$0x1]
        %v1457 = vld [vmem:[%s688 + $0x44] sm:$0x1]
        %v1458 = vld [vmem:[%s688 + $0x50] sm:$0x1]
        %v1459 = vld [vmem:[%s688 + $0x5c] sm:$0x1]
        %v1460 = vld [vmem:[%s688 + $0x68] sm:$0x1]
        %v1461 = vld [vmem:[%s688 + $0x74] sm:$0x1]
        %v1462 = vld [vmem:[%s688 + $0x80] sm:$0x1]
        %v1463 = vld [vmem:[%s688 + $0x8c] sm:$0x1]
        %v1464 = vld [vmem:[%s688 + $0x98] sm:$0x1]
        %v1465 = vld [vmem:[%s688 + $0xa4] sm:$0x1]
        %v1466 = vld [vmem:[%s688 + $0xb0] sm:$0x1]
        %v1467 = vld [vmem:[%s688 + $0xbc] sm:$0x1]
        %v1469 = vshrl.u32 %v1420, 16
        %v1471 = vrot.slane %v1469, 4
        %v1472 = vshll.u32 %v1420, 16
        %v1474 = vrot.slane %v1472, 5
        %v1475 = vor.u32 %v1471, %v1474
        %v1476 = vrot.slane %v1475, 4
        %v1478 = vshll.u32 %v1421, 16
        %v1480 = vrot.slane %v1478, 5
        %v1481 = vsel %vm856, %v1476, %v1480
        %v1482 = vshrl.u32 %v1421, 16
        %v1484 = vrot.slane %v1482, 4
        %v1485 = vor.u32 %v1484, %v1480
        %v1486 = vrot.slane %v1485, 4
        %v1488 = vshll.u32 %v1452, 16
        %v1490 = vrot.slane %v1488, 5
        %v1491 = vsel %vm856, %v1486, %v1490
        %v1493 = vshrl.u32 %v1422, 16
        %v1495 = vrot.slane %v1493, 4
        %v1496 = vshll.u32 %v1422, 16
        %v1498 = vrot.slane %v1496, 5
        %v1499 = vor.u32 %v1495, %v1498
        %v1500 = vrot.slane %v1499, 4
        %v1502 = vshll.u32 %v1423, 16
        %v1504 = vrot.slane %v1502, 5
        %v1505 = vsel %vm856, %v1500, %v1504
        %v1506 = vshrl.u32 %v1423, 16
        %v1508 = vrot.slane %v1506, 4
        %v1509 = vor.u32 %v1508, %v1504
        %v1510 = vrot.slane %v1509, 4
        %v1512 = vshll.u32 %v1453, 16
        %v1514 = vrot.slane %v1512, 5
        %v1515 = vsel %vm856, %v1510, %v1514
        %v1517 = vshrl.u32 %v1424, 16
        %v1519 = vrot.slane %v1517, 4
        %v1520 = vshll.u32 %v1424, 16
        %v1522 = vrot.slane %v1520, 5
        %v1523 = vor.u32 %v1519, %v1522
        %v1524 = vrot.slane %v1523, 4
        %v1526 = vshll.u32 %v1425, 16
        %v1528 = vrot.slane %v1526, 5
        %v1529 = vsel %vm856, %v1524, %v1528
        %v1530 = vshrl.u32 %v1425, 16
        %v1532 = vrot.slane %v1530, 4
        %v1533 = vor.u32 %v1532, %v1528
        %v1534 = vrot.slane %v1533, 4
        %v1536 = vshll.u32 %v1454, 16
        %v1538 = vrot.slane %v1536, 5
        %v1539 = vsel %vm856, %v1534, %v1538
        %v1541 = vshrl.u32 %v1426, 16
        %v1543 = vrot.slane %v1541, 4
        %v1544 = vshll.u32 %v1426, 16
        %v1546 = vrot.slane %v1544, 5
        %v1547 = vor.u32 %v1543, %v1546
        %v1548 = vrot.slane %v1547, 4
        %v1550 = vshll.u32 %v1427, 16
        %v1552 = vrot.slane %v1550, 5
        %v1553 = vsel %vm856, %v1548, %v1552
        %v1554 = vshrl.u32 %v1427, 16
        %v1556 = vrot.slane %v1554, 4
        %v1557 = vor.u32 %v1556, %v1552
        %v1558 = vrot.slane %v1557, 4
        %v1560 = vshll.u32 %v1455, 16
        %v1562 = vrot.slane %v1560, 5
        %v1563 = vsel %vm856, %v1558, %v1562
        %v1565 = vshrl.u32 %v1428, 16
        %v1567 = vrot.slane %v1565, 4
        %v1568 = vshll.u32 %v1428, 16
        %v1570 = vrot.slane %v1568, 5
        %v1571 = vor.u32 %v1567, %v1570
        %v1572 = vrot.slane %v1571, 4
        %v1574 = vshll.u32 %v1429, 16
        %v1576 = vrot.slane %v1574, 5
        %v1577 = vsel %vm856, %v1572, %v1576
        %v1578 = vshrl.u32 %v1429, 16
        %v1580 = vrot.slane %v1578, 4
        %v1581 = vor.u32 %v1580, %v1576
        %v1582 = vrot.slane %v1581, 4
        %v1584 = vshll.u32 %v1456, 16
        %v1586 = vrot.slane %v1584, 5
        %v1587 = vsel %vm856, %v1582, %v1586
        %v1589 = vshrl.u32 %v1430, 16
        %v1591 = vrot.slane %v1589, 4
        %v1592 = vshll.u32 %v1430, 16
        %v1594 = vrot.slane %v1592, 5
        %v1595 = vor.u32 %v1591, %v1594
        %v1596 = vrot.slane %v1595, 4
        %v1598 = vshll.u32 %v1431, 16
        %v1600 = vrot.slane %v1598, 5
        %v1601 = vsel %vm856, %v1596, %v1600
        %v1602 = vshrl.u32 %v1431, 16
        %v1604 = vrot.slane %v1602, 4
        %v1605 = vor.u32 %v1604, %v1600
        %v1606 = vrot.slane %v1605, 4
        %v1608 = vshll.u32 %v1457, 16
        %v1610 = vrot.slane %v1608, 5
        %v1611 = vsel %vm856, %v1606, %v1610
        %v1613 = vshrl.u32 %v1432, 16
        %v1615 = vrot.slane %v1613, 4
        %v1616 = vshll.u32 %v1432, 16
        %v1618 = vrot.slane %v1616, 5
        %v1619 = vor.u32 %v1615, %v1618
        %v1620 = vrot.slane %v1619, 4
        %v1622 = vshll.u32 %v1433, 16
        %v1624 = vrot.slane %v1622, 5
        %v1625 = vsel %vm856, %v1620, %v1624
        %v1626 = vshrl.u32 %v1433, 16
        %v1628 = vrot.slane %v1626, 4
        %v1629 = vor.u32 %v1628, %v1624
        %v1630 = vrot.slane %v1629, 4
        %v1632 = vshll.u32 %v1458, 16
        %v1634 = vrot.slane %v1632, 5
        %v1635 = vsel %vm856, %v1630, %v1634
        %v1637 = vshrl.u32 %v1434, 16
        %v1639 = vrot.slane %v1637, 4
        %v1640 = vshll.u32 %v1434, 16
        %v1642 = vrot.slane %v1640, 5
        %v1643 = vor.u32 %v1639, %v1642
        %v1644 = vrot.slane %v1643, 4
        %v1646 = vshll.u32 %v1435, 16
        %v1648 = vrot.slane %v1646, 5
        %v1649 = vsel %vm856, %v1644, %v1648
        %v1650 = vshrl.u32 %v1435, 16
        %v1652 = vrot.slane %v1650, 4
        %v1653 = vor.u32 %v1652, %v1648
        %v1654 = vrot.slane %v1653, 4
        %v1656 = vshll.u32 %v1459, 16
        %v1658 = vrot.slane %v1656, 5
        %v1659 = vsel %vm856, %v1654, %v1658
        %v1661 = vshrl.u32 %v1436, 16
        %v1663 = vrot.slane %v1661, 4
        %v1664 = vshll.u32 %v1436, 16
        %v1666 = vrot.slane %v1664, 5
        %v1667 = vor.u32 %v1663, %v1666
        %v1668 = vrot.slane %v1667, 4
        %v1670 = vshll.u32 %v1437, 16
        %v1672 = vrot.slane %v1670, 5
        %v1673 = vsel %vm856, %v1668, %v1672
        %v1674 = vshrl.u32 %v1437, 16
        %v1676 = vrot.slane %v1674, 4
        %v1677 = vor.u32 %v1676, %v1672
        %v1678 = vrot.slane %v1677, 4
        %v1680 = vshll.u32 %v1460, 16
        %v1682 = vrot.slane %v1680, 5
        %v1683 = vsel %vm856, %v1678, %v1682
        %v1685 = vshrl.u32 %v1438, 16
        %v1687 = vrot.slane %v1685, 4
        %v1688 = vshll.u32 %v1438, 16
        %v1690 = vrot.slane %v1688, 5
        %v1691 = vor.u32 %v1687, %v1690
        %v1692 = vrot.slane %v1691, 4
        %v1694 = vshll.u32 %v1439, 16
        %v1696 = vrot.slane %v1694, 5
        %v1697 = vsel %vm856, %v1692, %v1696
        %v1698 = vshrl.u32 %v1439, 16
        %v1700 = vrot.slane %v1698, 4
        %v1701 = vor.u32 %v1700, %v1696
        %v1702 = vrot.slane %v1701, 4
        %v1704 = vshll.u32 %v1461, 16
        %v1706 = vrot.slane %v1704, 5
        %v1707 = vsel %vm856, %v1702, %v1706
        %v1709 = vshrl.u32 %v1440, 16
        %v1711 = vrot.slane %v1709, 4
        %v1712 = vshll.u32 %v1440, 16
        %v1714 = vrot.slane %v1712, 5
        %v1715 = vor.u32 %v1711, %v1714
        %v1716 = vrot.slane %v1715, 4
        %v1718 = vshll.u32 %v1441, 16
        %v1720 = vrot.slane %v1718, 5
        %v1721 = vsel %vm856, %v1716, %v1720
        %v1722 = vshrl.u32 %v1441, 16
        %v1724 = vrot.slane %v1722, 4
        %v1725 = vor.u32 %v1724, %v1720
        %v1726 = vrot.slane %v1725, 4
        %v1728 = vshll.u32 %v1462, 16
        %v1730 = vrot.slane %v1728, 5
        %v1731 = vsel %vm856, %v1726, %v1730
        %v1733 = vshrl.u32 %v1442, 16
        %v1735 = vrot.slane %v1733, 4
        %v1736 = vshll.u32 %v1442, 16
        %v1738 = vrot.slane %v1736, 5
        %v1739 = vor.u32 %v1735, %v1738
        %v1740 = vrot.slane %v1739, 4
        %v1742 = vshll.u32 %v1443, 16
        %v1744 = vrot.slane %v1742, 5
        %v1745 = vsel %vm856, %v1740, %v1744
        %v1746 = vshrl.u32 %v1443, 16
        %v1748 = vrot.slane %v1746, 4
        %v1749 = vor.u32 %v1748, %v1744
        %v1750 = vrot.slane %v1749, 4
        %v1752 = vshll.u32 %v1463, 16
        %v1754 = vrot.slane %v1752, 5
        %v1755 = vsel %vm856, %v1750, %v1754
        %v1757 = vshrl.u32 %v1444, 16
        %v1759 = vrot.slane %v1757, 4
        %v1760 = vshll.u32 %v1444, 16
        %v1762 = vrot.slane %v1760, 5
        %v1763 = vor.u32 %v1759, %v1762
        %v1764 = vrot.slane %v1763, 4
        %v1766 = vshll.u32 %v1445, 16
        %v1768 = vrot.slane %v1766, 5
        %v1769 = vsel %vm856, %v1764, %v1768
        %v1770 = vshrl.u32 %v1445, 16
        %v1772 = vrot.slane %v1770, 4
        %v1773 = vor.u32 %v1772, %v1768
        %v1774 = vrot.slane %v1773, 4
        %v1776 = vshll.u32 %v1464, 16
        %v1778 = vrot.slane %v1776, 5
        %v1779 = vsel %vm856, %v1774, %v1778
        %v1781 = vshrl.u32 %v1446, 16
        %v1783 = vrot.slane %v1781, 4
        %v1784 = vshll.u32 %v1446, 16
        %v1786 = vrot.slane %v1784, 5
        %v1787 = vor.u32 %v1783, %v1786
        %v1788 = vrot.slane %v1787, 4
        %v1790 = vshll.u32 %v1447, 16
        %v1792 = vrot.slane %v1790, 5
        %v1793 = vsel %vm856, %v1788, %v1792
        %v1794 = vshrl.u32 %v1447, 16
        %v1796 = vrot.slane %v1794, 4
        %v1797 = vor.u32 %v1796, %v1792
        %v1798 = vrot.slane %v1797, 4
        %v1800 = vshll.u32 %v1465, 16
        %v1802 = vrot.slane %v1800, 5
        %v1803 = vsel %vm856, %v1798, %v1802
        %v1805 = vshrl.u32 %v1448, 16
        %v1807 = vrot.slane %v1805, 4
        %v1808 = vshll.u32 %v1448, 16
        %v1810 = vrot.slane %v1808, 5
        %v1811 = vor.u32 %v1807, %v1810
        %v1812 = vrot.slane %v1811, 4
        %v1814 = vshll.u32 %v1449, 16
        %v1816 = vrot.slane %v1814, 5
        %v1817 = vsel %vm856, %v1812, %v1816
        %v1818 = vshrl.u32 %v1449, 16
        %v1820 = vrot.slane %v1818, 4
        %v1821 = vor.u32 %v1820, %v1816
        %v1822 = vrot.slane %v1821, 4
        %v1824 = vshll.u32 %v1466, 16
        %v1826 = vrot.slane %v1824, 5
        %v1827 = vsel %vm856, %v1822, %v1826
        %v1829 = vshrl.u32 %v1450, 16
        %v1831 = vrot.slane %v1829, 4
        %v1832 = vshll.u32 %v1450, 16
        %v1834 = vrot.slane %v1832, 5
        %v1835 = vor.u32 %v1831, %v1834
        %v1836 = vrot.slane %v1835, 4
        %v1838 = vshll.u32 %v1451, 16
        %v1840 = vrot.slane %v1838, 5
        %v1841 = vsel %vm856, %v1836, %v1840
        %v1842 = vshrl.u32 %v1451, 16
        %v1844 = vrot.slane %v1842, 4
        %v1845 = vor.u32 %v1844, %v1840
        %v1846 = vrot.slane %v1845, 4
        %v1848 = vshll.u32 %v1467, 16
        %v1850 = vrot.slane %v1848, 5
        %v1851 = vsel %vm856, %v1846, %v1850
        %v1852 = vld [vmem:[%s688] sm:$0xe]
        %v1853 = vld [vmem:[%s688 + $0xc] sm:$0xe]
        %v1854 = vld [vmem:[%s688 + $0x18] sm:$0xe]
        %v1855 = vld [vmem:[%s688 + $0x24] sm:$0xe]
        %v1856 = vld [vmem:[%s688 + $0x30] sm:$0xe]
        %v1857 = vld [vmem:[%s688 + $0x3c] sm:$0xe]
        %v1858 = vld [vmem:[%s688 + $0x48] sm:$0xe]
        %v1859 = vld [vmem:[%s688 + $0x54] sm:$0xe]
        %v1860 = vld [vmem:[%s688 + $0x60] sm:$0xe]
        %v1861 = vld [vmem:[%s688 + $0x6c] sm:$0xe]
        %v1862 = vld [vmem:[%s688 + $0x78] sm:$0xe]
        %v1863 = vld [vmem:[%s688 + $0x84] sm:$0xe]
        %v1864 = vld [vmem:[%s688 + $0x90] sm:$0xe]
        %v1865 = vld [vmem:[%s688 + $0x9c] sm:$0xe]
        %v1866 = vld [vmem:[%s688 + $0xa8] sm:$0xe]
        %v1867 = vld [vmem:[%s688 + $0xb4] sm:$0xe]
        %v1916 = vrot.slane %v1852, 5
        %v1917 = vrot.slane %v1916, 4
        %v1918 = vrot.slane %v1421, 5
        %v1919 = vsel %vm1307, %v1917, %v1918
        %v1920 = vrot.slane %v1918, 4
        %v1921 = vrot.slane %v1452, 5
        %v1922 = vsel %vm1307, %v1920, %v1921
        %v1923 = vrot.slane %v1853, 5
        %v1924 = vrot.slane %v1923, 4
        %v1925 = vrot.slane %v1423, 5
        %v1926 = vsel %vm1307, %v1924, %v1925
        %v1927 = vrot.slane %v1925, 4
        %v1928 = vrot.slane %v1453, 5
        %v1929 = vsel %vm1307, %v1927, %v1928
        %v1930 = vrot.slane %v1854, 5
        %v1931 = vrot.slane %v1930, 4
        %v1932 = vrot.slane %v1425, 5
        %v1933 = vsel %vm1307, %v1931, %v1932
        %v1934 = vrot.slane %v1932, 4
        %v1935 = vrot.slane %v1454, 5
        %v1936 = vsel %vm1307, %v1934, %v1935
        %v1937 = vrot.slane %v1855, 5
        %v1938 = vrot.slane %v1937, 4
        %v1939 = vrot.slane %v1427, 5
        %v1940 = vsel %vm1307, %v1938, %v1939
        %v1941 = vrot.slane %v1939, 4
        %v1942 = vrot.slane %v1455, 5
        %v1943 = vsel %vm1307, %v1941, %v1942
        %v1944 = vrot.slane %v1856, 5
        %v1945 = vrot.slane %v1944, 4
        %v1946 = vrot.slane %v1429, 5
        %v1947 = vsel %vm1307, %v1945, %v1946
        %v1948 = vrot.slane %v1946, 4
        %v1949 = vrot.slane %v1456, 5
        %v1950 = vsel %vm1307, %v1948, %v1949
        %v1951 = vrot.slane %v1857, 5
        %v1952 = vrot.slane %v1951, 4
        %v1953 = vrot.slane %v1431, 5
        %v1954 = vsel %vm1307, %v1952, %v1953
        %v1955 = vrot.slane %v1953, 4
        %v1956 = vrot.slane %v1457, 5
        %v1957 = vsel %vm1307, %v1955, %v1956
        %v1958 = vrot.slane %v1858, 5
        %v1959 = vrot.slane %v1958, 4
        %v1960 = vrot.slane %v1433, 5
        %v1961 = vsel %vm1307, %v1959, %v1960
        %v1962 = vrot.slane %v1960, 4
        %v1963 = vrot.slane %v1458, 5
        %v1964 = vsel %vm1307, %v1962, %v1963
        %v1965 = vrot.slane %v1859, 5
        %v1966 = vrot.slane %v1965, 4
        %v1967 = vrot.slane %v1435, 5
        %v1968 = vsel %vm1307, %v1966, %v1967
        %v1969 = vrot.slane %v1967, 4
        %v1970 = vrot.slane %v1459, 5
        %v1971 = vsel %vm1307, %v1969, %v1970
        %v1972 = vrot.slane %v1860, 5
        %v1973 = vrot.slane %v1972, 4
        %v1974 = vrot.slane %v1437, 5
        %v1975 = vsel %vm1307, %v1973, %v1974
        %v1976 = vrot.slane %v1974, 4
        %v1977 = vrot.slane %v1460, 5
        %v1978 = vsel %vm1307, %v1976, %v1977
        %v1979 = vrot.slane %v1861, 5
        %v1980 = vrot.slane %v1979, 4
        %v1981 = vrot.slane %v1439, 5
        %v1982 = vsel %vm1307, %v1980, %v1981
        %v1983 = vrot.slane %v1981, 4
        %v1984 = vrot.slane %v1461, 5
        %v1985 = vsel %vm1307, %v1983, %v1984
        %v1986 = vrot.slane %v1862, 5
        %v1987 = vrot.slane %v1986, 4
        %v1988 = vrot.slane %v1441, 5
        %v1989 = vsel %vm1307, %v1987, %v1988
        %v1990 = vrot.slane %v1988, 4
        %v1991 = vrot.slane %v1462, 5
        %v1992 = vsel %vm1307, %v1990, %v1991
        %v1993 = vrot.slane %v1863, 5
        %v1994 = vrot.slane %v1993, 4
        %v1995 = vrot.slane %v1443, 5
        %v1996 = vsel %vm1307, %v1994, %v1995
        %v1997 = vrot.slane %v1995, 4
        %v1998 = vrot.slane %v1463, 5
        %v1999 = vsel %vm1307, %v1997, %v1998
        %v2000 = vrot.slane %v1864, 5
        %v2001 = vrot.slane %v2000, 4
        %v2002 = vrot.slane %v1445, 5
        %v2003 = vsel %vm1307, %v2001, %v2002
        %v2004 = vrot.slane %v2002, 4
        %v2005 = vrot.slane %v1464, 5
        %v2006 = vsel %vm1307, %v2004, %v2005
        %v2007 = vrot.slane %v1865, 5
        %v2008 = vrot.slane %v2007, 4
        %v2009 = vrot.slane %v1447, 5
        %v2010 = vsel %vm1307, %v2008, %v2009
        %v2011 = vrot.slane %v2009, 4
        %v2012 = vrot.slane %v1465, 5
        %v2013 = vsel %vm1307, %v2011, %v2012
        %v2014 = vrot.slane %v1866, 5
        %v2015 = vrot.slane %v2014, 4
        %v2016 = vrot.slane %v1449, 5
        %v2017 = vsel %vm1307, %v2015, %v2016
        %v2018 = vrot.slane %v2016, 4
        %v2019 = vrot.slane %v1466, 5
        %v2020 = vsel %vm1307, %v2018, %v2019
        %v2021 = vrot.slane %v1867, 5
        %v2022 = vrot.slane %v2021, 4
        %v2023 = vrot.slane %v1451, 5
        %v2024 = vsel %vm1307, %v2022, %v2023
        %v2025 = vrot.slane %v2023, 4
        %v2026 = vrot.slane %v1467, 5
        %v2027 = vsel %vm1307, %v2025, %v2026
        %s2028 = scalar_lea.vmem [#allocation2], 24
        %v2029 = vld [vmem:[%s2028] sm:$0xf]
        %v2030 = vld [vmem:[%s2028 + $0x4] sm:$0xf]
        %v2031 = vld [vmem:[%s2028 + $0xc] sm:$0xf]
        %v2032 = vld [vmem:[%s2028 + $0x10] sm:$0xf]
        %v2033 = vld [vmem:[%s2028 + $0x18] sm:$0xf]
        %v2034 = vld [vmem:[%s2028 + $0x1c] sm:$0xf]
        %v2035 = vld [vmem:[%s2028 + $0x24] sm:$0xf]
        %v2036 = vld [vmem:[%s2028 + $0x28] sm:$0xf]
        %v2037 = vld [vmem:[%s2028 + $0x30] sm:$0xf]
        %v2038 = vld [vmem:[%s2028 + $0x34] sm:$0xf]
        %v2039 = vld [vmem:[%s2028 + $0x3c] sm:$0xf]
        %v2040 = vld [vmem:[%s2028 + $0x40] sm:$0xf]
        %v2041 = vld [vmem:[%s2028 + $0x48] sm:$0xf]
        %v2042 = vld [vmem:[%s2028 + $0x4c] sm:$0xf]
        %v2043 = vld [vmem:[%s2028 + $0x54] sm:$0xf]
        %v2044 = vld [vmem:[%s2028 + $0x58] sm:$0xf]
        %v2045 = vld [vmem:[%s2028 + $0x60] sm:$0xf]
        %v2046 = vld [vmem:[%s2028 + $0x64] sm:$0xf]
        %v2047 = vld [vmem:[%s2028 + $0x6c] sm:$0xf]
        %v2048 = vld [vmem:[%s2028 + $0x70] sm:$0xf]
        %v2049 = vld [vmem:[%s2028 + $0x78] sm:$0xf]
        %v2050 = vld [vmem:[%s2028 + $0x7c] sm:$0xf]
        %v2051 = vld [vmem:[%s2028 + $0x84] sm:$0xf]
        %v2052 = vld [vmem:[%s2028 + $0x88] sm:$0xf]
        %v2053 = vld [vmem:[%s2028 + $0x90] sm:$0xf]
        %v2054 = vld [vmem:[%s2028 + $0x94] sm:$0xf]
        %v2055 = vld [vmem:[%s2028 + $0x9c] sm:$0xf]
        %v2056 = vld [vmem:[%s2028 + $0xa0] sm:$0xf]
        %v2057 = vld [vmem:[%s2028 + $0xa8] sm:$0xf]
        %v2058 = vld [vmem:[%s2028 + $0xac] sm:$0xf]
        %v2059 = vld [vmem:[%s2028 + $0xb4] sm:$0xf]
        %v2060 = vld [vmem:[%s2028 + $0xb8] sm:$0xf]
        %v2061 = vld [vmem:[%s2028 + $0x8] sm:$0x1]
        %v2062 = vld [vmem:[%s2028 + $0x14] sm:$0x1]
        %v2063 = vld [vmem:[%s2028 + $0x20] sm:$0x1]
        %v2064 = vld [vmem:[%s2028 + $0x2c] sm:$0x1]
        %v2065 = vld [vmem:[%s2028 + $0x38] sm:$0x1]
        %v2066 = vld [vmem:[%s2028 + $0x44] sm:$0x1]
        %v2067 = vld [vmem:[%s2028 + $0x50] sm:$0x1]
        %v2068 = vld [vmem:[%s2028 + $0x5c] sm:$0x1]
        %v2069 = vld [vmem:[%s2028 + $0x68] sm:$0x1]
        %v2070 = vld [vmem:[%s2028 + $0x74] sm:$0x1]
        %v2071 = vld [vmem:[%s2028 + $0x80] sm:$0x1]
        %v2072 = vld [vmem:[%s2028 + $0x8c] sm:$0x1]
        %v2073 = vld [vmem:[%s2028 + $0x98] sm:$0x1]
        %v2074 = vld [vmem:[%s2028 + $0xa4] sm:$0x1]
        %v2075 = vld [vmem:[%s2028 + $0xb0] sm:$0x1]
        %v2076 = vld [vmem:[%s2028 + $0xbc] sm:$0x1]
        %v2078 = vshrl.u32 %v2029, 16
        %v2080 = vrot.slane %v2078, 4
        %v2081 = vshll.u32 %v2029, 16
        %v2083 = vrot.slane %v2081, 5
        %v2084 = vor.u32 %v2080, %v2083
        %v2085 = vrot.slane %v2084, 4
        %v2087 = vshll.u32 %v2030, 16
        %v2089 = vrot.slane %v2087, 5
        %v2090 = vsel %vm856, %v2085, %v2089
        %v2091 = vshrl.u32 %v2030, 16
        %v2093 = vrot.slane %v2091, 4
        %v2094 = vor.u32 %v2093, %v2089
        %v2095 = vrot.slane %v2094, 4
        %v2097 = vshll.u32 %v2061, 16
        %v2099 = vrot.slane %v2097, 5
        %v2100 = vsel %vm856, %v2095, %v2099
        %v2102 = vshrl.u32 %v2031, 16
        %v2104 = vrot.slane %v2102, 4
        %v2105 = vshll.u32 %v2031, 16
        %v2107 = vrot.slane %v2105, 5
        %v2108 = vor.u32 %v2104, %v2107
        %v2109 = vrot.slane %v2108, 4
        %v2111 = vshll.u32 %v2032, 16
        %v2113 = vrot.slane %v2111, 5
        %v2114 = vsel %vm856, %v2109, %v2113
        %v2115 = vshrl.u32 %v2032, 16
        %v2117 = vrot.slane %v2115, 4
        %v2118 = vor.u32 %v2117, %v2113
        %v2119 = vrot.slane %v2118, 4
        %v2121 = vshll.u32 %v2062, 16
        %v2123 = vrot.slane %v2121, 5
        %v2124 = vsel %vm856, %v2119, %v2123
        %v2126 = vshrl.u32 %v2033, 16
        %v2128 = vrot.slane %v2126, 4
        %v2129 = vshll.u32 %v2033, 16
        %v2131 = vrot.slane %v2129, 5
        %v2132 = vor.u32 %v2128, %v2131
        %v2133 = vrot.slane %v2132, 4
        %v2135 = vshll.u32 %v2034, 16
        %v2137 = vrot.slane %v2135, 5
        %v2138 = vsel %vm856, %v2133, %v2137
        %v2139 = vshrl.u32 %v2034, 16
        %v2141 = vrot.slane %v2139, 4
        %v2142 = vor.u32 %v2141, %v2137
        %v2143 = vrot.slane %v2142, 4
        %v2145 = vshll.u32 %v2063, 16
        %v2147 = vrot.slane %v2145, 5
        %v2148 = vsel %vm856, %v2143, %v2147
        %v2150 = vshrl.u32 %v2035, 16
        %v2152 = vrot.slane %v2150, 4
        %v2153 = vshll.u32 %v2035, 16
        %v2155 = vrot.slane %v2153, 5
        %v2156 = vor.u32 %v2152, %v2155
        %v2157 = vrot.slane %v2156, 4
        %v2159 = vshll.u32 %v2036, 16
        %v2161 = vrot.slane %v2159, 5
        %v2162 = vsel %vm856, %v2157, %v2161
        %v2163 = vshrl.u32 %v2036, 16
        %v2165 = vrot.slane %v2163, 4
        %v2166 = vor.u32 %v2165, %v2161
        %v2167 = vrot.slane %v2166, 4
        %v2169 = vshll.u32 %v2064, 16
        %v2171 = vrot.slane %v2169, 5
        %v2172 = vsel %vm856, %v2167, %v2171
        %v2174 = vshrl.u32 %v2037, 16
        %v2176 = vrot.slane %v2174, 4
        %v2177 = vshll.u32 %v2037, 16
        %v2179 = vrot.slane %v2177, 5
        %v2180 = vor.u32 %v2176, %v2179
        %v2181 = vrot.slane %v2180, 4
        %v2183 = vshll.u32 %v2038, 16
        %v2185 = vrot.slane %v2183, 5
        %v2186 = vsel %vm856, %v2181, %v2185
        %v2187 = vshrl.u32 %v2038, 16
        %v2189 = vrot.slane %v2187, 4
        %v2190 = vor.u32 %v2189, %v2185
        %v2191 = vrot.slane %v2190, 4
        %v2193 = vshll.u32 %v2065, 16
        %v2195 = vrot.slane %v2193, 5
        %v2196 = vsel %vm856, %v2191, %v2195
        %v2198 = vshrl.u32 %v2039, 16
        %v2200 = vrot.slane %v2198, 4
        %v2201 = vshll.u32 %v2039, 16
        %v2203 = vrot.slane %v2201, 5
        %v2204 = vor.u32 %v2200, %v2203
        %v2205 = vrot.slane %v2204, 4
        %v2207 = vshll.u32 %v2040, 16
        %v2209 = vrot.slane %v2207, 5
        %v2210 = vsel %vm856, %v2205, %v2209
        %v2211 = vshrl.u32 %v2040, 16
        %v2213 = vrot.slane %v2211, 4
        %v2214 = vor.u32 %v2213, %v2209
        %v2215 = vrot.slane %v2214, 4
        %v2217 = vshll.u32 %v2066, 16
        %v2219 = vrot.slane %v2217, 5
        %v2220 = vsel %vm856, %v2215, %v2219
        %v2222 = vshrl.u32 %v2041, 16
        %v2224 = vrot.slane %v2222, 4
        %v2225 = vshll.u32 %v2041, 16
        %v2227 = vrot.slane %v2225, 5
        %v2228 = vor.u32 %v2224, %v2227
        %v2229 = vrot.slane %v2228, 4
        %v2231 = vshll.u32 %v2042, 16
        %v2233 = vrot.slane %v2231, 5
        %v2234 = vsel %vm856, %v2229, %v2233
        %v2235 = vshrl.u32 %v2042, 16
        %v2237 = vrot.slane %v2235, 4
        %v2238 = vor.u32 %v2237, %v2233
        %v2239 = vrot.slane %v2238, 4
        %v2241 = vshll.u32 %v2067, 16
        %v2243 = vrot.slane %v2241, 5
        %v2244 = vsel %vm856, %v2239, %v2243
        %v2246 = vshrl.u32 %v2043, 16
        %v2248 = vrot.slane %v2246, 4
        %v2249 = vshll.u32 %v2043, 16
        %v2251 = vrot.slane %v2249, 5
        %v2252 = vor.u32 %v2248, %v2251
        %v2253 = vrot.slane %v2252, 4
        %v2255 = vshll.u32 %v2044, 16
        %v2257 = vrot.slane %v2255, 5
        %v2258 = vsel %vm856, %v2253, %v2257
        %v2259 = vshrl.u32 %v2044, 16
        %v2261 = vrot.slane %v2259, 4
        %v2262 = vor.u32 %v2261, %v2257
        %v2263 = vrot.slane %v2262, 4
        %v2265 = vshll.u32 %v2068, 16
        %v2267 = vrot.slane %v2265, 5
        %v2268 = vsel %vm856, %v2263, %v2267
        %v2270 = vshrl.u32 %v2045, 16
        %v2272 = vrot.slane %v2270, 4
        %v2273 = vshll.u32 %v2045, 16
        %v2275 = vrot.slane %v2273, 5
        %v2276 = vor.u32 %v2272, %v2275
        %v2277 = vrot.slane %v2276, 4
        %v2279 = vshll.u32 %v2046, 16
        %v2281 = vrot.slane %v2279, 5
        %v2282 = vsel %vm856, %v2277, %v2281
        %v2283 = vshrl.u32 %v2046, 16
        %v2285 = vrot.slane %v2283, 4
        %v2286 = vor.u32 %v2285, %v2281
        %v2287 = vrot.slane %v2286, 4
        %v2289 = vshll.u32 %v2069, 16
        %v2291 = vrot.slane %v2289, 5
        %v2292 = vsel %vm856, %v2287, %v2291
        %v2294 = vshrl.u32 %v2047, 16
        %v2296 = vrot.slane %v2294, 4
        %v2297 = vshll.u32 %v2047, 16
        %v2299 = vrot.slane %v2297, 5
        %v2300 = vor.u32 %v2296, %v2299
        %v2301 = vrot.slane %v2300, 4
        %v2303 = vshll.u32 %v2048, 16
        %v2305 = vrot.slane %v2303, 5
        %v2306 = vsel %vm856, %v2301, %v2305
        %v2307 = vshrl.u32 %v2048, 16
        %v2309 = vrot.slane %v2307, 4
        %v2310 = vor.u32 %v2309, %v2305
        %v2311 = vrot.slane %v2310, 4
        %v2313 = vshll.u32 %v2070, 16
        %v2315 = vrot.slane %v2313, 5
        %v2316 = vsel %vm856, %v2311, %v2315
        %v2318 = vshrl.u32 %v2049, 16
        %v2320 = vrot.slane %v2318, 4
        %v2321 = vshll.u32 %v2049, 16
        %v2323 = vrot.slane %v2321, 5
        %v2324 = vor.u32 %v2320, %v2323
        %v2325 = vrot.slane %v2324, 4
        %v2327 = vshll.u32 %v2050, 16
        %v2329 = vrot.slane %v2327, 5
        %v2330 = vsel %vm856, %v2325, %v2329
        %v2331 = vshrl.u32 %v2050, 16
        %v2333 = vrot.slane %v2331, 4
        %v2334 = vor.u32 %v2333, %v2329
        %v2335 = vrot.slane %v2334, 4
        %v2337 = vshll.u32 %v2071, 16
        %v2339 = vrot.slane %v2337, 5
        %v2340 = vsel %vm856, %v2335, %v2339
        %v2342 = vshrl.u32 %v2051, 16
        %v2344 = vrot.slane %v2342, 4
        %v2345 = vshll.u32 %v2051, 16
        %v2347 = vrot.slane %v2345, 5
        %v2348 = vor.u32 %v2344, %v2347
        %v2349 = vrot.slane %v2348, 4
        %v2351 = vshll.u32 %v2052, 16
        %v2353 = vrot.slane %v2351, 5
        %v2354 = vsel %vm856, %v2349, %v2353
        %v2355 = vshrl.u32 %v2052, 16
        %v2357 = vrot.slane %v2355, 4
        %v2358 = vor.u32 %v2357, %v2353
        %v2359 = vrot.slane %v2358, 4
        %v2361 = vshll.u32 %v2072, 16
        %v2363 = vrot.slane %v2361, 5
        %v2364 = vsel %vm856, %v2359, %v2363
        %v2366 = vshrl.u32 %v2053, 16
        %v2368 = vrot.slane %v2366, 4
        %v2369 = vshll.u32 %v2053, 16
        %v2371 = vrot.slane %v2369, 5
        %v2372 = vor.u32 %v2368, %v2371
        %v2373 = vrot.slane %v2372, 4
        %v2375 = vshll.u32 %v2054, 16
        %v2377 = vrot.slane %v2375, 5
        %v2378 = vsel %vm856, %v2373, %v2377
        %v2379 = vshrl.u32 %v2054, 16
        %v2381 = vrot.slane %v2379, 4
        %v2382 = vor.u32 %v2381, %v2377
        %v2383 = vrot.slane %v2382, 4
        %v2385 = vshll.u32 %v2073, 16
        %v2387 = vrot.slane %v2385, 5
        %v2388 = vsel %vm856, %v2383, %v2387
        %v2390 = vshrl.u32 %v2055, 16
        %v2392 = vrot.slane %v2390, 4
        %v2393 = vshll.u32 %v2055, 16
        %v2395 = vrot.slane %v2393, 5
        %v2396 = vor.u32 %v2392, %v2395
        %v2397 = vrot.slane %v2396, 4
        %v2399 = vshll.u32 %v2056, 16
        %v2401 = vrot.slane %v2399, 5
        %v2402 = vsel %vm856, %v2397, %v2401
        %v2403 = vshrl.u32 %v2056, 16
        %v2405 = vrot.slane %v2403, 4
        %v2406 = vor.u32 %v2405, %v2401
        %v2407 = vrot.slane %v2406, 4
        %v2409 = vshll.u32 %v2074, 16
        %v2411 = vrot.slane %v2409, 5
        %v2412 = vsel %vm856, %v2407, %v2411
        %v2414 = vshrl.u32 %v2057, 16
        %v2416 = vrot.slane %v2414, 4
        %v2417 = vshll.u32 %v2057, 16
        %v2419 = vrot.slane %v2417, 5
        %v2420 = vor.u32 %v2416, %v2419
        %v2421 = vrot.slane %v2420, 4
        %v2423 = vshll.u32 %v2058, 16
        %v2425 = vrot.slane %v2423, 5
        %v2426 = vsel %vm856, %v2421, %v2425
        %v2427 = vshrl.u32 %v2058, 16
        %v2429 = vrot.slane %v2427, 4
        %v2430 = vor.u32 %v2429, %v2425
        %v2431 = vrot.slane %v2430, 4
        %v2433 = vshll.u32 %v2075, 16
        %v2435 = vrot.slane %v2433, 5
        %v2436 = vsel %vm856, %v2431, %v2435
        %v2438 = vshrl.u32 %v2059, 16
        %v2440 = vrot.slane %v2438, 4
        %v2441 = vshll.u32 %v2059, 16
        %v2443 = vrot.slane %v2441, 5
        %v2444 = vor.u32 %v2440, %v2443
        %v2445 = vrot.slane %v2444, 4
        %v2447 = vshll.u32 %v2060, 16
        %v2449 = vrot.slane %v2447, 5
        %v2450 = vsel %vm856, %v2445, %v2449
        %v2451 = vshrl.u32 %v2060, 16
        %v2453 = vrot.slane %v2451, 4
        %v2454 = vor.u32 %v2453, %v2449
        %v2455 = vrot.slane %v2454, 4
        %v2457 = vshll.u32 %v2076, 16
        %v2459 = vrot.slane %v2457, 5
        %v2460 = vsel %vm856, %v2455, %v2459
        %v2461 = vld [vmem:[%s2028] sm:$0xe]
        %v2462 = vld [vmem:[%s2028 + $0xc] sm:$0xe]
        %v2463 = vld [vmem:[%s2028 + $0x18] sm:$0xe]
        %v2464 = vld [vmem:[%s2028 + $0x24] sm:$0xe]
        %v2465 = vld [vmem:[%s2028 + $0x30] sm:$0xe]
        %v2466 = vld [vmem:[%s2028 + $0x3c] sm:$0xe]
        %v2467 = vld [vmem:[%s2028 + $0x48] sm:$0xe]
        %v2468 = vld [vmem:[%s2028 + $0x54] sm:$0xe]
        %v2469 = vld [vmem:[%s2028 + $0x60] sm:$0xe]
        %v2470 = vld [vmem:[%s2028 + $0x6c] sm:$0xe]
        %v2471 = vld [vmem:[%s2028 + $0x78] sm:$0xe]
        %v2472 = vld [vmem:[%s2028 + $0x84] sm:$0xe]
        %v2473 = vld [vmem:[%s2028 + $0x90] sm:$0xe]
        %v2474 = vld [vmem:[%s2028 + $0x9c] sm:$0xe]
        %v2475 = vld [vmem:[%s2028 + $0xa8] sm:$0xe]
        %v2476 = vld [vmem:[%s2028 + $0xb4] sm:$0xe]
        %v2525 = vrot.slane %v2461, 5
        %v2526 = vrot.slane %v2525, 4
        %v2527 = vrot.slane %v2030, 5
        %v2528 = vsel %vm1307, %v2526, %v2527
        %v2529 = vrot.slane %v2527, 4
        %v2530 = vrot.slane %v2061, 5
        %v2531 = vsel %vm1307, %v2529, %v2530
        %v2532 = vrot.slane %v2462, 5
        %v2533 = vrot.slane %v2532, 4
        %v2534 = vrot.slane %v2032, 5
        %v2535 = vsel %vm1307, %v2533, %v2534
        %v2536 = vrot.slane %v2534, 4
        %v2537 = vrot.slane %v2062, 5
        %v2538 = vsel %vm1307, %v2536, %v2537
        %v2539 = vrot.slane %v2463, 5
        %v2540 = vrot.slane %v2539, 4
        %v2541 = vrot.slane %v2034, 5
        %v2542 = vsel %vm1307, %v2540, %v2541
        %v2543 = vrot.slane %v2541, 4
        %v2544 = vrot.slane %v2063, 5
        %v2545 = vsel %vm1307, %v2543, %v2544
        %v2546 = vrot.slane %v2464, 5
        %v2547 = vrot.slane %v2546, 4
        %v2548 = vrot.slane %v2036, 5
        %v2549 = vsel %vm1307, %v2547, %v2548
        %v2550 = vrot.slane %v2548, 4
        %v2551 = vrot.slane %v2064, 5
        %v2552 = vsel %vm1307, %v2550, %v2551
        %v2553 = vrot.slane %v2465, 5
        %v2554 = vrot.slane %v2553, 4
        %v2555 = vrot.slane %v2038, 5
        %v2556 = vsel %vm1307, %v2554, %v2555
        %v2557 = vrot.slane %v2555, 4
        %v2558 = vrot.slane %v2065, 5
        %v2559 = vsel %vm1307, %v2557, %v2558
        %v2560 = vrot.slane %v2466, 5
        %v2561 = vrot.slane %v2560, 4
        %v2562 = vrot.slane %v2040, 5
        %v2563 = vsel %vm1307, %v2561, %v2562
        %v2564 = vrot.slane %v2562, 4
        %v2565 = vrot.slane %v2066, 5
        %v2566 = vsel %vm1307, %v2564, %v2565
        %v2567 = vrot.slane %v2467, 5
        %v2568 = vrot.slane %v2567, 4
        %v2569 = vrot.slane %v2042, 5
        %v2570 = vsel %vm1307, %v2568, %v2569
        %v2571 = vrot.slane %v2569, 4
        %v2572 = vrot.slane %v2067, 5
        %v2573 = vsel %vm1307, %v2571, %v2572
        %v2574 = vrot.slane %v2468, 5
        %v2575 = vrot.slane %v2574, 4
        %v2576 = vrot.slane %v2044, 5
        %v2577 = vsel %vm1307, %v2575, %v2576
        %v2578 = vrot.slane %v2576, 4
        %v2579 = vrot.slane %v2068, 5
        %v2580 = vsel %vm1307, %v2578, %v2579
        %v2581 = vrot.slane %v2469, 5
        %v2582 = vrot.slane %v2581, 4
        %v2583 = vrot.slane %v2046, 5
        %v2584 = vsel %vm1307, %v2582, %v2583
        %v2585 = vrot.slane %v2583, 4
        %v2586 = vrot.slane %v2069, 5
        %v2587 = vsel %vm1307, %v2585, %v2586
        %v2588 = vrot.slane %v2470, 5
        %v2589 = vrot.slane %v2588, 4
        %v2590 = vrot.slane %v2048, 5
        %v2591 = vsel %vm1307, %v2589, %v2590
        %v2592 = vrot.slane %v2590, 4
        %v2593 = vrot.slane %v2070, 5
        %v2594 = vsel %vm1307, %v2592, %v2593
        %v2595 = vrot.slane %v2471, 5
        %v2596 = vrot.slane %v2595, 4
        %v2597 = vrot.slane %v2050, 5
        %v2598 = vsel %vm1307, %v2596, %v2597
        %v2599 = vrot.slane %v2597, 4
        %v2600 = vrot.slane %v2071, 5
        %v2601 = vsel %vm1307, %v2599, %v2600
        %v2602 = vrot.slane %v2472, 5
        %v2603 = vrot.slane %v2602, 4
        %v2604 = vrot.slane %v2052, 5
        %v2605 = vsel %vm1307, %v2603, %v2604
        %v2606 = vrot.slane %v2604, 4
        %v2607 = vrot.slane %v2072, 5
        %v2608 = vsel %vm1307, %v2606, %v2607
        %v2609 = vrot.slane %v2473, 5
        %v2610 = vrot.slane %v2609, 4
        %v2611 = vrot.slane %v2054, 5
        %v2612 = vsel %vm1307, %v2610, %v2611
        %v2613 = vrot.slane %v2611, 4
        %v2614 = vrot.slane %v2073, 5
        %v2615 = vsel %vm1307, %v2613, %v2614
        %v2616 = vrot.slane %v2474, 5
        %v2617 = vrot.slane %v2616, 4
        %v2618 = vrot.slane %v2056, 5
        %v2619 = vsel %vm1307, %v2617, %v2618
        %v2620 = vrot.slane %v2618, 4
        %v2621 = vrot.slane %v2074, 5
        %v2622 = vsel %vm1307, %v2620, %v2621
        %v2623 = vrot.slane %v2475, 5
        %v2624 = vrot.slane %v2623, 4
        %v2625 = vrot.slane %v2058, 5
        %v2626 = vsel %vm1307, %v2624, %v2625
        %v2627 = vrot.slane %v2625, 4
        %v2628 = vrot.slane %v2075, 5
        %v2629 = vsel %vm1307, %v2627, %v2628
        %v2630 = vrot.slane %v2476, 5
        %v2631 = vrot.slane %v2630, 4
        %v2632 = vrot.slane %v2060, 5
        %v2633 = vsel %vm1307, %v2631, %v2632
        %v2634 = vrot.slane %v2632, 4
        %v2635 = vrot.slane %v2076, 5
        %v2636 = vsel %vm1307, %v2634, %v2635
        %v2653 = vunpack.c.l.b16 %v806
        %v2654 = vunpack.c.l.b16 %v807
        %v2655 = vunpack.c.l.b16 %v808
        %v2656 = vunpack.c.l.b16 %v809
        %v2657 = vunpack.c.l.b16 %v810
        %v2658 = vunpack.c.l.b16 %v811
        %v2659 = vunpack.c.l.b16 %v812
        %v2660 = vunpack.c.l.b16 %v813
        %v2661 = vunpack.c.l.b16 %v814
        %v2662 = vunpack.c.l.b16 %v815
        %v2663 = vunpack.c.l.b16 %v816
        %v2664 = vunpack.c.l.b16 %v817
        %v2665 = vunpack.c.l.b16 %v818
        %v2666 = vunpack.c.l.b16 %v819
        %v2667 = vunpack.c.l.b16 %v820
        %v2668 = vunpack.c.l.b16 %v821
        %v2669 = vunpack.c.l.b16 %v822
        %v2670 = vunpack.c.l.b16 %v823
        %v2671 = vunpack.c.l.b16 %v824
        %v2672 = vunpack.c.l.b16 %v825
        %v2673 = vunpack.c.l.b16 %v826
        %v2674 = vunpack.c.l.b16 %v827
        %v2675 = vunpack.c.l.b16 %v828
        %v2676 = vunpack.c.l.b16 %v829
        %v2677 = vunpack.c.l.b16 %v830
        %v2678 = vunpack.c.l.b16 %v831
        %v2679 = vunpack.c.l.b16 %v832
        %v2680 = vunpack.c.l.b16 %v833
        %v2681 = vunpack.c.l.b16 %v834
        %v2682 = vunpack.c.l.b16 %v835
        %v2683 = vunpack.c.l.b16 %v836
        %v2684 = vunpack.c.l.b16 %v837
        %v2685 = vpack.c.b16 %v2654, %v2653
        %v2686 = vpack.c.b16 %v2656, %v2655
        %v2687 = vpack.c.b16 %v2658, %v2657
        %v2688 = vpack.c.b16 %v2660, %v2659
        %v2689 = vpack.c.b16 %v2662, %v2661
        %v2690 = vpack.c.b16 %v2664, %v2663
        %v2691 = vpack.c.b16 %v2666, %v2665
        %v2692 = vpack.c.b16 %v2668, %v2667
        %v2693 = vpack.c.b16 %v2670, %v2669
        %v2694 = vpack.c.b16 %v2672, %v2671
        %v2695 = vpack.c.b16 %v2674, %v2673
        %v2696 = vpack.c.b16 %v2676, %v2675
        %v2697 = vpack.c.b16 %v2678, %v2677
        %v2698 = vpack.c.b16 %v2680, %v2679
        %v2699 = vpack.c.b16 %v2682, %v2681
        %v2700 = vpack.c.b16 %v2684, %v2683
        %v2701 = vunpack.c.l.b16 %v870
        %v2702 = vunpack.c.l.b16 %v880
        %v2703 = vunpack.c.l.b16 %v894
        %v2704 = vunpack.c.l.b16 %v904
        %v2705 = vunpack.c.l.b16 %v918
        %v2706 = vunpack.c.l.b16 %v928
        %v2707 = vunpack.c.l.b16 %v942
        %v2708 = vunpack.c.l.b16 %v952
        %v2709 = vunpack.c.l.b16 %v966
        %v2710 = vunpack.c.l.b16 %v976
        %v2711 = vunpack.c.l.b16 %v990
        %v2712 = vunpack.c.l.b16 %v1000
        %v2713 = vunpack.c.l.b16 %v1014
        %v2714 = vunpack.c.l.b16 %v1024
        %v2715 = vunpack.c.l.b16 %v1038
        %v2716 = vunpack.c.l.b16 %v1048
        %v2717 = vunpack.c.l.b16 %v1062
        %v2718 = vunpack.c.l.b16 %v1072
        %v2719 = vunpack.c.l.b16 %v1086
        %v2720 = vunpack.c.l.b16 %v1096
        %v2721 = vunpack.c.l.b16 %v1110
        %v2722 = vunpack.c.l.b16 %v1120
        %v2723 = vunpack.c.l.b16 %v1134
        %v2724 = vunpack.c.l.b16 %v1144
        %v2725 = vunpack.c.l.b16 %v1158
        %v2726 = vunpack.c.l.b16 %v1168
        %v2727 = vunpack.c.l.b16 %v1182
        %v2728 = vunpack.c.l.b16 %v1192
        %v2729 = vunpack.c.l.b16 %v1206
        %v2730 = vunpack.c.l.b16 %v1216
        %v2731 = vunpack.c.l.b16 %v1230
        %v2732 = vunpack.c.l.b16 %v1240
        %v2733 = vpack.c.b16 %v2702, %v2701
        %v2734 = vpack.c.b16 %v2704, %v2703
        %v2735 = vpack.c.b16 %v2706, %v2705
        %v2736 = vpack.c.b16 %v2708, %v2707
        %v2737 = vpack.c.b16 %v2710, %v2709
        %v2738 = vpack.c.b16 %v2712, %v2711
        %v2739 = vpack.c.b16 %v2714, %v2713
        %v2740 = vpack.c.b16 %v2716, %v2715
        %v2741 = vpack.c.b16 %v2718, %v2717
        %v2742 = vpack.c.b16 %v2720, %v2719
        %v2743 = vpack.c.b16 %v2722, %v2721
        %v2744 = vpack.c.b16 %v2724, %v2723
        %v2745 = vpack.c.b16 %v2726, %v2725
        %v2746 = vpack.c.b16 %v2728, %v2727
        %v2747 = vpack.c.b16 %v2730, %v2729
        %v2748 = vpack.c.b16 %v2732, %v2731
        %2749 = vrot.lane.b32.xlu0 %v2733, 4
        %v2750 = vpop.permute.xlu0 %2749
        %2751 = vrot.lane.b32.xlu0 %v2734, 4
        %v2752 = vpop.permute.xlu0 %2751
        %2753 = vrot.lane.b32.xlu0 %v2735, 4
        %v2754 = vpop.permute.xlu0 %2753
        %2755 = vrot.lane.b32.xlu0 %v2736, 4
        %v2756 = vpop.permute.xlu0 %2755
        %2757 = vrot.lane.b32.xlu0 %v2737, 4
        %v2758 = vpop.permute.xlu0 %2757
        %2759 = vrot.lane.b32.xlu0 %v2738, 4
        %v2760 = vpop.permute.xlu0 %2759
        %2761 = vrot.lane.b32.xlu0 %v2739, 4
        %v2762 = vpop.permute.xlu0 %2761
        %2763 = vrot.lane.b32.xlu0 %v2740, 4
        %v2764 = vpop.permute.xlu0 %2763
        %2765 = vrot.lane.b32.xlu0 %v2741, 4
        %v2766 = vpop.permute.xlu0 %2765
        %2767 = vrot.lane.b32.xlu0 %v2742, 4
        %v2768 = vpop.permute.xlu0 %2767
        %2769 = vrot.lane.b32.xlu0 %v2743, 4
        %v2770 = vpop.permute.xlu0 %2769
        %2771 = vrot.lane.b32.xlu0 %v2744, 4
        %v2772 = vpop.permute.xlu0 %2771
        %2773 = vrot.lane.b32.xlu0 %v2745, 4
        %v2774 = vpop.permute.xlu0 %2773
        %2775 = vrot.lane.b32.xlu0 %v2746, 4
        %v2776 = vpop.permute.xlu0 %2775
        %2777 = vrot.lane.b32.xlu0 %v2747, 4
        %v2778 = vpop.permute.xlu0 %2777
        %2779 = vrot.lane.b32.xlu0 %v2748, 4
        %v2780 = vpop.permute.xlu0 %2779
        %v2781 = vunpack.c.l.b16 %v1311
        %v2782 = vunpack.c.l.b16 %v1314
        %v2783 = vunpack.c.l.b16 %v1318
        %v2784 = vunpack.c.l.b16 %v1321
        %v2785 = vunpack.c.l.b16 %v1325
        %v2786 = vunpack.c.l.b16 %v1328
        %v2787 = vunpack.c.l.b16 %v1332
        %v2788 = vunpack.c.l.b16 %v1335
        %v2789 = vunpack.c.l.b16 %v1339
        %v2790 = vunpack.c.l.b16 %v1342
        %v2791 = vunpack.c.l.b16 %v1346
        %v2792 = vunpack.c.l.b16 %v1349
        %v2793 = vunpack.c.l.b16 %v1353
        %v2794 = vunpack.c.l.b16 %v1356
        %v2795 = vunpack.c.l.b16 %v1360
        %v2796 = vunpack.c.l.b16 %v1363
        %v2797 = vunpack.c.l.b16 %v1367
        %v2798 = vunpack.c.l.b16 %v1370
        %v2799 = vunpack.c.l.b16 %v1374
        %v2800 = vunpack.c.l.b16 %v1377
        %v2801 = vunpack.c.l.b16 %v1381
        %v2802 = vunpack.c.l.b16 %v1384
        %v2803 = vunpack.c.l.b16 %v1388
        %v2804 = vunpack.c.l.b16 %v1391
        %v2805 = vunpack.c.l.b16 %v1395
        %v2806 = vunpack.c.l.b16 %v1398
        %v2807 = vunpack.c.l.b16 %v1402
        %v2808 = vunpack.c.l.b16 %v1405
        %v2809 = vunpack.c.l.b16 %v1409
        %v2810 = vunpack.c.l.b16 %v1412
        %v2811 = vunpack.c.l.b16 %v1416
        %v2812 = vunpack.c.l.b16 %v1419
        %v2813 = vpack.c.b16 %v2782, %v2781
        %v2814 = vpack.c.b16 %v2784, %v2783
        %v2815 = vpack.c.b16 %v2786, %v2785
        %v2816 = vpack.c.b16 %v2788, %v2787
        %v2817 = vpack.c.b16 %v2790, %v2789
        %v2818 = vpack.c.b16 %v2792, %v2791
        %v2819 = vpack.c.b16 %v2794, %v2793
        %v2820 = vpack.c.b16 %v2796, %v2795
        %v2821 = vpack.c.b16 %v2798, %v2797
        %v2822 = vpack.c.b16 %v2800, %v2799
        %v2823 = vpack.c.b16 %v2802, %v2801
        %v2824 = vpack.c.b16 %v2804, %v2803
        %v2825 = vpack.c.b16 %v2806, %v2805
        %v2826 = vpack.c.b16 %v2808, %v2807
        %v2827 = vpack.c.b16 %v2810, %v2809
        %v2828 = vpack.c.b16 %v2812, %v2811
        %2829 = vrot.lane.b32.xlu0 %v2813, 8
        %v2830 = vpop.permute.xlu0 %2829
        %2831 = vrot.lane.b32.xlu0 %v2814, 8
        %v2832 = vpop.permute.xlu0 %2831
        %2833 = vrot.lane.b32.xlu0 %v2815, 8
        %v2834 = vpop.permute.xlu0 %2833
        %2835 = vrot.lane.b32.xlu0 %v2816, 8
        %v2836 = vpop.permute.xlu0 %2835
        %2837 = vrot.lane.b32.xlu0 %v2817, 8
        %v2838 = vpop.permute.xlu0 %2837
        %2839 = vrot.lane.b32.xlu0 %v2818, 8
        %v2840 = vpop.permute.xlu0 %2839
        %2841 = vrot.lane.b32.xlu0 %v2819, 8
        %v2842 = vpop.permute.xlu0 %2841
        %2843 = vrot.lane.b32.xlu0 %v2820, 8
        %v2844 = vpop.permute.xlu0 %2843
        %2845 = vrot.lane.b32.xlu0 %v2821, 8
        %v2846 = vpop.permute.xlu0 %2845
        %2847 = vrot.lane.b32.xlu0 %v2822, 8
        %v2848 = vpop.permute.xlu0 %2847
        %2849 = vrot.lane.b32.xlu0 %v2823, 8
        %v2850 = vpop.permute.xlu0 %2849
        %2851 = vrot.lane.b32.xlu0 %v2824, 8
        %v2852 = vpop.permute.xlu0 %2851
        %2853 = vrot.lane.b32.xlu0 %v2825, 8
        %v2854 = vpop.permute.xlu0 %2853
        %2855 = vrot.lane.b32.xlu0 %v2826, 8
        %v2856 = vpop.permute.xlu0 %2855
        %2857 = vrot.lane.b32.xlu0 %v2827, 8
        %v2858 = vpop.permute.xlu0 %2857
        %2859 = vrot.lane.b32.xlu0 %v2828, 8
        %v2860 = vpop.permute.xlu0 %2859
        %v2877 = vunpack.c.l.b16 %v1420
        %v2878 = vunpack.c.l.b16 %v1421
        %v2879 = vunpack.c.l.b16 %v1422
        %v2880 = vunpack.c.l.b16 %v1423
        %v2881 = vunpack.c.l.b16 %v1424
        %v2882 = vunpack.c.l.b16 %v1425
        %v2883 = vunpack.c.l.b16 %v1426
        %v2884 = vunpack.c.l.b16 %v1427
        %v2885 = vunpack.c.l.b16 %v1428
        %v2886 = vunpack.c.l.b16 %v1429
        %v2887 = vunpack.c.l.b16 %v1430
        %v2888 = vunpack.c.l.b16 %v1431
        %v2889 = vunpack.c.l.b16 %v1432
        %v2890 = vunpack.c.l.b16 %v1433
        %v2891 = vunpack.c.l.b16 %v1434
        %v2892 = vunpack.c.l.b16 %v1435
        %v2893 = vunpack.c.l.b16 %v1436
        %v2894 = vunpack.c.l.b16 %v1437
        %v2895 = vunpack.c.l.b16 %v1438
        %v2896 = vunpack.c.l.b16 %v1439
        %v2897 = vunpack.c.l.b16 %v1440
        %v2898 = vunpack.c.l.b16 %v1441
        %v2899 = vunpack.c.l.b16 %v1442
        %v2900 = vunpack.c.l.b16 %v1443
        %v2901 = vunpack.c.l.b16 %v1444
        %v2902 = vunpack.c.l.b16 %v1445
        %v2903 = vunpack.c.l.b16 %v1446
        %v2904 = vunpack.c.l.b16 %v1447
        %v2905 = vunpack.c.l.b16 %v1448
        %v2906 = vunpack.c.l.b16 %v1449
        %v2907 = vunpack.c.l.b16 %v1450
        %v2908 = vunpack.c.l.b16 %v1451
        %v2909 = vpack.c.b16 %v2878, %v2877
        %v2910 = vpack.c.b16 %v2880, %v2879
        %v2911 = vpack.c.b16 %v2882, %v2881
        %v2912 = vpack.c.b16 %v2884, %v2883
        %v2913 = vpack.c.b16 %v2886, %v2885
        %v2914 = vpack.c.b16 %v2888, %v2887
        %v2915 = vpack.c.b16 %v2890, %v2889
        %v2916 = vpack.c.b16 %v2892, %v2891
        %v2917 = vpack.c.b16 %v2894, %v2893
        %v2918 = vpack.c.b16 %v2896, %v2895
        %v2919 = vpack.c.b16 %v2898, %v2897
        %v2920 = vpack.c.b16 %v2900, %v2899
        %v2921 = vpack.c.b16 %v2902, %v2901
        %v2922 = vpack.c.b16 %v2904, %v2903
        %v2923 = vpack.c.b16 %v2906, %v2905
        %v2924 = vpack.c.b16 %v2908, %v2907
        %2925 = vrot.lane.b32.xlu0 %v2909, 12
        %v2926 = vpop.permute.xlu0 %2925
        %2927 = vrot.lane.b32.xlu0 %v2910, 12
        %v2928 = vpop.permute.xlu0 %2927
        %2929 = vrot.lane.b32.xlu0 %v2911, 12
        %v2930 = vpop.permute.xlu0 %2929
        %2931 = vrot.lane.b32.xlu0 %v2912, 12
        %v2932 = vpop.permute.xlu0 %2931
        %2933 = vrot.lane.b32.xlu0 %v2913, 12
        %v2934 = vpop.permute.xlu0 %2933
        %2935 = vrot.lane.b32.xlu0 %v2914, 12
        %v2936 = vpop.permute.xlu0 %2935
        %2937 = vrot.lane.b32.xlu0 %v2915, 12
        %v2938 = vpop.permute.xlu0 %2937
        %2939 = vrot.lane.b32.xlu0 %v2916, 12
        %v2940 = vpop.permute.xlu0 %2939
        %2941 = vrot.lane.b32.xlu0 %v2917, 12
        %v2942 = vpop.permute.xlu0 %2941
        %2943 = vrot.lane.b32.xlu0 %v2918, 12
        %v2944 = vpop.permute.xlu0 %2943
        %2945 = vrot.lane.b32.xlu0 %v2919, 12
        %v2946 = vpop.permute.xlu0 %2945
        %2947 = vrot.lane.b32.xlu0 %v2920, 12
        %v2948 = vpop.permute.xlu0 %2947
        %2949 = vrot.lane.b32.xlu0 %v2921, 12
        %v2950 = vpop.permute.xlu0 %2949
        %2951 = vrot.lane.b32.xlu0 %v2922, 12
        %v2952 = vpop.permute.xlu0 %2951
        %2953 = vrot.lane.b32.xlu0 %v2923, 12
        %v2954 = vpop.permute.xlu0 %2953
        %2955 = vrot.lane.b32.xlu0 %v2924, 12
        %v2956 = vpop.permute.xlu0 %2955
        %v2957 = vunpack.c.l.b16 %v1481
        %v2958 = vunpack.c.l.b16 %v1491
        %v2959 = vunpack.c.l.b16 %v1505
        %v2960 = vunpack.c.l.b16 %v1515
        %v2961 = vunpack.c.l.b16 %v1529
        %v2962 = vunpack.c.l.b16 %v1539
        %v2963 = vunpack.c.l.b16 %v1553
        %v2964 = vunpack.c.l.b16 %v1563
        %v2965 = vunpack.c.l.b16 %v1577
        %v2966 = vunpack.c.l.b16 %v1587
        %v2967 = vunpack.c.l.b16 %v1601
        %v2968 = vunpack.c.l.b16 %v1611
        %v2969 = vunpack.c.l.b16 %v1625
        %v2970 = vunpack.c.l.b16 %v1635
        %v2971 = vunpack.c.l.b16 %v1649
        %v2972 = vunpack.c.l.b16 %v1659
        %v2973 = vunpack.c.l.b16 %v1673
        %v2974 = vunpack.c.l.b16 %v1683
        %v2975 = vunpack.c.l.b16 %v1697
        %v2976 = vunpack.c.l.b16 %v1707
        %v2977 = vunpack.c.l.b16 %v1721
        %v2978 = vunpack.c.l.b16 %v1731
        %v2979 = vunpack.c.l.b16 %v1745
        %v2980 = vunpack.c.l.b16 %v1755
        %v2981 = vunpack.c.l.b16 %v1769
        %v2982 = vunpack.c.l.b16 %v1779
        %v2983 = vunpack.c.l.b16 %v1793
        %v2984 = vunpack.c.l.b16 %v1803
        %v2985 = vunpack.c.l.b16 %v1817
        %v2986 = vunpack.c.l.b16 %v1827
        %v2987 = vunpack.c.l.b16 %v1841
        %v2988 = vunpack.c.l.b16 %v1851
        %v2989 = vpack.c.b16 %v2958, %v2957
        %v2990 = vpack.c.b16 %v2960, %v2959
        %v2991 = vpack.c.b16 %v2962, %v2961
        %v2992 = vpack.c.b16 %v2964, %v2963
        %v2993 = vpack.c.b16 %v2966, %v2965
        %v2994 = vpack.c.b16 %v2968, %v2967
        %v2995 = vpack.c.b16 %v2970, %v2969
        %v2996 = vpack.c.b16 %v2972, %v2971
        %v2997 = vpack.c.b16 %v2974, %v2973
        %v2998 = vpack.c.b16 %v2976, %v2975
        %v2999 = vpack.c.b16 %v2978, %v2977
        %v3000 = vpack.c.b16 %v2980, %v2979
        %v3001 = vpack.c.b16 %v2982, %v2981
        %v3002 = vpack.c.b16 %v2984, %v2983
        %v3003 = vpack.c.b16 %v2986, %v2985
        %v3004 = vpack.c.b16 %v2988, %v2987
        %3005 = vrot.lane.b32.xlu0 %v2989, 16
        %v3006 = vpop.permute.xlu0 %3005
        %3007 = vrot.lane.b32.xlu0 %v2990, 16
        %v3008 = vpop.permute.xlu0 %3007
        %3009 = vrot.lane.b32.xlu0 %v2991, 16
        %v3010 = vpop.permute.xlu0 %3009
        %3011 = vrot.lane.b32.xlu0 %v2992, 16
        %v3012 = vpop.permute.xlu0 %3011
        %3013 = vrot.lane.b32.xlu0 %v2993, 16
        %v3014 = vpop.permute.xlu0 %3013
        %3015 = vrot.lane.b32.xlu0 %v2994, 16
        %v3016 = vpop.permute.xlu0 %3015
        %3017 = vrot.lane.b32.xlu0 %v2995, 16
        %v3018 = vpop.permute.xlu0 %3017
        %3019 = vrot.lane.b32.xlu0 %v2996, 16
        %v3020 = vpop.permute.xlu0 %3019
        %3021 = vrot.lane.b32.xlu0 %v2997, 16
        %v3022 = vpop.permute.xlu0 %3021
        %3023 = vrot.lane.b32.xlu0 %v2998, 16
        %v3024 = vpop.permute.xlu0 %3023
        %3025 = vrot.lane.b32.xlu0 %v2999, 16
        %v3026 = vpop.permute.xlu0 %3025
        %3027 = vrot.lane.b32.xlu0 %v3000, 16
        %v3028 = vpop.permute.xlu0 %3027
        %3029 = vrot.lane.b32.xlu0 %v3001, 16
        %v3030 = vpop.permute.xlu0 %3029
        %3031 = vrot.lane.b32.xlu0 %v3002, 16
        %v3032 = vpop.permute.xlu0 %3031
        %3033 = vrot.lane.b32.xlu0 %v3003, 16
        %v3034 = vpop.permute.xlu0 %3033
        %3035 = vrot.lane.b32.xlu0 %v3004, 16
        %v3036 = vpop.permute.xlu0 %3035
        %v3037 = vunpack.c.l.b16 %v1919
        %v3038 = vunpack.c.l.b16 %v1922
        %v3039 = vunpack.c.l.b16 %v1926
        %v3040 = vunpack.c.l.b16 %v1929
        %v3041 = vunpack.c.l.b16 %v1933
        %v3042 = vunpack.c.l.b16 %v1936
        %v3043 = vunpack.c.l.b16 %v1940
        %v3044 = vunpack.c.l.b16 %v1943
        %v3045 = vunpack.c.l.b16 %v1947
        %v3046 = vunpack.c.l.b16 %v1950
        %v3047 = vunpack.c.l.b16 %v1954
        %v3048 = vunpack.c.l.b16 %v1957
        %v3049 = vunpack.c.l.b16 %v1961
        %v3050 = vunpack.c.l.b16 %v1964
        %v3051 = vunpack.c.l.b16 %v1968
        %v3052 = vunpack.c.l.b16 %v1971
        %v3053 = vunpack.c.l.b16 %v1975
        %v3054 = vunpack.c.l.b16 %v1978
        %v3055 = vunpack.c.l.b16 %v1982
        %v3056 = vunpack.c.l.b16 %v1985
        %v3057 = vunpack.c.l.b16 %v1989
        %v3058 = vunpack.c.l.b16 %v1992
        %v3059 = vunpack.c.l.b16 %v1996
        %v3060 = vunpack.c.l.b16 %v1999
        %v3061 = vunpack.c.l.b16 %v2003
        %v3062 = vunpack.c.l.b16 %v2006
        %v3063 = vunpack.c.l.b16 %v2010
        %v3064 = vunpack.c.l.b16 %v2013
        %v3065 = vunpack.c.l.b16 %v2017
        %v3066 = vunpack.c.l.b16 %v2020
        %v3067 = vunpack.c.l.b16 %v2024
        %v3068 = vunpack.c.l.b16 %v2027
        %v3069 = vpack.c.b16 %v3038, %v3037
        %v3070 = vpack.c.b16 %v3040, %v3039
        %v3071 = vpack.c.b16 %v3042, %v3041
        %v3072 = vpack.c.b16 %v3044, %v3043
        %v3073 = vpack.c.b16 %v3046, %v3045
        %v3074 = vpack.c.b16 %v3048, %v3047
        %v3075 = vpack.c.b16 %v3050, %v3049
        %v3076 = vpack.c.b16 %v3052, %v3051
        %v3077 = vpack.c.b16 %v3054, %v3053
        %v3078 = vpack.c.b16 %v3056, %v3055
        %v3079 = vpack.c.b16 %v3058, %v3057
        %v3080 = vpack.c.b16 %v3060, %v3059
        %v3081 = vpack.c.b16 %v3062, %v3061
        %v3082 = vpack.c.b16 %v3064, %v3063
        %v3083 = vpack.c.b16 %v3066, %v3065
        %v3084 = vpack.c.b16 %v3068, %v3067
        %3085 = vrot.lane.b32.xlu0 %v3069, 20
        %v3086 = vpop.permute.xlu0 %3085
        %3087 = vrot.lane.b32.xlu0 %v3070, 20
        %v3088 = vpop.permute.xlu0 %3087
        %3089 = vrot.lane.b32.xlu0 %v3071, 20
        %v3090 = vpop.permute.xlu0 %3089
        %3091 = vrot.lane.b32.xlu0 %v3072, 20
        %v3092 = vpop.permute.xlu0 %3091
        %3093 = vrot.lane.b32.xlu0 %v3073, 20
        %v3094 = vpop.permute.xlu0 %3093
        %3095 = vrot.lane.b32.xlu0 %v3074, 20
        %v3096 = vpop.permute.xlu0 %3095
        %3097 = vrot.lane.b32.xlu0 %v3075, 20
        %v3098 = vpop.permute.xlu0 %3097
        %3099 = vrot.lane.b32.xlu0 %v3076, 20
        %v3100 = vpop.permute.xlu0 %3099
        %3101 = vrot.lane.b32.xlu0 %v3077, 20
        %v3102 = vpop.permute.xlu0 %3101
        %3103 = vrot.lane.b32.xlu0 %v3078, 20
        %v3104 = vpop.permute.xlu0 %3103
        %3105 = vrot.lane.b32.xlu0 %v3079, 20
        %v3106 = vpop.permute.xlu0 %3105
        %3107 = vrot.lane.b32.xlu0 %v3080, 20
        %v3108 = vpop.permute.xlu0 %3107
        %3109 = vrot.lane.b32.xlu0 %v3081, 20
        %v3110 = vpop.permute.xlu0 %3109
        %3111 = vrot.lane.b32.xlu0 %v3082, 20
        %v3112 = vpop.permute.xlu0 %3111
        %3113 = vrot.lane.b32.xlu0 %v3083, 20
        %v3114 = vpop.permute.xlu0 %3113
        %3115 = vrot.lane.b32.xlu0 %v3084, 20
        %v3116 = vpop.permute.xlu0 %3115
        %v3133 = vunpack.c.l.b16 %v2029
        %v3134 = vunpack.c.l.b16 %v2030
        %v3135 = vunpack.c.l.b16 %v2031
        %v3136 = vunpack.c.l.b16 %v2032
        %v3137 = vunpack.c.l.b16 %v2033
        %v3138 = vunpack.c.l.b16 %v2034
        %v3139 = vunpack.c.l.b16 %v2035
        %v3140 = vunpack.c.l.b16 %v2036
        %v3141 = vunpack.c.l.b16 %v2037
        %v3142 = vunpack.c.l.b16 %v2038
        %v3143 = vunpack.c.l.b16 %v2039
        %v3144 = vunpack.c.l.b16 %v2040
        %v3145 = vunpack.c.l.b16 %v2041
        %v3146 = vunpack.c.l.b16 %v2042
        %v3147 = vunpack.c.l.b16 %v2043
        %v3148 = vunpack.c.l.b16 %v2044
        %v3149 = vunpack.c.l.b16 %v2045
        %v3150 = vunpack.c.l.b16 %v2046
        %v3151 = vunpack.c.l.b16 %v2047
        %v3152 = vunpack.c.l.b16 %v2048
        %v3153 = vunpack.c.l.b16 %v2049
        %v3154 = vunpack.c.l.b16 %v2050
        %v3155 = vunpack.c.l.b16 %v2051
        %v3156 = vunpack.c.l.b16 %v2052
        %v3157 = vunpack.c.l.b16 %v2053
        %v3158 = vunpack.c.l.b16 %v2054
        %v3159 = vunpack.c.l.b16 %v2055
        %v3160 = vunpack.c.l.b16 %v2056
        %v3161 = vunpack.c.l.b16 %v2057
        %v3162 = vunpack.c.l.b16 %v2058
        %v3163 = vunpack.c.l.b16 %v2059
        %v3164 = vunpack.c.l.b16 %v2060
        %v3165 = vpack.c.b16 %v3134, %v3133
        %v3166 = vpack.c.b16 %v3136, %v3135
        %v3167 = vpack.c.b16 %v3138, %v3137
        %v3168 = vpack.c.b16 %v3140, %v3139
        %v3169 = vpack.c.b16 %v3142, %v3141
        %v3170 = vpack.c.b16 %v3144, %v3143
        %v3171 = vpack.c.b16 %v3146, %v3145
        %v3172 = vpack.c.b16 %v3148, %v3147
        %v3173 = vpack.c.b16 %v3150, %v3149
        %v3174 = vpack.c.b16 %v3152, %v3151
        %v3175 = vpack.c.b16 %v3154, %v3153
        %v3176 = vpack.c.b16 %v3156, %v3155
        %v3177 = vpack.c.b16 %v3158, %v3157
        %v3178 = vpack.c.b16 %v3160, %v3159
        %v3179 = vpack.c.b16 %v3162, %v3161
        %v3180 = vpack.c.b16 %v3164, %v3163
        %3181 = vrot.lane.b32.xlu0 %v3165, 24
        %v3182 = vpop.permute.xlu0 %3181
        %3183 = vrot.lane.b32.xlu0 %v3166, 24
        %v3184 = vpop.permute.xlu0 %3183
        %3185 = vrot.lane.b32.xlu0 %v3167, 24
        %v3186 = vpop.permute.xlu0 %3185
        %3187 = vrot.lane.b32.xlu0 %v3168, 24
        %v3188 = vpop.permute.xlu0 %3187
        %3189 = vrot.lane.b32.xlu0 %v3169, 24
        %v3190 = vpop.permute.xlu0 %3189
        %3191 = vrot.lane.b32.xlu0 %v3170, 24
        %v3192 = vpop.permute.xlu0 %3191
        %3193 = vrot.lane.b32.xlu0 %v3171, 24
        %v3194 = vpop.permute.xlu0 %3193
        %3195 = vrot.lane.b32.xlu0 %v3172, 24
        %v3196 = vpop.permute.xlu0 %3195
        %3197 = vrot.lane.b32.xlu0 %v3173, 24
        %v3198 = vpop.permute.xlu0 %3197
        %3199 = vrot.lane.b32.xlu0 %v3174, 24
        %v3200 = vpop.permute.xlu0 %3199
        %3201 = vrot.lane.b32.xlu0 %v3175, 24
        %v3202 = vpop.permute.xlu0 %3201
        %3203 = vrot.lane.b32.xlu0 %v3176, 24
        %v3204 = vpop.permute.xlu0 %3203
        %3205 = vrot.lane.b32.xlu0 %v3177, 24
        %v3206 = vpop.permute.xlu0 %3205
        %3207 = vrot.lane.b32.xlu0 %v3178, 24
        %v3208 = vpop.permute.xlu0 %3207
        %3209 = vrot.lane.b32.xlu0 %v3179, 24
        %v3210 = vpop.permute.xlu0 %3209
        %3211 = vrot.lane.b32.xlu0 %v3180, 24
        %v3212 = vpop.permute.xlu0 %3211
        %v3213 = vunpack.c.l.b16 %v2090
        %v3214 = vunpack.c.l.b16 %v2100
        %v3215 = vunpack.c.l.b16 %v2114
        %v3216 = vunpack.c.l.b16 %v2124
        %v3217 = vunpack.c.l.b16 %v2138
        %v3218 = vunpack.c.l.b16 %v2148
        %v3219 = vunpack.c.l.b16 %v2162
        %v3220 = vunpack.c.l.b16 %v2172
        %v3221 = vunpack.c.l.b16 %v2186
        %v3222 = vunpack.c.l.b16 %v2196
        %v3223 = vunpack.c.l.b16 %v2210
        %v3224 = vunpack.c.l.b16 %v2220
        %v3225 = vunpack.c.l.b16 %v2234
        %v3226 = vunpack.c.l.b16 %v2244
        %v3227 = vunpack.c.l.b16 %v2258
        %v3228 = vunpack.c.l.b16 %v2268
        %v3229 = vunpack.c.l.b16 %v2282
        %v3230 = vunpack.c.l.b16 %v2292
        %v3231 = vunpack.c.l.b16 %v2306
        %v3232 = vunpack.c.l.b16 %v2316
        %v3233 = vunpack.c.l.b16 %v2330
        %v3234 = vunpack.c.l.b16 %v2340
        %v3235 = vunpack.c.l.b16 %v2354
        %v3236 = vunpack.c.l.b16 %v2364
        %v3237 = vunpack.c.l.b16 %v2378
        %v3238 = vunpack.c.l.b16 %v2388
        %v3239 = vunpack.c.l.b16 %v2402
        %v3240 = vunpack.c.l.b16 %v2412
        %v3241 = vunpack.c.l.b16 %v2426
        %v3242 = vunpack.c.l.b16 %v2436
        %v3243 = vunpack.c.l.b16 %v2450
        %v3244 = vunpack.c.l.b16 %v2460
        %v3245 = vpack.c.b16 %v3214, %v3213
        %v3246 = vpack.c.b16 %v3216, %v3215
        %v3247 = vpack.c.b16 %v3218, %v3217
        %v3248 = vpack.c.b16 %v3220, %v3219
        %v3249 = vpack.c.b16 %v3222, %v3221
        %v3250 = vpack.c.b16 %v3224, %v3223
        %v3251 = vpack.c.b16 %v3226, %v3225
        %v3252 = vpack.c.b16 %v3228, %v3227
        %v3253 = vpack.c.b16 %v3230, %v3229
        %v3254 = vpack.c.b16 %v3232, %v3231
        %v3255 = vpack.c.b16 %v3234, %v3233
        %v3256 = vpack.c.b16 %v3236, %v3235
        %v3257 = vpack.c.b16 %v3238, %v3237
        %v3258 = vpack.c.b16 %v3240, %v3239
        %v3259 = vpack.c.b16 %v3242, %v3241
        %v3260 = vpack.c.b16 %v3244, %v3243
        %3261 = vrot.lane.b32.xlu0 %v3245, 28
        %v3262 = vpop.permute.xlu0 %3261
        %3263 = vrot.lane.b32.xlu0 %v3246, 28
        %v3264 = vpop.permute.xlu0 %3263
        %3265 = vrot.lane.b32.xlu0 %v3247, 28
        %v3266 = vpop.permute.xlu0 %3265
        %3267 = vrot.lane.b32.xlu0 %v3248, 28
        %v3268 = vpop.permute.xlu0 %3267
        %3269 = vrot.lane.b32.xlu0 %v3249, 28
        %v3270 = vpop.permute.xlu0 %3269
        %3271 = vrot.lane.b32.xlu0 %v3250, 28
        %v3272 = vpop.permute.xlu0 %3271
        %3273 = vrot.lane.b32.xlu0 %v3251, 28
        %v3274 = vpop.permute.xlu0 %3273
        %3275 = vrot.lane.b32.xlu0 %v3252, 28
        %v3276 = vpop.permute.xlu0 %3275
        %3277 = vrot.lane.b32.xlu0 %v3253, 28
        %v3278 = vpop.permute.xlu0 %3277
        %3279 = vrot.lane.b32.xlu0 %v3254, 28
        %v3280 = vpop.permute.xlu0 %3279
        %3281 = vrot.lane.b32.xlu0 %v3255, 28
        %v3282 = vpop.permute.xlu0 %3281
        %3283 = vrot.lane.b32.xlu0 %v3256, 28
        %v3284 = vpop.permute.xlu0 %3283
        %3285 = vrot.lane.b32.xlu0 %v3257, 28
        %v3286 = vpop.permute.xlu0 %3285
        %3287 = vrot.lane.b32.xlu0 %v3258, 28
        %v3288 = vpop.permute.xlu0 %3287
        %3289 = vrot.lane.b32.xlu0 %v3259, 28
        %v3290 = vpop.permute.xlu0 %3289
        %3291 = vrot.lane.b32.xlu0 %v3260, 28
        %v3292 = vpop.permute.xlu0 %3291
        %v3293 = vunpack.c.l.b16 %v2528
        %v3294 = vunpack.c.l.b16 %v2531
        %v3295 = vunpack.c.l.b16 %v2535
        %v3296 = vunpack.c.l.b16 %v2538
        %v3297 = vunpack.c.l.b16 %v2542
        %v3298 = vunpack.c.l.b16 %v2545
        %v3299 = vunpack.c.l.b16 %v2549
        %v3300 = vunpack.c.l.b16 %v2552
        %v3301 = vunpack.c.l.b16 %v2556
        %v3302 = vunpack.c.l.b16 %v2559
        %v3303 = vunpack.c.l.b16 %v2563
        %v3304 = vunpack.c.l.b16 %v2566
        %v3305 = vunpack.c.l.b16 %v2570
        %v3306 = vunpack.c.l.b16 %v2573
        %v3307 = vunpack.c.l.b16 %v2577
        %v3308 = vunpack.c.l.b16 %v2580
        %v3309 = vunpack.c.l.b16 %v2584
        %v3310 = vunpack.c.l.b16 %v2587
        %v3311 = vunpack.c.l.b16 %v2591
        %v3312 = vunpack.c.l.b16 %v2594
        %v3313 = vunpack.c.l.b16 %v2598
        %v3314 = vunpack.c.l.b16 %v2601
        %v3315 = vunpack.c.l.b16 %v2605
        %v3316 = vunpack.c.l.b16 %v2608
        %v3317 = vunpack.c.l.b16 %v2612
        %v3318 = vunpack.c.l.b16 %v2615
        %v3319 = vunpack.c.l.b16 %v2619
        %v3320 = vunpack.c.l.b16 %v2622
        %v3321 = vunpack.c.l.b16 %v2626
        %v3322 = vunpack.c.l.b16 %v2629
        %v3323 = vunpack.c.l.b16 %v2633
        %v3324 = vunpack.c.l.b16 %v2636
        %v3325 = vpack.c.b16 %v3294, %v3293
        %v3326 = vpack.c.b16 %v3296, %v3295
        %v3327 = vpack.c.b16 %v3298, %v3297
        %v3328 = vpack.c.b16 %v3300, %v3299
        %v3329 = vpack.c.b16 %v3302, %v3301
        %v3330 = vpack.c.b16 %v3304, %v3303
        %v3331 = vpack.c.b16 %v3306, %v3305
        %v3332 = vpack.c.b16 %v3308, %v3307
        %v3333 = vpack.c.b16 %v3310, %v3309
        %v3334 = vpack.c.b16 %v3312, %v3311
        %v3335 = vpack.c.b16 %v3314, %v3313
        %v3336 = vpack.c.b16 %v3316, %v3315
        %v3337 = vpack.c.b16 %v3318, %v3317
        %v3338 = vpack.c.b16 %v3320, %v3319
        %v3339 = vpack.c.b16 %v3322, %v3321
        %v3340 = vpack.c.b16 %v3324, %v3323
        %3341 = vrot.lane.b32.xlu0 %v3325, 32
        %v3342 = vpop.permute.xlu0 %3341
        %3343 = vrot.lane.b32.xlu0 %v3326, 32
        %v3344 = vpop.permute.xlu0 %3343
        %3345 = vrot.lane.b32.xlu0 %v3327, 32
        %v3346 = vpop.permute.xlu0 %3345
        %3347 = vrot.lane.b32.xlu0 %v3328, 32
        %v3348 = vpop.permute.xlu0 %3347
        %3349 = vrot.lane.b32.xlu0 %v3329, 32
        %v3350 = vpop.permute.xlu0 %3349
        %3351 = vrot.lane.b32.xlu0 %v3330, 32
        %v3352 = vpop.permute.xlu0 %3351
        %3353 = vrot.lane.b32.xlu0 %v3331, 32
        %v3354 = vpop.permute.xlu0 %3353
        %3355 = vrot.lane.b32.xlu0 %v3332, 32
        %v3356 = vpop.permute.xlu0 %3355
        %3357 = vrot.lane.b32.xlu0 %v3333, 32
        %v3358 = vpop.permute.xlu0 %3357
        %3359 = vrot.lane.b32.xlu0 %v3334, 32
        %v3360 = vpop.permute.xlu0 %3359
        %3361 = vrot.lane.b32.xlu0 %v3335, 32
        %v3362 = vpop.permute.xlu0 %3361
        %3363 = vrot.lane.b32.xlu0 %v3336, 32
        %v3364 = vpop.permute.xlu0 %3363
        %3365 = vrot.lane.b32.xlu0 %v3337, 32
        %v3366 = vpop.permute.xlu0 %3365
        %3367 = vrot.lane.b32.xlu0 %v3338, 32
        %v3368 = vpop.permute.xlu0 %3367
        %3369 = vrot.lane.b32.xlu0 %v3339, 32
        %v3370 = vpop.permute.xlu0 %3369
        %3371 = vrot.lane.b32.xlu0 %v3340, 32
        %v3372 = vpop.permute.xlu0 %3371
        %vm3373 = vcmask 31744
        %v3376 = vsel %vm3373, %v2685, %v2750
        %v3379 = vsel %vm3373, %v2686, %v2752
        %v3382 = vsel %vm3373, %v2687, %v2754
        %v3385 = vsel %vm3373, %v2688, %v2756
        %v3388 = vsel %vm3373, %v2689, %v2758
        %v3391 = vsel %vm3373, %v2690, %v2760
        %v3394 = vsel %vm3373, %v2691, %v2762
        %v3397 = vsel %vm3373, %v2692, %v2764
        %v3400 = vsel %vm3373, %v2693, %v2766
        %v3403 = vsel %vm3373, %v2694, %v2768
        %v3406 = vsel %vm3373, %v2695, %v2770
        %v3409 = vsel %vm3373, %v2696, %v2772
        %v3412 = vsel %vm3373, %v2697, %v2774
        %v3415 = vsel %vm3373, %v2698, %v2776
        %v3418 = vsel %vm3373, %v2699, %v2778
        %v3421 = vsel %vm3373, %v2700, %v2780
        %vm3422 = vcmask 64512
        %v3424 = vsel %vm3422, %v3376, %v2830
        %v3426 = vsel %vm3422, %v3379, %v2832
        %v3428 = vsel %vm3422, %v3382, %v2834
        %v3430 = vsel %vm3422, %v3385, %v2836
        %v3432 = vsel %vm3422, %v3388, %v2838
        %v3434 = vsel %vm3422, %v3391, %v2840
        %v3436 = vsel %vm3422, %v3394, %v2842
        %v3438 = vsel %vm3422, %v3397, %v2844
        %v3440 = vsel %vm3422, %v3400, %v2846
        %v3442 = vsel %vm3422, %v3403, %v2848
        %v3444 = vsel %vm3422, %v3406, %v2850
        %v3446 = vsel %vm3422, %v3409, %v2852
        %v3448 = vsel %vm3422, %v3412, %v2854
        %v3450 = vsel %vm3422, %v3415, %v2856
        %v3452 = vsel %vm3422, %v3418, %v2858
        %v3454 = vsel %vm3422, %v3421, %v2860
        %vm3455 = vcmask 97280
        %v3457 = vsel %vm3455, %v3424, %v2926
        %v3459 = vsel %vm3455, %v3426, %v2928
        %v3461 = vsel %vm3455, %v3428, %v2930
        %v3463 = vsel %vm3455, %v3430, %v2932
        %v3465 = vsel %vm3455, %v3432, %v2934
        %v3467 = vsel %vm3455, %v3434, %v2936
        %v3469 = vsel %vm3455, %v3436, %v2938
        %v3471 = vsel %vm3455, %v3438, %v2940
        %v3473 = vsel %vm3455, %v3440, %v2942
        %v3475 = vsel %vm3455, %v3442, %v2944
        %v3477 = vsel %vm3455, %v3444, %v2946
        %v3479 = vsel %vm3455, %v3446, %v2948
        %v3481 = vsel %vm3455, %v3448, %v2950
        %v3483 = vsel %vm3455, %v3450, %v2952
        %v3485 = vsel %vm3455, %v3452, %v2954
        %v3487 = vsel %vm3455, %v3454, %v2956
        %vm3488 = vcmask 130048
        %v3490 = vsel %vm3488, %v3457, %v3006
        %v3492 = vsel %vm3488, %v3459, %v3008
        %v3494 = vsel %vm3488, %v3461, %v3010
        %v3496 = vsel %vm3488, %v3463, %v3012
        %v3498 = vsel %vm3488, %v3465, %v3014
        %v3500 = vsel %vm3488, %v3467, %v3016
        %v3502 = vsel %vm3488, %v3469, %v3018
        %v3504 = vsel %vm3488, %v3471, %v3020
        %v3506 = vsel %vm3488, %v3473, %v3022
        %v3508 = vsel %vm3488, %v3475, %v3024
        %v3510 = vsel %vm3488, %v3477, %v3026
        %v3512 = vsel %vm3488, %v3479, %v3028
        %v3514 = vsel %vm3488, %v3481, %v3030
        %v3516 = vsel %vm3488, %v3483, %v3032
        %v3518 = vsel %vm3488, %v3485, %v3034
        %v3520 = vsel %vm3488, %v3487, %v3036
        %vm3521 = vcmask 162816
        %v3523 = vsel %vm3521, %v3490, %v3086
        %v3525 = vsel %vm3521, %v3492, %v3088
        %v3527 = vsel %vm3521, %v3494, %v3090
        %v3529 = vsel %vm3521, %v3496, %v3092
        %v3531 = vsel %vm3521, %v3498, %v3094
        %v3533 = vsel %vm3521, %v3500, %v3096
        %v3535 = vsel %vm3521, %v3502, %v3098
        %v3537 = vsel %vm3521, %v3504, %v3100
        %v3539 = vsel %vm3521, %v3506, %v3102
        %v3541 = vsel %vm3521, %v3508, %v3104
        %v3543 = vsel %vm3521, %v3510, %v3106
        %v3545 = vsel %vm3521, %v3512, %v3108
        %v3547 = vsel %vm3521, %v3514, %v3110
        %v3549 = vsel %vm3521, %v3516, %v3112
        %v3551 = vsel %vm3521, %v3518, %v3114
        %v3553 = vsel %vm3521, %v3520, %v3116
        %vm3554 = vcmask 195584
        %v3556 = vsel %vm3554, %v3523, %v3182
        %v3558 = vsel %vm3554, %v3525, %v3184
        %v3560 = vsel %vm3554, %v3527, %v3186
        %v3562 = vsel %vm3554, %v3529, %v3188
        %v3564 = vsel %vm3554, %v3531, %v3190
        %v3566 = vsel %vm3554, %v3533, %v3192
        %v3568 = vsel %vm3554, %v3535, %v3194
        %v3570 = vsel %vm3554, %v3537, %v3196
        %v3572 = vsel %vm3554, %v3539, %v3198
        %v3574 = vsel %vm3554, %v3541, %v3200
        %v3576 = vsel %vm3554, %v3543, %v3202
        %v3578 = vsel %vm3554, %v3545, %v3204
        %v3580 = vsel %vm3554, %v3547, %v3206
        %v3582 = vsel %vm3554, %v3549, %v3208
        %v3584 = vsel %vm3554, %v3551, %v3210
        %v3586 = vsel %vm3554, %v3553, %v3212
        %vm3587 = vcmask 228352
        %v3589 = vsel %vm3587, %v3556, %v3262
        %v3591 = vsel %vm3587, %v3558, %v3264
        %v3593 = vsel %vm3587, %v3560, %v3266
        %v3595 = vsel %vm3587, %v3562, %v3268
        %v3597 = vsel %vm3587, %v3564, %v3270
        %v3599 = vsel %vm3587, %v3566, %v3272
        %v3601 = vsel %vm3587, %v3568, %v3274
        %v3603 = vsel %vm3587, %v3570, %v3276
        %v3605 = vsel %vm3587, %v3572, %v3278
        %v3607 = vsel %vm3587, %v3574, %v3280
        %v3609 = vsel %vm3587, %v3576, %v3282
        %v3611 = vsel %vm3587, %v3578, %v3284
        %v3613 = vsel %vm3587, %v3580, %v3286
        %v3615 = vsel %vm3587, %v3582, %v3288
        %v3617 = vsel %vm3587, %v3584, %v3290
        %v3619 = vsel %vm3587, %v3586, %v3292
        %vm3620 = vcmask 261120
        %v3622 = vsel %vm3620, %v3589, %v3342
        %v3624 = vsel %vm3620, %v3591, %v3344
        %v3626 = vsel %vm3620, %v3593, %v3346
        %v3628 = vsel %vm3620, %v3595, %v3348
        %v3630 = vsel %vm3620, %v3597, %v3350
        %v3632 = vsel %vm3620, %v3599, %v3352
        %v3634 = vsel %vm3620, %v3601, %v3354
        %v3636 = vsel %vm3620, %v3603, %v3356
        %v3638 = vsel %vm3620, %v3605, %v3358
        %v3640 = vsel %vm3620, %v3607, %v3360
        %v3642 = vsel %vm3620, %v3609, %v3362
        %v3644 = vsel %vm3620, %v3611, %v3364
        %v3646 = vsel %vm3620, %v3613, %v3366
        %v3648 = vsel %vm3620, %v3615, %v3368
        %v3650 = vsel %vm3620, %v3617, %v3370
        %v3652 = vsel %vm3620, %v3619, %v3372
        %v3653 = vld [vmem:[%s1] sm:$0xf]
        %v3654 = vld [vmem:[%s1 + $0x4] sm:$0xf]
        %v3655 = vld [vmem:[%s1 + $0x8] sm:$0xf]
        %v3656 = vld [vmem:[%s1 + $0xc] sm:$0xf]
        %v3657 = vld [vmem:[%s1 + $0x10] sm:$0x3]
        %v3658 = vld [vmem:[%s2] sm:$0x1]
        %v3660 = vlaneseq
        %v3661 = vshrl.u32 %v3660, 7
        %v3662 = vsub.s32 0, %v3661
        %v3663 = vrot.slane %v3658, %v3662
        %v3670 = vunpack.c.l.b16 %v3653
        %v3671 = vunpack.c.l.b16 %v3654
        %v3672 = vunpack.c.l.b16 %v3655
        %v3673 = vunpack.c.l.b16 %v3656
        %v3674 = vunpack.c.l.b16 %v3657
        %v3675 = vpack.c.b16 %v3671, %v3670
        %v3676 = vpack.c.b16 %v3673, %v3672
        %v3677 = vpack.c.b16 %v3674, %v3674
        %vm3680 = vcmask 293888
        %v3681 = vsel %vm3680, %v3622, 0
        %v3683 = vsel %vm3680, %v3624, 0
        %v3685 = vsel %vm3680, %v3626, 0
        %v3687 = vsel %vm3680, %v3628, 0
        %v3689 = vsel %vm3680, %v3630, 0
        %v3691 = vsel %vm3680, %v3632, 0
        %v3693 = vsel %vm3680, %v3634, 0
        %v3695 = vsel %vm3680, %v3636, 0
        %v3697 = vsel %vm3680, %v3638, 0
        %v3699 = vsel %vm3680, %v3640, 0
        %v3701 = vsel %vm3680, %v3642, 0
        %v3703 = vsel %vm3680, %v3644, 0
        %v3705 = vsel %vm3680, %v3646, 0
        %v3707 = vsel %vm3680, %v3648, 0
        %v3709 = vsel %vm3680, %v3650, 0
        %v3711 = vsel %vm3680, %v3652, 0
        %vm3713 = vcmask 1041408
        %v3715 = vsel %vm3713, %v3677, 0
        %3717 = vmatprep.subr.bf16.mxu0 0
        %3718 = vmatpush1.bf16.msra.mxu0 %v3675
        %3719 = vmatprep.subr.bf16.mxu0 0
        %3720 = vmatpush1.bf16.msra.mxu0 %v3676
        %3721 = vmatprep.subr.bf16.mxu0 0
        %3722 = vmatpush1.bf16.msra.mxu0 %v3715
        %3723 = vmatprep.subr.bf16.mxu0 0
        %3724 = vmatpush1.bf16.msra.mxu0 0
        %3725 = vmatprep.subr.bf16.mxu0 0
        %3726 = vmatpush1.bf16.msra.mxu0 0
        %3727 = vmatprep.subr.bf16.mxu0 0
        %3728 = vmatpush1.bf16.msra.mxu0 0
        %3729 = vmatprep.subr.bf16.mxu0 0
        %3730 = vmatpush1.bf16.msra.mxu0 0
        %3731 = vmatprep.subr.bf16.mxu0 0
        %3732 = vmatpush1.bf16.msra.mxu0 0
        %3733 = vmatprep.subr.bf16.mxu0 0
        %3734 = vmatpush1.bf16.msra.mxu0 0
        %3735 = vmatprep.subr.bf16.mxu0 0
        %3736 = vmatpush1.bf16.msra.mxu0 0
        %3737 = vmatprep.subr.bf16.mxu0 0
        %3738 = vmatpush1.bf16.msra.mxu0 0
        %3739 = vmatprep.subr.bf16.mxu0 0
        %3740 = vmatpush1.bf16.msra.mxu0 0
        %3741 = vmatprep.subr.bf16.mxu0 0
        %3742 = vmatpush1.bf16.msra.mxu0 0
        %3743 = vmatprep.subr.bf16.mxu0 0
        %3744 = vmatpush1.bf16.msra.mxu0 0
        %3745 = vmatprep.subr.bf16.mxu0 0
        %3746 = vmatpush1.bf16.msra.mxu0 0
        %3747 = vmatprep.subr.bf16.mxu0 0
        %3748 = vmatpush1.bf16.msra.mxu0 0
        %3749 = vmatprep.mubr.bf16.mxu0 0
        %3750 = vmatmul.mubr.bf16.gmra.mrb[0].mxu0 %v3681
        %v3751 = vpop.f32.mrb[0].mxu0
        %v3752 = vadd.f32 %v3663, %v3751
        %v3753 = vpop.f32.mrb[0].mxu0
        %v3754 = vpop.f32.mrb[0].mxu0
        %v3755 = vadd.f32 %v3663, %v3754
        %v3756 = vpop.f32.mrb[0].mxu0
        %3757 = vmatprep.mubr.bf16.mxu0 0
        %3758 = vmatmul.mubr.bf16.gmra.mrb[0].mxu0 %v3683
        %v3759 = vpop.f32.mrb[0].mxu0
        %v3760 = vadd.f32 %v3663, %v3759
        %v3761 = vpop.f32.mrb[0].mxu0
        %v3762 = vpop.f32.mrb[0].mxu0
        %v3763 = vadd.f32 %v3663, %v3762
        %v3764 = vpop.f32.mrb[0].mxu0
        %3765 = vmatprep.mubr.bf16.mxu0 0
        %3766 = vmatmul.mubr.bf16.gmra.mrb[0].mxu0 %v3685
        %v3767 = vpop.f32.mrb[0].mxu0
        %v3768 = vadd.f32 %v3663, %v3767
        %v3769 = vpop.f32.mrb[0].mxu0
        %v3770 = vpop.f32.mrb[0].mxu0
        %v3771 = vadd.f32 %v3663, %v3770
        %v3772 = vpop.f32.mrb[0].mxu0
        %3773 = vmatprep.mubr.bf16.mxu0 0
        %3774 = vmatmul.mubr.bf16.gmra.mrb[0].mxu0 %v3687
        %v3775 = vpop.f32.mrb[0].mxu0
        %v3776 = vadd.f32 %v3663, %v3775
        %v3777 = vpop.f32.mrb[0].mxu0
        %v3778 = vpop.f32.mrb[0].mxu0
        %v3779 = vadd.f32 %v3663, %v3778
        %v3780 = vpop.f32.mrb[0].mxu0
        %3781 = vmatprep.mubr.bf16.mxu0 0
        %3782 = vmatmul.mubr.bf16.gmra.mrb[0].mxu0 %v3689
        %v3783 = vpop.f32.mrb[0].mxu0
        %v3784 = vadd.f32 %v3663, %v3783
        %v3785 = vpop.f32.mrb[0].mxu0
        %v3786 = vpop.f32.mrb[0].mxu0
        %v3787 = vadd.f32 %v3663, %v3786
        %v3788 = vpop.f32.mrb[0].mxu0
        %3789 = vmatprep.mubr.bf16.mxu0 0
        %3790 = vmatmul.mubr.bf16.gmra.mrb[0].mxu0 %v3691
        %v3791 = vpop.f32.mrb[0].mxu0
        %v3792 = vadd.f32 %v3663, %v3791
        %v3793 = vpop.f32.mrb[0].mxu0
        %v3794 = vpop.f32.mrb[0].mxu0
        %v3795 = vadd.f32 %v3663, %v3794
        %v3796 = vpop.f32.mrb[0].mxu0
        %3797 = vmatprep.mubr.bf16.mxu0 0
        %3798 = vmatmul.mubr.bf16.gmra.mrb[0].mxu0 %v3693
        %v3799 = vpop.f32.mrb[0].mxu0
        %v3800 = vadd.f32 %v3663, %v3799
        %v3801 = vpop.f32.mrb[0].mxu0
        %v3802 = vpop.f32.mrb[0].mxu0
        %v3803 = vadd.f32 %v3663, %v3802
        %v3804 = vpop.f32.mrb[0].mxu0
        %3805 = vmatprep.mubr.bf16.mxu0 0
        %3806 = vmatmul.mubr.bf16.gmra.mrb[0].mxu0 %v3695
        %v3807 = vpop.f32.mrb[0].mxu0
        %v3808 = vadd.f32 %v3663, %v3807
        %v3809 = vpop.f32.mrb[0].mxu0
        %v3810 = vpop.f32.mrb[0].mxu0
        %v3811 = vadd.f32 %v3663, %v3810
        %v3812 = vpop.f32.mrb[0].mxu0
        %3813 = vmatprep.mubr.bf16.mxu0 0
        %3814 = vmatmul.mubr.bf16.gmra.mrb[0].mxu0 %v3697
        %v3815 = vpop.f32.mrb[0].mxu0
        %v3816 = vadd.f32 %v3663, %v3815
        %v3817 = vpop.f32.mrb[0].mxu0
        %v3818 = vpop.f32.mrb[0].mxu0
        %v3819 = vadd.f32 %v3663, %v3818
        %v3820 = vpop.f32.mrb[0].mxu0
        %3821 = vmatprep.mubr.bf16.mxu0 0
        %3822 = vmatmul.mubr.bf16.gmra.mrb[0].mxu0 %v3699
        %v3823 = vpop.f32.mrb[0].mxu0
        %v3824 = vadd.f32 %v3663, %v3823
        %v3825 = vpop.f32.mrb[0].mxu0
        %v3826 = vpop.f32.mrb[0].mxu0
        %v3827 = vadd.f32 %v3663, %v3826
        %v3828 = vpop.f32.mrb[0].mxu0
        %3829 = vmatprep.mubr.bf16.mxu0 0
        %3830 = vmatmul.mubr.bf16.gmra.mrb[0].mxu0 %v3701
        %v3831 = vpop.f32.mrb[0].mxu0
        %v3832 = vadd.f32 %v3663, %v3831
        %v3833 = vpop.f32.mrb[0].mxu0
        %v3834 = vpop.f32.mrb[0].mxu0
        %v3835 = vadd.f32 %v3663, %v3834
        %v3836 = vpop.f32.mrb[0].mxu0
        %3837 = vmatprep.mubr.bf16.mxu0 0
        %3838 = vmatmul.mubr.bf16.gmra.mrb[0].mxu0 %v3703
        %v3839 = vpop.f32.mrb[0].mxu0
        %v3840 = vadd.f32 %v3663, %v3839
        %v3841 = vpop.f32.mrb[0].mxu0
        %v3842 = vpop.f32.mrb[0].mxu0
        %v3843 = vadd.f32 %v3663, %v3842
        %v3844 = vpop.f32.mrb[0].mxu0
        %3845 = vmatprep.mubr.bf16.mxu0 0
        %3846 = vmatmul.mubr.bf16.gmra.mrb[0].mxu0 %v3705
        %v3847 = vpop.f32.mrb[0].mxu0
        %v3848 = vadd.f32 %v3663, %v3847
        %v3849 = vpop.f32.mrb[0].mxu0
        %v3850 = vpop.f32.mrb[0].mxu0
        %v3851 = vadd.f32 %v3663, %v3850
        %v3852 = vpop.f32.mrb[0].mxu0
        %3853 = vmatprep.mubr.bf16.mxu0 0
        %3854 = vmatmul.mubr.bf16.gmra.mrb[0].mxu0 %v3707
        %v3855 = vpop.f32.mrb[0].mxu0
        %v3856 = vadd.f32 %v3663, %v3855
        %v3857 = vpop.f32.mrb[0].mxu0
        %v3858 = vpop.f32.mrb[0].mxu0
        %v3859 = vadd.f32 %v3663, %v3858
        %v3860 = vpop.f32.mrb[0].mxu0
        %3861 = vmatprep.mubr.bf16.mxu0 0
        %3862 = vmatmul.mubr.bf16.gmra.mrb[0].mxu0 %v3709
        %v3863 = vpop.f32.mrb[0].mxu0
        %v3864 = vadd.f32 %v3663, %v3863
        %v3865 = vpop.f32.mrb[0].mxu0
        %v3866 = vpop.f32.mrb[0].mxu0
        %v3867 = vadd.f32 %v3663, %v3866
        %v3868 = vpop.f32.mrb[0].mxu0
        %3869 = vmatprep.mubr.bf16.mxu0 0
        %3870 = vmatmul.mubr.bf16.gmra.mrb[0].mxu0 %v3711
        %v3871 = vpop.f32.mrb[0].mxu0
        %v3872 = vadd.f32 %v3663, %v3871
        %v3873 = vpop.f32.mrb[0].mxu0
        %v3874 = vpop.f32.mrb[0].mxu0
        %v3875 = vadd.f32 %v3663, %v3874
        %v3876 = vpop.f32.mrb[0].mxu0
        %3877 = vdwg.mxu0
        %v3878 = vmax.f32 %v3752, 0.0
        %v3879 = vmax.f32 %v3755, 0.0
        %v3880 = vmax.f32 %v3760, 0.0
        %v3881 = vmax.f32 %v3763, 0.0
        %v3882 = vmax.f32 %v3768, 0.0
        %v3883 = vmax.f32 %v3771, 0.0
        %v3884 = vmax.f32 %v3776, 0.0
        %v3885 = vmax.f32 %v3779, 0.0
        %v3886 = vmax.f32 %v3784, 0.0
        %v3887 = vmax.f32 %v3787, 0.0
        %v3888 = vmax.f32 %v3792, 0.0
        %v3889 = vmax.f32 %v3795, 0.0
        %v3890 = vmax.f32 %v3800, 0.0
        %v3891 = vmax.f32 %v3803, 0.0
        %v3892 = vmax.f32 %v3808, 0.0
        %v3893 = vmax.f32 %v3811, 0.0
        %v3894 = vmax.f32 %v3816, 0.0
        %v3895 = vmax.f32 %v3819, 0.0
        %v3896 = vmax.f32 %v3824, 0.0
        %v3897 = vmax.f32 %v3827, 0.0
        %v3898 = vmax.f32 %v3832, 0.0
        %v3899 = vmax.f32 %v3835, 0.0
        %v3900 = vmax.f32 %v3840, 0.0
        %v3901 = vmax.f32 %v3843, 0.0
        %v3902 = vmax.f32 %v3848, 0.0
        %v3903 = vmax.f32 %v3851, 0.0
        %v3904 = vmax.f32 %v3856, 0.0
        %v3905 = vmax.f32 %v3859, 0.0
        %v3906 = vmax.f32 %v3864, 0.0
        %v3907 = vmax.f32 %v3867, 0.0
        %v3908 = vmax.f32 %v3872, 0.0
        %v3909 = vmax.f32 %v3875, 0.0
        %v3910 = vsel %vm3488, %v3878, 0.0
        %v3911 = vsel %vm3488, %v3879, 0.0
        %v3912 = vadd.f32 %v3910, %v3911
        %v3913 = vsel %vm3488, %v3880, 0.0
        %v3914 = vadd.f32 %v3912, %v3913
        %v3915 = vsel %vm3488, %v3881, 0.0
        %v3916 = vadd.f32 %v3914, %v3915
        %v3917 = vsel %vm3488, %v3882, 0.0
        %v3918 = vadd.f32 %v3916, %v3917
        %v3919 = vsel %vm3488, %v3883, 0.0
        %v3920 = vadd.f32 %v3918, %v3919
        %v3921 = vsel %vm3488, %v3884, 0.0
        %v3922 = vadd.f32 %v3920, %v3921
        %v3923 = vsel %vm3488, %v3885, 0.0
        %v3924 = vadd.f32 %v3922, %v3923
        %v3925 = vsel %vm3488, %v3886, 0.0
        %v3926 = vadd.f32 %v3924, %v3925
        %v3927 = vsel %vm3488, %v3887, 0.0
        %v3928 = vadd.f32 %v3926, %v3927
        %v3929 = vsel %vm3488, %v3888, 0.0
        %v3930 = vadd.f32 %v3928, %v3929
        %v3931 = vsel %vm3488, %v3889, 0.0
        %v3932 = vadd.f32 %v3930, %v3931
        %v3933 = vsel %vm3488, %v3890, 0.0
        %v3934 = vadd.f32 %v3932, %v3933
        %v3935 = vsel %vm3488, %v3891, 0.0
        %v3936 = vadd.f32 %v3934, %v3935
        %v3937 = vsel %vm3488, %v3892, 0.0
        %v3938 = vadd.f32 %v3936, %v3937
        %v3939 = vsel %vm3488, %v3893, 0.0
        %v3940 = vadd.f32 %v3938, %v3939
        %v3941 = vsel %vm3488, %v3894, 0.0
        %v3942 = vadd.f32 %v3940, %v3941
        %v3943 = vsel %vm3488, %v3895, 0.0
        %v3944 = vadd.f32 %v3942, %v3943
        %v3945 = vsel %vm3488, %v3896, 0.0
        %v3946 = vadd.f32 %v3944, %v3945
        %v3947 = vsel %vm3488, %v3897, 0.0
        %v3948 = vadd.f32 %v3946, %v3947
        %v3949 = vsel %vm3488, %v3898, 0.0
        %v3950 = vadd.f32 %v3948, %v3949
        %v3951 = vsel %vm3488, %v3899, 0.0
        %v3952 = vadd.f32 %v3950, %v3951
        %v3953 = vsel %vm3488, %v3900, 0.0
        %v3954 = vadd.f32 %v3952, %v3953
        %v3955 = vsel %vm3488, %v3901, 0.0
        %v3956 = vadd.f32 %v3954, %v3955
        %v3957 = vsel %vm3488, %v3902, 0.0
        %v3958 = vadd.f32 %v3956, %v3957
        %v3959 = vsel %vm3488, %v3903, 0.0
        %v3960 = vadd.f32 %v3958, %v3959
        %v3961 = vsel %vm3488, %v3904, 0.0
        %v3962 = vadd.f32 %v3960, %v3961
        %v3963 = vsel %vm3488, %v3905, 0.0
        %v3964 = vadd.f32 %v3962, %v3963
        %v3965 = vsel %vm3488, %v3906, 0.0
        %v3966 = vadd.f32 %v3964, %v3965
        %v3967 = vsel %vm3488, %v3907, 0.0
        %v3968 = vadd.f32 %v3966, %v3967
        %v3969 = vsel %vm3488, %v3908, 0.0
        %v3970 = vadd.f32 %v3968, %v3969
        %v3971 = vsel %vm3488, %v3909, 0.0
        %v3972 = vadd.f32 %v3970, %v3971
        %v3973 = vrot.slane %v3972, 4
        %v3974 = vadd.f32 %v3972, %v3973
        %v3975 = vrot.slane %v3974, 2
        %v3976 = vadd.f32 %v3974, %v3975
        %v3977 = vrot.slane %v3976, 1
        %v3978 = vadd.f32 %v3976, %v3977
        %v3979 = vrcp.pop 256.0
        %v3980 = vmul.f32 %v3978, %v3979
        %v3981 = vpack.c.bf16 %v3980, %v3980
        %v3982 = vld [vmem:[%s3] sm:$0xf]
        %v3983 = vld [vmem:[%s3 + $0x4] sm:$0xf]
        %v3984 = vld [vmem:[%s4] sm:$0x1]
        %v3987 = vunpack.c.l.b16 %v3982
        %v3988 = vunpack.c.l.b16 %v3983
        %v3989 = vpack.c.b16 %v3988, %v3987
        %v3992 = vsel %vm3488, %v3981, 0
        %3994 = vmatprep.subr.bf16.mxu0 0
        %3995 = vmatpush1.bf16.msra.mxu0 %v3989
        %3996 = vmatprep.subr.bf16.mxu0 0
        %3997 = vmatpush1.bf16.msra.mxu0 0
        %3998 = vmatprep.subr.bf16.mxu0 0
        %3999 = vmatpush1.bf16.msra.mxu0 0
        %4000 = vmatprep.subr.bf16.mxu0 0
        %4001 = vmatpush1.bf16.msra.mxu0 0
        %4002 = vmatprep.subr.bf16.mxu0 0
        %4003 = vmatpush1.bf16.msra.mxu0 0
        %4004 = vmatprep.subr.bf16.mxu0 0
        %4005 = vmatpush1.bf16.msra.mxu0 0
        %4006 = vmatprep.subr.bf16.mxu0 0
        %4007 = vmatpush1.bf16.msra.mxu0 0
        %4008 = vmatprep.subr.bf16.mxu0 0
        %4009 = vmatpush1.bf16.msra.mxu0 0
        %4010 = vmatprep.subr.bf16.mxu0 0
        %4011 = vmatpush1.bf16.msra.mxu0 0
        %4012 = vmatprep.subr.bf16.mxu0 0
        %4013 = vmatpush1.bf16.msra.mxu0 0
        %4014 = vmatprep.subr.bf16.mxu0 0
        %4015 = vmatpush1.bf16.msra.mxu0 0
        %4016 = vmatprep.subr.bf16.mxu0 0
        %4017 = vmatpush1.bf16.msra.mxu0 0
        %4018 = vmatprep.subr.bf16.mxu0 0
        %4019 = vmatpush1.bf16.msra.mxu0 0
        %4020 = vmatprep.subr.bf16.mxu0 0
        %4021 = vmatpush1.bf16.msra.mxu0 0
        %4022 = vmatprep.subr.bf16.mxu0 0
        %4023 = vmatpush1.bf16.msra.mxu0 0
        %4024 = vmatprep.subr.bf16.mxu0 0
        %4025 = vmatpush1.bf16.msra.mxu0 0
        %4026 = vmatprep.mubr.bf16.mxu0 0
        %4027 = vmatmul.mubr.bf16.gmra.mrb[0].mxu0 %v3992
        %v4028 = vpop.f32.mrb[0].mxu0
        %v4029 = vadd.f32 %v3984, %v4028
        %v4030 = vpop.f32.mrb[0].mxu0
        %v4031 = vpop.f32.mrb[0].mxu0
        %v4032 = vpop.f32.mrb[0].mxu0
        %4033 = vdwg.mxu0
        %v4034 = vmax.f32 %v4029, 0.0
        %v4035 = vpack.c.bf16 %v4034, %v4034
        %v4036 = vld [vmem:[%s5] sm:$0xf]
        %v4037 = vld [vmem:[%s5 + $0x4] sm:$0xf]
        %v4038 = vld [vmem:[%s5 + $0x8] sm:$0xf]
        %v4039 = vld [vmem:[%s5 + $0xc] sm:$0xf]
        %v4040 = vld [vmem:[%s5 + $0x10] sm:$0xf]
        %v4041 = vld [vmem:[%s5 + $0x14] sm:$0xf]
        %v4042 = vld [vmem:[%s5 + $0x18] sm:$0xf]
        %v4043 = vld [vmem:[%s5 + $0x1c] sm:$0xf]
        %v4044 = vld [vmem:[%s5 + $0x20] sm:$0xf]
        %v4045 = vld [vmem:[%s5 + $0x24] sm:$0xf]
        %v4046 = vld [vmem:[%s5 + $0x28] sm:$0xf]
        %v4047 = vld [vmem:[%s5 + $0x2c] sm:$0xf]
        %v4048 = vld [vmem:[%s5 + $0x30] sm:$0x3]
        %v4049 = vld [vmem:[%s6] sm:$0x1]
        %v4063 = vunpack.c.l.b16 %v4036
        %v4064 = vunpack.c.l.b16 %v4037
        %v4065 = vunpack.c.l.b16 %v4038
        %v4066 = vunpack.c.l.b16 %v4039
        %v4067 = vunpack.c.l.b16 %v4040
        %v4068 = vunpack.c.l.b16 %v4041
        %v4069 = vunpack.c.l.b16 %v4042
        %v4070 = vunpack.c.l.b16 %v4043
        %v4071 = vunpack.c.l.b16 %v4044
        %v4072 = vunpack.c.l.b16 %v4045
        %v4073 = vunpack.c.l.b16 %v4046
        %v4074 = vunpack.c.l.b16 %v4047
        %v4075 = vunpack.c.l.b16 %v4048
        %v4076 = vpack.c.b16 %v4064, %v4063
        %v4077 = vpack.c.b16 %v4066, %v4065
        %v4078 = vpack.c.b16 %v4068, %v4067
        %v4079 = vpack.c.b16 %v4070, %v4069
        %v4080 = vpack.c.b16 %v4072, %v4071
        %v4081 = vpack.c.b16 %v4074, %v4073
        %v4082 = vpack.c.b16 %v4075, %v4075
        %vm4089 = vcmask 818176
        %v4091 = vsel %vm4089, %v4035, 0
        %v4094 = vsel %vm3713, %v4082, 0
        %4096 = vmatprep.subr.bf16.mxu0 0
        %4097 = vmatpush1.bf16.msra.mxu0 %v4076
        %4098 = vmatprep.subr.bf16.mxu0 0
        %4099 = vmatpush1.bf16.msra.mxu0 %v4077
        %4100 = vmatprep.subr.bf16.mxu0 0
        %4101 = vmatpush1.bf16.msra.mxu0 %v4078
        %4102 = vmatprep.subr.bf16.mxu0 0
        %4103 = vmatpush1.bf16.msra.mxu0 %v4079
        %4104 = vmatprep.subr.bf16.mxu0 0
        %4105 = vmatpush1.bf16.msra.mxu0 %v4080
        %4106 = vmatprep.subr.bf16.mxu0 0
        %4107 = vmatpush1.bf16.msra.mxu0 %v4081
        %4108 = vmatprep.subr.bf16.mxu0 0
        %4109 = vmatpush1.bf16.msra.mxu0 %v4094
        %4110 = vmatprep.subr.bf16.mxu0 0
        %4111 = vmatpush1.bf16.msra.mxu0 0
        %4112 = vmatprep.subr.bf16.mxu0 0
        %4113 = vmatpush1.bf16.msra.mxu0 0
        %4114 = vmatprep.subr.bf16.mxu0 0
        %4115 = vmatpush1.bf16.msra.mxu0 0
        %4116 = vmatprep.subr.bf16.mxu0 0
        %4117 = vmatpush1.bf16.msra.mxu0 0
        %4118 = vmatprep.subr.bf16.mxu0 0
        %4119 = vmatpush1.bf16.msra.mxu0 0
        %4120 = vmatprep.subr.bf16.mxu0 0
        %4121 = vmatpush1.bf16.msra.mxu0 0
        %4122 = vmatprep.subr.bf16.mxu0 0
        %4123 = vmatpush1.bf16.msra.mxu0 0
        %4124 = vmatprep.subr.bf16.mxu0 0
        %4125 = vmatpush1.bf16.msra.mxu0 0
        %4126 = vmatprep.subr.bf16.mxu0 0
        %4127 = vmatpush1.bf16.msra.mxu0 0
        %4128 = vmatprep.mubr.bf16.mxu0 0
        %4129 = vmatmul.mubr.bf16.gmra.mrb[0].mxu0 %v4091
        %v4130 = vpop.f32.mrb[0].mxu0
        %v4131 = vadd.f32 %v4049, %v4130
        %v4132 = vpop.f32.mrb[0].mxu0
        %v4133 = vpop.f32.mrb[0].mxu0
        %v4134 = vpop.f32.mrb[0].mxu0
        %4135 = vdwg.mxu0
        %vm4136 = vcmask 73728
        %4137 = vst.msk [vmem:[%s270] sm:$0x1] %vm4136, %v4131
        %s4138 = sand.u32 %s181, 1
        %s4139 = scalar_lea.sflag [#allocation4], %s4138
        %s4140 = sand.u32 %s181, 1
        %s4141 = scalar_lea.vmem [#allocation3], %s4140
        // Predicated region
        $region49: #{cnn_forward.1} parent=47 // pred_check
          %p4142 = pneg %p191
        $region50: #{cnn_forward.1} parent=47 // pred_check_branch
          %4144 = sbr.rel (%p4142) target = $region52
        $region51: #{cnn_forward.1} parent=47 // pred_region
          %s4146 = ssub.s32 16, 16
          %4147 = vsyncadd %s4139, %s4146
          %s4148 = smul.addr %s21, 16
          %s4149 = scalar_lea.hbm %s7, %s4148
          %s4151 = sshll.u32 %s4141, 4
          %s4152 = int_to_ptr.vmem [resolvable:$true] %s4151
          %4154 = dma.vmem_to_hbm [thread:$0]  %s4152, 16, %s4149, %s4139
        $region52: #{cnn_forward.1} parent=47 // pred_fallthru
          _
      $region48: #{cnn_forward.1} parent=5 // pred_fallthru
        _
      %p4155 = scmp.le.s32.totalorder 2, %s16
      // Predicated region
      $region53: #{cnn_forward.1} parent=5 // pred_check
        %p4156 = pneg %p4155
      $region54: #{cnn_forward.1} parent=5 // pred_check_branch
        %4158 = sbr.rel (%p4156) target = $region56
      $region55: #{cnn_forward.1} parent=5 // pred_region
        %s4159 = ssub.s32 %s16, 2
        // Predicated region
        $region57: #{cnn_forward.1} parent=55 // pred_check
          %p4160 = pneg %p197
        $region58: #{cnn_forward.1} parent=55 // pred_check_branch
          %4162 = sbr.rel (%p4160) target = $region60
        $region59: #{cnn_forward.1} parent=55 // pred_region
          %s4163 = sand.u32 %s182, 1
          %s4164 = scalar_lea.sflag [#allocation4], %s4163
          %s4165 = sand.u32 %s182, 1
          %s4166 = scalar_lea.vmem [#allocation3], %s4165
          %4167 = dma.done %s4164, 16
        $region60: #{cnn_forward.1} parent=55 // pred_fallthru
          _
      $region56: #{cnn_forward.1} parent=5 // pred_fallthru
        _
    $region6: #{cnn_forward.1} parent=1 // loop_footer
      %s20 = sadd.s32 1, %s16
    $region7: #{cnn_forward.1} parent=1 // loop_footer_branch
      %15 = sbr.rel target = $region3
    $region8: #{cnn_forward.1} parent=1 // loop_exit
      _
    %4168 = vsyncpa [#allocation4], 1
    %s4169 = scalar_lea.sflag [#allocation4], 1
    %4170 = vsyncpa %s4169, 1

</llo_original>
